<compile_context>
chip_gen: v7x
topology: tpu7x:2x2x1
jax: 0.10.0
libtpu: 0.0.40
codegen_flags: <defaults>
</compile_context>

<pallas_src>
import math

import jax
import jax.numpy as jnp
from jax.experimental import pallas as pl
from jax.experimental.pallas import tpu as pltpu

# ----- small, forward-consistent hyperparameters -----
INPUT_DIM = 8
OUTPUT_DIM = 4
D_MODEL = 32
N_HEAD = 4
D_HEAD = D_MODEL // N_HEAD
D_FF = 64
NUM_LAYERS = 2
SEQ_LEN = 8
BATCH = 4
BLOCK_B = 2                      # batches processed per grid step
BLOCK_TOK = BLOCK_B * SEQ_LEN    # tokens (sublanes) per grid step
LN_EPS = 1e-5
NEG_INF = -1e30                  # additive mask for cross-batch attention entries
SLAB_LANES = 128


# ---------------- packed-weight slab layout (static, shape-only) ----------------

def _slab_layout():
    entries = [
        ("emb_w", INPUT_DIM, D_MODEL),
        ("pe_b", BLOCK_TOK, D_MODEL),     # positional encoding + embedding bias (folded)
        ("mask", BLOCK_TOK, BLOCK_TOK),   # block-diagonal additive attention mask
        ("hsel", BLOCK_B, BLOCK_TOK),     # 0/1 batch-selection matrix for the head Linear
        ("out_b", 1, OUTPUT_DIM),
    ]
    for l in range(NUM_LAYERS):
        p = f"l{l}_"
        entries += [
            (p + "wqkv", D_MODEL, 3 * D_MODEL),
            (p + "bqkv", 1, 3 * D_MODEL),
            (p + "wo", D_MODEL, D_MODEL),
            (p + "bo", 1, D_MODEL),
            (p + "g1", 1, D_MODEL),
            (p + "be1", 1, D_MODEL),
            (p + "w1", D_MODEL, D_FF),
            (p + "b1", 1, D_FF),
            (p + "w2", D_FF, D_MODEL),
            (p + "b2", 1, D_MODEL),
            (p + "g2", 1, D_MODEL),
            (p + "be2", 1, D_MODEL),
        ]
    offs, row = {}, 0
    for name, r, c in entries:
        offs[name] = (row, r, c)
        row += -(-r // 8) * 8            # keep every slot 8-sublane aligned
    return offs, row


SLAB_OFFS, SLAB_ROWS = _slab_layout()


# ---------------- fused Pallas kernel ----------------

def _transformer_kernel(x_ref, slab_ref, out_map_ref, o_ref):
    # x_ref:       (BLOCK_TOK, IN)        activations of one batch block
    # slab_ref:    (SLAB_ROWS, 128)       all weights/constants, one packed slab
    # out_map_ref: (O, BLOCK_TOK, D)      flattened output-Linear weights, per-row map
    # o_ref:       (1, BLOCK_B, O)
    def rd(name):
        off, r, c = SLAB_OFFS[name]
        return slab_ref[off:off + r, 0:c]     # static, tile-aligned sub-block load

    scale = 1.0 / math.sqrt(D_HEAD)

    # ----- embedding Linear + positional encoding (bias folded into pe_b) -----
    h = jnp.dot(x_ref[...], rd("emb_w"),
                preferred_element_type=jnp.float32) + rd("pe_b")       # (BT, D)
    mask = rd("mask")                                                  # (BT, BT)

    for l in range(NUM_LAYERS):
        p = f"l{l}_"

        # ----- fused Q/K/V projection: one (BT,D)@(D,3D) matmul -----
        qkv = jnp.dot(h, rd(p + "wqkv"),
                      preferred_element_type=jnp.float32) + rd(p + "bqkv")  # (BT, 3D)

        # ----- per-head attention (static unroll, heads are lane slices) -----
        heads = []
        for hd in range(N_HEAD):
            q = qkv[:, hd * D_HEAD:(hd + 1) * D_HEAD]
            k = qkv[:, D_MODEL + hd * D_HEAD:D_MODEL + (hd + 1) * D_HEAD]
            v = qkv[:, 2 * D_MODEL + hd * D_HEAD:2 * D_MODEL + (hd + 1) * D_HEAD]
            s = jnp.einsum("qd,kd->qk", q, k,
                           preferred_element_type=jnp.float32) * scale + mask
            s = s - jnp.max(s, axis=-1, keepdims=True)
            e = jnp.exp(s)
            pr = e * pl.reciprocal(jnp.sum(e, axis=-1, keepdims=True), approx=True)
            heads.append(jnp.dot(pr, v, preferred_element_type=jnp.float32))  # (BT, dh)

        # single depth-32 output projection on the concatenated heads
        attn = jnp.dot(jnp.concatenate(heads, axis=-1), rd(p + "wo"),
                       preferred_element_type=jnp.float32) + rd(p + "bo")     # (BT, D)

        # ----- residual + LayerNorm 1 (dropout = identity, eval mode) -----
        y = h + attn
        yc = y - jnp.mean(y, axis=-1, keepdims=True)
        y = (yc * jax.lax.rsqrt(jnp.mean(yc * yc, axis=-1, keepdims=True) + LN_EPS)
             * rd(p + "g1") + rd(p + "be1"))

        # ----- position-wise FFN with ReLU -----
        f = jnp.maximum(jnp.dot(y, rd(p + "w1"),
                                preferred_element_type=jnp.float32) + rd(p + "b1"), 0.0)
        f = jnp.dot(f, rd(p + "w2"),
                    preferred_element_type=jnp.float32) + rd(p + "b2")

        # ----- residual + LayerNorm 2 -----
        z = y + f
        zc = z - jnp.mean(z, axis=-1, keepdims=True)
        h = (zc * jax.lax.rsqrt(jnp.mean(zc * zc, axis=-1, keepdims=True) + LN_EPS)
             * rd(p + "g2") + rd(p + "be2"))

    # ----- flatten(B, S*D) + output Linear, no (BT,D)->(B,S*D) relayout -----
    # out[b, o] = sum_{s,d} h[b*S+s, d] * W[s*D+d, o] + b[o]
    r = jnp.sum(h[None, :, :] * out_map_ref[...], axis=-1)             # (O, BT)
    out = jnp.einsum("bn,on->bo", rd("hsel"), r,
                     preferred_element_type=jnp.float32)               # (BB, O)
    o_ref[0, :, :] = out + rd("out_b")


# ---------------- wrapper ----------------

def _cost_estimate(nblk):
    bs = BLOCK_TOK
    per_layer = (2 * bs * D_MODEL * 3 * D_MODEL            # fused QKV
                 + 2 * 2 * N_HEAD * bs * bs * D_HEAD       # scores + PV
                 + 2 * bs * D_MODEL * D_MODEL              # out projection
                 + 2 * 2 * bs * D_MODEL * D_FF)            # FFN
    flops = nblk * (2 * bs * INPUT_DIM * D_MODEL
                    + NUM_LAYERS * per_layer
                    + 2 * OUTPUT_DIM * bs * D_MODEL
                    + 2 * BLOCK_B * bs * OUTPUT_DIM)
    transcend = nblk * NUM_LAYERS * (N_HEAD * bs * bs + N_HEAD * bs + 2 * bs)
    bytes_acc = 4 * (nblk * bs * INPUT_DIM + SLAB_ROWS * SLAB_LANES
                     + OUTPUT_DIM * bs * D_MODEL + nblk * BLOCK_B * OUTPUT_DIM)
    return pl.CostEstimate(flops=flops, transcendentals=transcend,
                           bytes_accessed=bytes_acc)


@jax.jit
def transformer_forward(x, slab, out_map):
    B, S, _ = x.shape
    assert B % BLOCK_B == 0 and S == SEQ_LEN
    nblk = B // BLOCK_B
    x2 = x.reshape(B * S, INPUT_DIM)
    out3 = pl.pallas_call(
        _transformer_kernel,
        out_shape=jax.ShapeDtypeStruct((nblk, BLOCK_B, OUTPUT_DIM), jnp.float32),
        grid=(nblk,),
        in_specs=[
            pl.BlockSpec((BLOCK_TOK, INPUT_DIM), lambda i: (i, 0)),           # activations
            pl.BlockSpec((SLAB_ROWS, SLAB_LANES), lambda i: (0, 0)),          # weight slab (resident)
            pl.BlockSpec((OUTPUT_DIM, BLOCK_TOK, D_MODEL), lambda i: (0, 0, 0)),
        ],
        out_specs=pl.BlockSpec((1, BLOCK_B, OUTPUT_DIM), lambda i: (i, 0, 0)),
        compiler_params=pltpu.CompilerParams(dimension_semantics=("parallel",)),
        cost_estimate=_cost_estimate(nblk),
    )(x2, slab, out_map)
    return out3.reshape(B, OUTPUT_DIM)


# ---------------- parameters / packing ----------------

def make_pos_encoding(seq_len, d_model):
    pos = jnp.arange(seq_len, dtype=jnp.float32)[:, None]
    div = jnp.exp(jnp.arange(0, d_model, 2, dtype=jnp.float32)
                  * (-math.log(10000.0) / d_model))
    pe = jnp.zeros((seq_len, d_model), jnp.float32)
    pe = pe.at[:, 0::2].set(jnp.sin(pos * div))
    pe = pe.at[:, 1::2].set(jnp.cos(pos * div))
    return pe


def init_params(key):
    """Weights stored as (in_features, out_features): y = x @ W + b."""
    def dense(k, fan_in, fan_out):
        w = jax.random.normal(k, (fan_in, fan_out), jnp.float32) * 0.02
        b = jnp.zeros((1, fan_out), jnp.float32)
        return w, b

    keys = jax.random.split(key, 2 + NUM_LAYERS)
    emb_w, emb_b = dense(keys[0], INPUT_DIM, D_MODEL)
    out_w, out_b = dense(keys[1], D_MODEL * SEQ_LEN, OUTPUT_DIM)
    layers = []
    for li in range(NUM_LAYERS):
        lk = jax.random.split(keys[2 + li], 6)
        wq, bq = dense(lk[0], D_MODEL, D_MODEL)
        wk, bk = dense(lk[1], D_MODEL, D_MODEL)
        wv, bv = dense(lk[2], D_MODEL, D_MODEL)
        wo, bo = dense(lk[3], D_MODEL, D_MODEL)
        w1, b1 = dense(lk[4], D_MODEL, D_FF)
        w2, b2 = dense(lk[5], D_FF, D_MODEL)
        layers.append(dict(
            wq=wq, bq=bq, wk=wk, bk=bk, wv=wv, bv=bv, wo=wo, bo=bo,
            g1=jnp.ones((1, D_MODEL), jnp.float32),
            be1=jnp.zeros((1, D_MODEL), jnp.float32),
            w1=w1, b1=b1, w2=w2, b2=b2,
            g2=jnp.ones((1, D_MODEL), jnp.float32),
            be2=jnp.zeros((1, D_MODEL), jnp.float32)))
    return dict(emb_w=emb_w, emb_b=emb_b, pe=make_pos_encoding(SEQ_LEN, D_MODEL),
                out_w=out_w, out_b=out_b, layers=layers)


def pack_params(params):
    """One-time host-side layout plumbing into a single packed VMEM slab."""
    vals = {
        "emb_w": params["emb_w"],
        "pe_b": jnp.tile(params["pe"], (BLOCK_B, 1)) + params["emb_b"],   # (BT, D)
        "out_b": params["out_b"],
    }
    grp = jnp.arange(BLOCK_TOK) // SEQ_LEN
    vals["mask"] = jnp.where(grp[:, None] == grp[None, :], 0.0, NEG_INF).astype(jnp.float32)
    vals["hsel"] = (grp[None, :] == jnp.arange(BLOCK_B)[:, None]).astype(jnp.float32)
    for l, lp in enumerate(params["layers"]):
        p = f"l{l}_"
        vals[p + "wqkv"] = jnp.concatenate([lp["wq"], lp["wk"], lp["wv"]], axis=1)  # (D, 3D)
        vals[p + "bqkv"] = jnp.concatenate([lp["bq"], lp["bk"], lp["bv"]], axis=1)  # (1, 3D)
        for n in ("wo", "bo", "g1", "be1", "w1", "b1", "w2", "b2", "g2", "be2"):
            vals[p + n] = lp[n]

    slab = jnp.zeros((SLAB_ROWS, SLAB_LANES), jnp.float32)
    for name, (off, r, c) in SLAB_OFFS.items():
        arr = vals[name]
        assert arr.shape == (r, c), (name, arr.shape, (r, c))
        slab = slab.at[off:off + r, 0:c].set(arr)

    # output Linear (batch-first flatten): out_map[o, b*S+s, d] = out_w[s*D+d, o]
    out_map = jnp.tile(params["out_w"].T.reshape(OUTPUT_DIM, SEQ_LEN, D_MODEL),
                       (1, BLOCK_B, 1))
    return slab, out_map


if __name__ == "__main__":
    key = jax.random.PRNGKey(0)
    pkey, xkey = jax.random.split(key)
    params = init_params(pkey)
    slab, out_map = pack_params(params)
    x = jax.random.normal(xkey, (BATCH, SEQ_LEN, INPUT_DIM), jnp.float32)

    out = transformer_forward(x, slab, out_map)
    jax.block_until_ready(out)
    assert out.shape == (BATCH, OUTPUT_DIM), out.shape
    assert bool(jnp.all(jnp.isfinite(out))), "non-finite output"
    print("KERNEL_OK")
</pallas_src>

<mosaic_0001>
module attributes {stable_mosaic.version = 11 : i64} {
  func.func @_transformer_kernel(%arg0: i32, %arg1: memref<16x8xf32, #tpu.memory_space<vmem>>, %arg2: memref<504x128xf32, #tpu.memory_space<vmem>>, %arg3: memref<4x16x32xf32, #tpu.memory_space<vmem>>, %arg4: memref<1x2x4xf32, #tpu.memory_space<vmem>>) attributes {dimension_semantics = [#tpu.dimension_semantics<parallel>], iteration_bounds = array<i64: 2>, scalar_prefetch = 0 : i64, scratch_operands = 0 : i64, tpu.core_type = #tpu.core_type<tc>, window_params = [{transform_indices = @transform_0, window_bounds = array<i64: 16, 8>}, {pipeline_mode = #tpu.pipeline_mode<synchronous>, transform_indices = @transform_1, window_bounds = array<i64: 504, 128>}, {pipeline_mode = #tpu.pipeline_mode<synchronous>, transform_indices = @transform_2, window_bounds = array<i64: 4, 16, 32>}, {transform_indices = @transform_3, window_bounds = array<i64: 1, 2, 4>}]} {
    %c0 = arith.constant 0 : index
    %c0_0 = arith.constant 0 : index
    %0 = vector.load %arg1[%c0, %c0_0] : memref<16x8xf32, #tpu.memory_space<vmem>>, vector<16x8xf32>
    %c0_1 = arith.constant 0 : index
    %c0_2 = arith.constant 0 : index
    %1 = vector.load %arg2[%c0_1, %c0_2] : memref<504x128xf32, #tpu.memory_space<vmem>>, vector<8x32xf32>
    %cst = arith.constant dense<0.000000e+00> : vector<16x32xf32>
    %2 = tpu.matmul %0, %1, %cst {dimension_numbers = #tpu.dot_dimension_numbers<[1], [0], [0], [1], [0, 0, 1, 1], [], []>} : vector<16x8xf32>, vector<8x32xf32>, vector<16x32xf32> -> vector<16x32xf32>
    %c8 = arith.constant 8 : index
    %c0_3 = arith.constant 0 : index
    %3 = vector.load %arg2[%c8, %c0_3] : memref<504x128xf32, #tpu.memory_space<vmem>>, vector<16x32xf32>
    %4 = arith.addf %2, %3 : vector<16x32xf32>
    %c24 = arith.constant 24 : index
    %c0_4 = arith.constant 0 : index
    %5 = vector.load %arg2[%c24, %c0_4] : memref<504x128xf32, #tpu.memory_space<vmem>>, vector<16x16xf32>
    %c56 = arith.constant 56 : index
    %c0_5 = arith.constant 0 : index
    %6 = vector.load %arg2[%c56, %c0_5] : memref<504x128xf32, #tpu.memory_space<vmem>>, vector<32x96xf32>
    %cst_6 = arith.constant dense<0.000000e+00> : vector<16x96xf32>
    %7 = tpu.matmul %4, %6, %cst_6 {dimension_numbers = #tpu.dot_dimension_numbers<[1], [0], [0], [1], [0, 0, 1, 1], [], []>} : vector<16x32xf32>, vector<32x96xf32>, vector<16x96xf32> -> vector<16x96xf32>
    %c88 = arith.constant 88 : index
    %c0_7 = arith.constant 0 : index
    %8 = vector.load %arg2[%c88, %c0_7] : memref<504x128xf32, #tpu.memory_space<vmem>>, vector<1x96xf32>
    %9 = vector.broadcast %8 : vector<1x96xf32> to vector<16x96xf32>
    %10 = arith.addf %7, %9 : vector<16x96xf32>
    %11 = vector.extract_strided_slice %10 {offsets = [0, 0], sizes = [16, 8], strides = [1, 1]} : vector<16x96xf32> to vector<16x8xf32>
    %12 = vector.extract_strided_slice %10 {offsets = [0, 32], sizes = [16, 8], strides = [1, 1]} : vector<16x96xf32> to vector<16x8xf32>
    %13 = vector.extract_strided_slice %10 {offsets = [0, 64], sizes = [16, 8], strides = [1, 1]} : vector<16x96xf32> to vector<16x8xf32>
    "tpu.trace_start"() <{level = 10 : i32, message = "qd,kd->qk"}> : () -> ()
    %cst_8 = arith.constant dense<0.000000e+00> : vector<16x16xf32>
    %14 = tpu.matmul %11, %12, %cst_8 {dimension_numbers = #tpu.dot_dimension_numbers<[1], [1], [0], [0], [0, 0, 1, 0], [], []>} : vector<16x8xf32>, vector<16x8xf32>, vector<16x16xf32> -> vector<16x16xf32>
    "tpu.trace_stop"() : () -> ()
    %cst_9 = arith.constant 0.353553385 : f32
    %15 = vector.broadcast %cst_9 : f32 to vector<16x16xf32>
    %16 = arith.mulf %14, %15 : vector<16x16xf32>
    %17 = arith.addf %16, %5 : vector<16x16xf32>
    %cst_10 = arith.constant dense<0xFF800000> : vector<16xf32>
    %18 = vector.multi_reduction <maximumf>, %17, %cst_10 [1] : vector<16x16xf32> to vector<16xf32>
    %19 = vector.shape_cast %18 : vector<16xf32> to vector<16x1xf32>
    %20 = vector.broadcast %19 : vector<16x1xf32> to vector<16x16xf32>
    %21 = arith.subf %17, %20 : vector<16x16xf32>
    %22 = math.exp %21 : vector<16x16xf32>
    %cst_11 = arith.constant dense<0.000000e+00> : vector<16xf32>
    %23 = vector.multi_reduction <add>, %22, %cst_11 [1] : vector<16x16xf32> to vector<16xf32>
    %24 = vector.shape_cast %23 : vector<16xf32> to vector<16x1xf32>
    %25 = tpu.reciprocal %24 {approx = true} : vector<16x1xf32> -> vector<16x1xf32>
    %26 = vector.broadcast %25 : vector<16x1xf32> to vector<16x16xf32>
    %27 = arith.mulf %22, %26 : vector<16x16xf32>
    %cst_12 = arith.constant dense<0.000000e+00> : vector<16x8xf32>
    %28 = tpu.matmul %27, %13, %cst_12 {dimension_numbers = #tpu.dot_dimension_numbers<[1], [0], [0], [1], [0, 0, 1, 1], [], []>} : vector<16x16xf32>, vector<16x8xf32>, vector<16x8xf32> -> vector<16x8xf32>
    %29 = vector.extract_strided_slice %10 {offsets = [0, 8], sizes = [16, 8], strides = [1, 1]} : vector<16x96xf32> to vector<16x8xf32>
    %30 = vector.extract_strided_slice %10 {offsets = [0, 40], sizes = [16, 8], strides = [1, 1]} : vector<16x96xf32> to vector<16x8xf32>
    %31 = vector.extract_strided_slice %10 {offsets = [0, 72], sizes = [16, 8], strides = [1, 1]} : vector<16x96xf32> to vector<16x8xf32>
    "tpu.trace_start"() <{level = 10 : i32, message = "qd,kd->qk"}> : () -> ()
    %cst_13 = arith.constant dense<0.000000e+00> : vector<16x16xf32>
    %32 = tpu.matmul %29, %30, %cst_13 {dimension_numbers = #tpu.dot_dimension_numbers<[1], [1], [0], [0], [0, 0, 1, 0], [], []>} : vector<16x8xf32>, vector<16x8xf32>, vector<16x16xf32> -> vector<16x16xf32>
    "tpu.trace_stop"() : () -> ()
    %cst_14 = arith.constant 0.353553385 : f32
    %33 = vector.broadcast %cst_14 : f32 to vector<16x16xf32>
    %34 = arith.mulf %32, %33 : vector<16x16xf32>
    %35 = arith.addf %34, %5 : vector<16x16xf32>
    %cst_15 = arith.constant dense<0xFF800000> : vector<16xf32>
    %36 = vector.multi_reduction <maximumf>, %35, %cst_15 [1] : vector<16x16xf32> to vector<16xf32>
    %37 = vector.shape_cast %36 : vector<16xf32> to vector<16x1xf32>
    %38 = vector.broadcast %37 : vector<16x1xf32> to vector<16x16xf32>
    %39 = arith.subf %35, %38 : vector<16x16xf32>
    %40 = math.exp %39 : vector<16x16xf32>
    %cst_16 = arith.constant dense<0.000000e+00> : vector<16xf32>
    %41 = vector.multi_reduction <add>, %40, %cst_16 [1] : vector<16x16xf32> to vector<16xf32>
    %42 = vector.shape_cast %41 : vector<16xf32> to vector<16x1xf32>
    %43 = tpu.reciprocal %42 {approx = true} : vector<16x1xf32> -> vector<16x1xf32>
    %44 = vector.broadcast %43 : vector<16x1xf32> to vector<16x16xf32>
    %45 = arith.mulf %40, %44 : vector<16x16xf32>
    %cst_17 = arith.constant dense<0.000000e+00> : vector<16x8xf32>
    %46 = tpu.matmul %45, %31, %cst_17 {dimension_numbers = #tpu.dot_dimension_numbers<[1], [0], [0], [1], [0, 0, 1, 1], [], []>} : vector<16x16xf32>, vector<16x8xf32>, vector<16x8xf32> -> vector<16x8xf32>
    %47 = vector.extract_strided_slice %10 {offsets = [0, 16], sizes = [16, 8], strides = [1, 1]} : vector<16x96xf32> to vector<16x8xf32>
    %48 = vector.extract_strided_slice %10 {offsets = [0, 48], sizes = [16, 8], strides = [1, 1]} : vector<16x96xf32> to vector<16x8xf32>
    %49 = vector.extract_strided_slice %10 {offsets = [0, 80], sizes = [16, 8], strides = [1, 1]} : vector<16x96xf32> to vector<16x8xf32>
    "tpu.trace_start"() <{level = 10 : i32, message = "qd,kd->qk"}> : () -> ()
    %cst_18 = arith.constant dense<0.000000e+00> : vector<16x16xf32>
    %50 = tpu.matmul %47, %48, %cst_18 {dimension_numbers = #tpu.dot_dimension_numbers<[1], [1], [0], [0], [0, 0, 1, 0], [], []>} : vector<16x8xf32>, vector<16x8xf32>, vector<16x16xf32> -> vector<16x16xf32>
    "tpu.trace_stop"() : () -> ()
    %cst_19 = arith.constant 0.353553385 : f32
    %51 = vector.broadcast %cst_19 : f32 to vector<16x16xf32>
    %52 = arith.mulf %50, %51 : vector<16x16xf32>
    %53 = arith.addf %52, %5 : vector<16x16xf32>
    %cst_20 = arith.constant dense<0xFF800000> : vector<16xf32>
    %54 = vector.multi_reduction <maximumf>, %53, %cst_20 [1] : vector<16x16xf32> to vector<16xf32>
    %55 = vector.shape_cast %54 : vector<16xf32> to vector<16x1xf32>
    %56 = vector.broadcast %55 : vector<16x1xf32> to vector<16x16xf32>
    %57 = arith.subf %53, %56 : vector<16x16xf32>
    %58 = math.exp %57 : vector<16x16xf32>
    %cst_21 = arith.constant dense<0.000000e+00> : vector<16xf32>
    %59 = vector.multi_reduction <add>, %58, %cst_21 [1] : vector<16x16xf32> to vector<16xf32>
    %60 = vector.shape_cast %59 : vector<16xf32> to vector<16x1xf32>
    %61 = tpu.reciprocal %60 {approx = true} : vector<16x1xf32> -> vector<16x1xf32>
    %62 = vector.broadcast %61 : vector<16x1xf32> to vector<16x16xf32>
    %63 = arith.mulf %58, %62 : vector<16x16xf32>
    %cst_22 = arith.constant dense<0.000000e+00> : vector<16x8xf32>
    %64 = tpu.matmul %63, %49, %cst_22 {dimension_numbers = #tpu.dot_dimension_numbers<[1], [0], [0], [1], [0, 0, 1, 1], [], []>} : vector<16x16xf32>, vector<16x8xf32>, vector<16x8xf32> -> vector<16x8xf32>
    %65 = vector.extract_strided_slice %10 {offsets = [0, 24], sizes = [16, 8], strides = [1, 1]} : vector<16x96xf32> to vector<16x8xf32>
    %66 = vector.extract_strided_slice %10 {offsets = [0, 56], sizes = [16, 8], strides = [1, 1]} : vector<16x96xf32> to vector<16x8xf32>
    %67 = vector.extract_strided_slice %10 {offsets = [0, 88], sizes = [16, 8], strides = [1, 1]} : vector<16x96xf32> to vector<16x8xf32>
    "tpu.trace_start"() <{level = 10 : i32, message = "qd,kd->qk"}> : () -> ()
    %cst_23 = arith.constant dense<0.000000e+00> : vector<16x16xf32>
    %68 = tpu.matmul %65, %66, %cst_23 {dimension_numbers = #tpu.dot_dimension_numbers<[1], [1], [0], [0], [0, 0, 1, 0], [], []>} : vector<16x8xf32>, vector<16x8xf32>, vector<16x16xf32> -> vector<16x16xf32>
    "tpu.trace_stop"() : () -> ()
    %cst_24 = arith.constant 0.353553385 : f32
    %69 = vector.broadcast %cst_24 : f32 to vector<16x16xf32>
    %70 = arith.mulf %68, %69 : vector<16x16xf32>
    %71 = arith.addf %70, %5 : vector<16x16xf32>
    %cst_25 = arith.constant dense<0xFF800000> : vector<16xf32>
    %72 = vector.multi_reduction <maximumf>, %71, %cst_25 [1] : vector<16x16xf32> to vector<16xf32>
    %73 = vector.shape_cast %72 : vector<16xf32> to vector<16x1xf32>
    %74 = vector.broadcast %73 : vector<16x1xf32> to vector<16x16xf32>
    %75 = arith.subf %71, %74 : vector<16x16xf32>
    %76 = math.exp %75 : vector<16x16xf32>
    %cst_26 = arith.constant dense<0.000000e+00> : vector<16xf32>
    %77 = vector.multi_reduction <add>, %76, %cst_26 [1] : vector<16x16xf32> to vector<16xf32>
    %78 = vector.shape_cast %77 : vector<16xf32> to vector<16x1xf32>
    %79 = tpu.reciprocal %78 {approx = true} : vector<16x1xf32> -> vector<16x1xf32>
    %80 = vector.broadcast %79 : vector<16x1xf32> to vector<16x16xf32>
    %81 = arith.mulf %76, %80 : vector<16x16xf32>
    %cst_27 = arith.constant dense<0.000000e+00> : vector<16x8xf32>
    %82 = tpu.matmul %81, %67, %cst_27 {dimension_numbers = #tpu.dot_dimension_numbers<[1], [0], [0], [1], [0, 0, 1, 1], [], []>} : vector<16x16xf32>, vector<16x8xf32>, vector<16x8xf32> -> vector<16x8xf32>
    %83 = tpu.concatenate %28, %46, %64, %82 in 1 : vector<16x8xf32>, vector<16x8xf32>, vector<16x8xf32>, vector<16x8xf32> -> vector<16x32xf32>
    %c96 = arith.constant 96 : index
    %c0_28 = arith.constant 0 : index
    %84 = vector.load %arg2[%c96, %c0_28] : memref<504x128xf32, #tpu.memory_space<vmem>>, vector<32x32xf32>
    %cst_29 = arith.constant dense<0.000000e+00> : vector<16x32xf32>
    %85 = tpu.matmul %83, %84, %cst_29 {dimension_numbers = #tpu.dot_dimension_numbers<[1], [0], [0], [1], [0, 0, 1, 1], [], []>} : vector<16x32xf32>, vector<32x32xf32>, vector<16x32xf32> -> vector<16x32xf32>
    %c128 = arith.constant 128 : index
    %c0_30 = arith.constant 0 : index
    %86 = vector.load %arg2[%c128, %c0_30] : memref<504x128xf32, #tpu.memory_space<vmem>>, vector<1x32xf32>
    %87 = vector.broadcast %86 : vector<1x32xf32> to vector<16x32xf32>
    %88 = arith.addf %85, %87 : vector<16x32xf32>
    %89 = arith.addf %4, %88 : vector<16x32xf32>
    %cst_31 = arith.constant dense<0.000000e+00> : vector<16xf32>
    %90 = vector.multi_reduction <add>, %89, %cst_31 [1] : vector<16x32xf32> to vector<16xf32>
    %91 = vector.shape_cast %90 : vector<16xf32> to vector<16x1xf32>
    %cst_32 = arith.constant 3.200000e+01 : f32
    %92 = vector.broadcast %cst_32 : f32 to vector<16x1xf32>
    %93 = arith.divf %91, %92 : vector<16x1xf32>
    %94 = vector.broadcast %93 : vector<16x1xf32> to vector<16x32xf32>
    %95 = arith.subf %89, %94 : vector<16x32xf32>
    %96 = arith.mulf %95, %95 : vector<16x32xf32>
    %cst_33 = arith.constant dense<0.000000e+00> : vector<16xf32>
    %97 = vector.multi_reduction <add>, %96, %cst_33 [1] : vector<16x32xf32> to vector<16xf32>
    %98 = vector.shape_cast %97 : vector<16xf32> to vector<16x1xf32>
    %cst_34 = arith.constant 3.200000e+01 : f32
    %99 = vector.broadcast %cst_34 : f32 to vector<16x1xf32>
    %100 = arith.divf %98, %99 : vector<16x1xf32>
    %cst_35 = arith.constant 9.99999974E-6 : f32
    %101 = vector.broadcast %cst_35 : f32 to vector<16x1xf32>
    %102 = arith.addf %100, %101 : vector<16x1xf32>
    %103 = math.rsqrt %102 : vector<16x1xf32>
    %104 = vector.broadcast %103 : vector<16x1xf32> to vector<16x32xf32>
    %105 = arith.mulf %95, %104 : vector<16x32xf32>
    %c136 = arith.constant 136 : index
    %c0_36 = arith.constant 0 : index
    %106 = vector.load %arg2[%c136, %c0_36] : memref<504x128xf32, #tpu.memory_space<vmem>>, vector<1x32xf32>
    %107 = vector.broadcast %106 : vector<1x32xf32> to vector<16x32xf32>
    %108 = arith.mulf %105, %107 : vector<16x32xf32>
    %c144 = arith.constant 144 : index
    %c0_37 = arith.constant 0 : index
    %109 = vector.load %arg2[%c144, %c0_37] : memref<504x128xf32, #tpu.memory_space<vmem>>, vector<1x32xf32>
    %110 = vector.broadcast %109 : vector<1x32xf32> to vector<16x32xf32>
    %111 = arith.addf %108, %110 : vector<16x32xf32>
    %c152 = arith.constant 152 : index
    %c0_38 = arith.constant 0 : index
    %112 = vector.load %arg2[%c152, %c0_38] : memref<504x128xf32, #tpu.memory_space<vmem>>, vector<32x64xf32>
    %cst_39 = arith.constant dense<0.000000e+00> : vector<16x64xf32>
    %113 = tpu.matmul %111, %112, %cst_39 {dimension_numbers = #tpu.dot_dimension_numbers<[1], [0], [0], [1], [0, 0, 1, 1], [], []>} : vector<16x32xf32>, vector<32x64xf32>, vector<16x64xf32> -> vector<16x64xf32>
    %c184 = arith.constant 184 : index
    %c0_40 = arith.constant 0 : index
    %114 = vector.load %arg2[%c184, %c0_40] : memref<504x128xf32, #tpu.memory_space<vmem>>, vector<1x64xf32>
    %115 = vector.broadcast %114 : vector<1x64xf32> to vector<16x64xf32>
    %116 = arith.addf %113, %115 : vector<16x64xf32>
    %cst_41 = arith.constant 0.000000e+00 : f32
    %117 = vector.broadcast %cst_41 : f32 to vector<16x64xf32>
    %118 = arith.maximumf %116, %117 : vector<16x64xf32>
    %c192 = arith.constant 192 : index
    %c0_42 = arith.constant 0 : index
    %119 = vector.load %arg2[%c192, %c0_42] : memref<504x128xf32, #tpu.memory_space<vmem>>, vector<64x32xf32>
    %cst_43 = arith.constant dense<0.000000e+00> : vector<16x32xf32>
    %120 = tpu.matmul %118, %119, %cst_43 {dimension_numbers = #tpu.dot_dimension_numbers<[1], [0], [0], [1], [0, 0, 1, 1], [], []>} : vector<16x64xf32>, vector<64x32xf32>, vector<16x32xf32> -> vector<16x32xf32>
    %c256 = arith.constant 256 : index
    %c0_44 = arith.constant 0 : index
    %121 = vector.load %arg2[%c256, %c0_44] : memref<504x128xf32, #tpu.memory_space<vmem>>, vector<1x32xf32>
    %122 = vector.broadcast %121 : vector<1x32xf32> to vector<16x32xf32>
    %123 = arith.addf %120, %122 : vector<16x32xf32>
    %124 = arith.addf %111, %123 : vector<16x32xf32>
    %cst_45 = arith.constant dense<0.000000e+00> : vector<16xf32>
    %125 = vector.multi_reduction <add>, %124, %cst_45 [1] : vector<16x32xf32> to vector<16xf32>
    %126 = vector.shape_cast %125 : vector<16xf32> to vector<16x1xf32>
    %cst_46 = arith.constant 3.200000e+01 : f32
    %127 = vector.broadcast %cst_46 : f32 to vector<16x1xf32>
    %128 = arith.divf %126, %127 : vector<16x1xf32>
    %129 = vector.broadcast %128 : vector<16x1xf32> to vector<16x32xf32>
    %130 = arith.subf %124, %129 : vector<16x32xf32>
    %131 = arith.mulf %130, %130 : vector<16x32xf32>
    %cst_47 = arith.constant dense<0.000000e+00> : vector<16xf32>
    %132 = vector.multi_reduction <add>, %131, %cst_47 [1] : vector<16x32xf32> to vector<16xf32>
    %133 = vector.shape_cast %132 : vector<16xf32> to vector<16x1xf32>
    %cst_48 = arith.constant 3.200000e+01 : f32
    %134 = vector.broadcast %cst_48 : f32 to vector<16x1xf32>
    %135 = arith.divf %133, %134 : vector<16x1xf32>
    %cst_49 = arith.constant 9.99999974E-6 : f32
    %136 = vector.broadcast %cst_49 : f32 to vector<16x1xf32>
    %137 = arith.addf %135, %136 : vector<16x1xf32>
    %138 = math.rsqrt %137 : vector<16x1xf32>
    %139 = vector.broadcast %138 : vector<16x1xf32> to vector<16x32xf32>
    %140 = arith.mulf %130, %139 : vector<16x32xf32>
    %c264 = arith.constant 264 : index
    %c0_50 = arith.constant 0 : index
    %141 = vector.load %arg2[%c264, %c0_50] : memref<504x128xf32, #tpu.memory_space<vmem>>, vector<1x32xf32>
    %142 = vector.broadcast %141 : vector<1x32xf32> to vector<16x32xf32>
    %143 = arith.mulf %140, %142 : vector<16x32xf32>
    %c272 = arith.constant 272 : index
    %c0_51 = arith.constant 0 : index
    %144 = vector.load %arg2[%c272, %c0_51] : memref<504x128xf32, #tpu.memory_space<vmem>>, vector<1x32xf32>
    %145 = vector.broadcast %144 : vector<1x32xf32> to vector<16x32xf32>
    %146 = arith.addf %143, %145 : vector<16x32xf32>
    %c280 = arith.constant 280 : index
    %c0_52 = arith.constant 0 : index
    %147 = vector.load %arg2[%c280, %c0_52] : memref<504x128xf32, #tpu.memory_space<vmem>>, vector<32x96xf32>
    %cst_53 = arith.constant dense<0.000000e+00> : vector<16x96xf32>
    %148 = tpu.matmul %146, %147, %cst_53 {dimension_numbers = #tpu.dot_dimension_numbers<[1], [0], [0], [1], [0, 0, 1, 1], [], []>} : vector<16x32xf32>, vector<32x96xf32>, vector<16x96xf32> -> vector<16x96xf32>
    %c312 = arith.constant 312 : index
    %c0_54 = arith.constant 0 : index
    %149 = vector.load %arg2[%c312, %c0_54] : memref<504x128xf32, #tpu.memory_space<vmem>>, vector<1x96xf32>
    %150 = vector.broadcast %149 : vector<1x96xf32> to vector<16x96xf32>
    %151 = arith.addf %148, %150 : vector<16x96xf32>
    %152 = vector.extract_strided_slice %151 {offsets = [0, 0], sizes = [16, 8], strides = [1, 1]} : vector<16x96xf32> to vector<16x8xf32>
    %153 = vector.extract_strided_slice %151 {offsets = [0, 32], sizes = [16, 8], strides = [1, 1]} : vector<16x96xf32> to vector<16x8xf32>
    %154 = vector.extract_strided_slice %151 {offsets = [0, 64], sizes = [16, 8], strides = [1, 1]} : vector<16x96xf32> to vector<16x8xf32>
    "tpu.trace_start"() <{level = 10 : i32, message = "qd,kd->qk"}> : () -> ()
    %cst_55 = arith.constant dense<0.000000e+00> : vector<16x16xf32>
    %155 = tpu.matmul %152, %153, %cst_55 {dimension_numbers = #tpu.dot_dimension_numbers<[1], [1], [0], [0], [0, 0, 1, 0], [], []>} : vector<16x8xf32>, vector<16x8xf32>, vector<16x16xf32> -> vector<16x16xf32>
    "tpu.trace_stop"() : () -> ()
    %cst_56 = arith.constant 0.353553385 : f32
    %156 = vector.broadcast %cst_56 : f32 to vector<16x16xf32>
    %157 = arith.mulf %155, %156 : vector<16x16xf32>
    %158 = arith.addf %157, %5 : vector<16x16xf32>
    %cst_57 = arith.constant dense<0xFF800000> : vector<16xf32>
    %159 = vector.multi_reduction <maximumf>, %158, %cst_57 [1] : vector<16x16xf32> to vector<16xf32>
    %160 = vector.shape_cast %159 : vector<16xf32> to vector<16x1xf32>
    %161 = vector.broadcast %160 : vector<16x1xf32> to vector<16x16xf32>
    %162 = arith.subf %158, %161 : vector<16x16xf32>
    %163 = math.exp %162 : vector<16x16xf32>
    %cst_58 = arith.constant dense<0.000000e+00> : vector<16xf32>
    %164 = vector.multi_reduction <add>, %163, %cst_58 [1] : vector<16x16xf32> to vector<16xf32>
    %165 = vector.shape_cast %164 : vector<16xf32> to vector<16x1xf32>
    %166 = tpu.reciprocal %165 {approx = true} : vector<16x1xf32> -> vector<16x1xf32>
    %167 = vector.broadcast %166 : vector<16x1xf32> to vector<16x16xf32>
    %168 = arith.mulf %163, %167 : vector<16x16xf32>
    %cst_59 = arith.constant dense<0.000000e+00> : vector<16x8xf32>
    %169 = tpu.matmul %168, %154, %cst_59 {dimension_numbers = #tpu.dot_dimension_numbers<[1], [0], [0], [1], [0, 0, 1, 1], [], []>} : vector<16x16xf32>, vector<16x8xf32>, vector<16x8xf32> -> vector<16x8xf32>
    %170 = vector.extract_strided_slice %151 {offsets = [0, 8], sizes = [16, 8], strides = [1, 1]} : vector<16x96xf32> to vector<16x8xf32>
    %171 = vector.extract_strided_slice %151 {offsets = [0, 40], sizes = [16, 8], strides = [1, 1]} : vector<16x96xf32> to vector<16x8xf32>
    %172 = vector.extract_strided_slice %151 {offsets = [0, 72], sizes = [16, 8], strides = [1, 1]} : vector<16x96xf32> to vector<16x8xf32>
    "tpu.trace_start"() <{level = 10 : i32, message = "qd,kd->qk"}> : () -> ()
    %cst_60 = arith.constant dense<0.000000e+00> : vector<16x16xf32>
    %173 = tpu.matmul %170, %171, %cst_60 {dimension_numbers = #tpu.dot_dimension_numbers<[1], [1], [0], [0], [0, 0, 1, 0], [], []>} : vector<16x8xf32>, vector<16x8xf32>, vector<16x16xf32> -> vector<16x16xf32>
    "tpu.trace_stop"() : () -> ()
    %cst_61 = arith.constant 0.353553385 : f32
    %174 = vector.broadcast %cst_61 : f32 to vector<16x16xf32>
    %175 = arith.mulf %173, %174 : vector<16x16xf32>
    %176 = arith.addf %175, %5 : vector<16x16xf32>
    %cst_62 = arith.constant dense<0xFF800000> : vector<16xf32>
    %177 = vector.multi_reduction <maximumf>, %176, %cst_62 [1] : vector<16x16xf32> to vector<16xf32>
    %178 = vector.shape_cast %177 : vector<16xf32> to vector<16x1xf32>
    %179 = vector.broadcast %178 : vector<16x1xf32> to vector<16x16xf32>
    %180 = arith.subf %176, %179 : vector<16x16xf32>
    %181 = math.exp %180 : vector<16x16xf32>
    %cst_63 = arith.constant dense<0.000000e+00> : vector<16xf32>
    %182 = vector.multi_reduction <add>, %181, %cst_63 [1] : vector<16x16xf32> to vector<16xf32>
    %183 = vector.shape_cast %182 : vector<16xf32> to vector<16x1xf32>
    %184 = tpu.reciprocal %183 {approx = true} : vector<16x1xf32> -> vector<16x1xf32>
    %185 = vector.broadcast %184 : vector<16x1xf32> to vector<16x16xf32>
    %186 = arith.mulf %181, %185 : vector<16x16xf32>
    %cst_64 = arith.constant dense<0.000000e+00> : vector<16x8xf32>
    %187 = tpu.matmul %186, %172, %cst_64 {dimension_numbers = #tpu.dot_dimension_numbers<[1], [0], [0], [1], [0, 0, 1, 1], [], []>} : vector<16x16xf32>, vector<16x8xf32>, vector<16x8xf32> -> vector<16x8xf32>
    %188 = vector.extract_strided_slice %151 {offsets = [0, 16], sizes = [16, 8], strides = [1, 1]} : vector<16x96xf32> to vector<16x8xf32>
    %189 = vector.extract_strided_slice %151 {offsets = [0, 48], sizes = [16, 8], strides = [1, 1]} : vector<16x96xf32> to vector<16x8xf32>
    %190 = vector.extract_strided_slice %151 {offsets = [0, 80], sizes = [16, 8], strides = [1, 1]} : vector<16x96xf32> to vector<16x8xf32>
    "tpu.trace_start"() <{level = 10 : i32, message = "qd,kd->qk"}> : () -> ()
    %cst_65 = arith.constant dense<0.000000e+00> : vector<16x16xf32>
    %191 = tpu.matmul %188, %189, %cst_65 {dimension_numbers = #tpu.dot_dimension_numbers<[1], [1], [0], [0], [0, 0, 1, 0], [], []>} : vector<16x8xf32>, vector<16x8xf32>, vector<16x16xf32> -> vector<16x16xf32>
    "tpu.trace_stop"() : () -> ()
    %cst_66 = arith.constant 0.353553385 : f32
    %192 = vector.broadcast %cst_66 : f32 to vector<16x16xf32>
    %193 = arith.mulf %191, %192 : vector<16x16xf32>
    %194 = arith.addf %193, %5 : vector<16x16xf32>
    %cst_67 = arith.constant dense<0xFF800000> : vector<16xf32>
    %195 = vector.multi_reduction <maximumf>, %194, %cst_67 [1] : vector<16x16xf32> to vector<16xf32>
    %196 = vector.shape_cast %195 : vector<16xf32> to vector<16x1xf32>
    %197 = vector.broadcast %196 : vector<16x1xf32> to vector<16x16xf32>
    %198 = arith.subf %194, %197 : vector<16x16xf32>
    %199 = math.exp %198 : vector<16x16xf32>
    %cst_68 = arith.constant dense<0.000000e+00> : vector<16xf32>
    %200 = vector.multi_reduction <add>, %199, %cst_68 [1] : vector<16x16xf32> to vector<16xf32>
    %201 = vector.shape_cast %200 : vector<16xf32> to vector<16x1xf32>
    %202 = tpu.reciprocal %201 {approx = true} : vector<16x1xf32> -> vector<16x1xf32>
    %203 = vector.broadcast %202 : vector<16x1xf32> to vector<16x16xf32>
    %204 = arith.mulf %199, %203 : vector<16x16xf32>
    %cst_69 = arith.constant dense<0.000000e+00> : vector<16x8xf32>
    %205 = tpu.matmul %204, %190, %cst_69 {dimension_numbers = #tpu.dot_dimension_numbers<[1], [0], [0], [1], [0, 0, 1, 1], [], []>} : vector<16x16xf32>, vector<16x8xf32>, vector<16x8xf32> -> vector<16x8xf32>
    %206 = vector.extract_strided_slice %151 {offsets = [0, 24], sizes = [16, 8], strides = [1, 1]} : vector<16x96xf32> to vector<16x8xf32>
    %207 = vector.extract_strided_slice %151 {offsets = [0, 56], sizes = [16, 8], strides = [1, 1]} : vector<16x96xf32> to vector<16x8xf32>
    %208 = vector.extract_strided_slice %151 {offsets = [0, 88], sizes = [16, 8], strides = [1, 1]} : vector<16x96xf32> to vector<16x8xf32>
    "tpu.trace_start"() <{level = 10 : i32, message = "qd,kd->qk"}> : () -> ()
    %cst_70 = arith.constant dense<0.000000e+00> : vector<16x16xf32>
    %209 = tpu.matmul %206, %207, %cst_70 {dimension_numbers = #tpu.dot_dimension_numbers<[1], [1], [0], [0], [0, 0, 1, 0], [], []>} : vector<16x8xf32>, vector<16x8xf32>, vector<16x16xf32> -> vector<16x16xf32>
    "tpu.trace_stop"() : () -> ()
    %cst_71 = arith.constant 0.353553385 : f32
    %210 = vector.broadcast %cst_71 : f32 to vector<16x16xf32>
    %211 = arith.mulf %209, %210 : vector<16x16xf32>
    %212 = arith.addf %211, %5 : vector<16x16xf32>
    %cst_72 = arith.constant dense<0xFF800000> : vector<16xf32>
    %213 = vector.multi_reduction <maximumf>, %212, %cst_72 [1] : vector<16x16xf32> to vector<16xf32>
    %214 = vector.shape_cast %213 : vector<16xf32> to vector<16x1xf32>
    %215 = vector.broadcast %214 : vector<16x1xf32> to vector<16x16xf32>
    %216 = arith.subf %212, %215 : vector<16x16xf32>
    %217 = math.exp %216 : vector<16x16xf32>
    %cst_73 = arith.constant dense<0.000000e+00> : vector<16xf32>
    %218 = vector.multi_reduction <add>, %217, %cst_73 [1] : vector<16x16xf32> to vector<16xf32>
    %219 = vector.shape_cast %218 : vector<16xf32> to vector<16x1xf32>
    %220 = tpu.reciprocal %219 {approx = true} : vector<16x1xf32> -> vector<16x1xf32>
    %221 = vector.broadcast %220 : vector<16x1xf32> to vector<16x16xf32>
    %222 = arith.mulf %217, %221 : vector<16x16xf32>
    %cst_74 = arith.constant dense<0.000000e+00> : vector<16x8xf32>
    %223 = tpu.matmul %222, %208, %cst_74 {dimension_numbers = #tpu.dot_dimension_numbers<[1], [0], [0], [1], [0, 0, 1, 1], [], []>} : vector<16x16xf32>, vector<16x8xf32>, vector<16x8xf32> -> vector<16x8xf32>
    %224 = tpu.concatenate %169, %187, %205, %223 in 1 : vector<16x8xf32>, vector<16x8xf32>, vector<16x8xf32>, vector<16x8xf32> -> vector<16x32xf32>
    %c320 = arith.constant 320 : index
    %c0_75 = arith.constant 0 : index
    %225 = vector.load %arg2[%c320, %c0_75] : memref<504x128xf32, #tpu.memory_space<vmem>>, vector<32x32xf32>
    %cst_76 = arith.constant dense<0.000000e+00> : vector<16x32xf32>
    %226 = tpu.matmul %224, %225, %cst_76 {dimension_numbers = #tpu.dot_dimension_numbers<[1], [0], [0], [1], [0, 0, 1, 1], [], []>} : vector<16x32xf32>, vector<32x32xf32>, vector<16x32xf32> -> vector<16x32xf32>
    %c352 = arith.constant 352 : index
    %c0_77 = arith.constant 0 : index
    %227 = vector.load %arg2[%c352, %c0_77] : memref<504x128xf32, #tpu.memory_space<vmem>>, vector<1x32xf32>
    %228 = vector.broadcast %227 : vector<1x32xf32> to vector<16x32xf32>
    %229 = arith.addf %226, %228 : vector<16x32xf32>
    %230 = arith.addf %146, %229 : vector<16x32xf32>
    %cst_78 = arith.constant dense<0.000000e+00> : vector<16xf32>
    %231 = vector.multi_reduction <add>, %230, %cst_78 [1] : vector<16x32xf32> to vector<16xf32>
    %232 = vector.shape_cast %231 : vector<16xf32> to vector<16x1xf32>
    %cst_79 = arith.constant 3.200000e+01 : f32
    %233 = vector.broadcast %cst_79 : f32 to vector<16x1xf32>
    %234 = arith.divf %232, %233 : vector<16x1xf32>
    %235 = vector.broadcast %234 : vector<16x1xf32> to vector<16x32xf32>
    %236 = arith.subf %230, %235 : vector<16x32xf32>
    %237 = arith.mulf %236, %236 : vector<16x32xf32>
    %cst_80 = arith.constant dense<0.000000e+00> : vector<16xf32>
    %238 = vector.multi_reduction <add>, %237, %cst_80 [1] : vector<16x32xf32> to vector<16xf32>
    %239 = vector.shape_cast %238 : vector<16xf32> to vector<16x1xf32>
    %cst_81 = arith.constant 3.200000e+01 : f32
    %240 = vector.broadcast %cst_81 : f32 to vector<16x1xf32>
    %241 = arith.divf %239, %240 : vector<16x1xf32>
    %cst_82 = arith.constant 9.99999974E-6 : f32
    %242 = vector.broadcast %cst_82 : f32 to vector<16x1xf32>
    %243 = arith.addf %241, %242 : vector<16x1xf32>
    %244 = math.rsqrt %243 : vector<16x1xf32>
    %245 = vector.broadcast %244 : vector<16x1xf32> to vector<16x32xf32>
    %246 = arith.mulf %236, %245 : vector<16x32xf32>
    %c360 = arith.constant 360 : index
    %c0_83 = arith.constant 0 : index
    %247 = vector.load %arg2[%c360, %c0_83] : memref<504x128xf32, #tpu.memory_space<vmem>>, vector<1x32xf32>
    %248 = vector.broadcast %247 : vector<1x32xf32> to vector<16x32xf32>
    %249 = arith.mulf %246, %248 : vector<16x32xf32>
    %c368 = arith.constant 368 : index
    %c0_84 = arith.constant 0 : index
    %250 = vector.load %arg2[%c368, %c0_84] : memref<504x128xf32, #tpu.memory_space<vmem>>, vector<1x32xf32>
    %251 = vector.broadcast %250 : vector<1x32xf32> to vector<16x32xf32>
    %252 = arith.addf %249, %251 : vector<16x32xf32>
    %c376 = arith.constant 376 : index
    %c0_85 = arith.constant 0 : index
    %253 = vector.load %arg2[%c376, %c0_85] : memref<504x128xf32, #tpu.memory_space<vmem>>, vector<32x64xf32>
    %cst_86 = arith.constant dense<0.000000e+00> : vector<16x64xf32>
    %254 = tpu.matmul %252, %253, %cst_86 {dimension_numbers = #tpu.dot_dimension_numbers<[1], [0], [0], [1], [0, 0, 1, 1], [], []>} : vector<16x32xf32>, vector<32x64xf32>, vector<16x64xf32> -> vector<16x64xf32>
    %c408 = arith.constant 408 : index
    %c0_87 = arith.constant 0 : index
    %255 = vector.load %arg2[%c408, %c0_87] : memref<504x128xf32, #tpu.memory_space<vmem>>, vector<1x64xf32>
    %256 = vector.broadcast %255 : vector<1x64xf32> to vector<16x64xf32>
    %257 = arith.addf %254, %256 : vector<16x64xf32>
    %cst_88 = arith.constant 0.000000e+00 : f32
    %258 = vector.broadcast %cst_88 : f32 to vector<16x64xf32>
    %259 = arith.maximumf %257, %258 : vector<16x64xf32>
    %c416 = arith.constant 416 : index
    %c0_89 = arith.constant 0 : index
    %260 = vector.load %arg2[%c416, %c0_89] : memref<504x128xf32, #tpu.memory_space<vmem>>, vector<64x32xf32>
    %cst_90 = arith.constant dense<0.000000e+00> : vector<16x32xf32>
    %261 = tpu.matmul %259, %260, %cst_90 {dimension_numbers = #tpu.dot_dimension_numbers<[1], [0], [0], [1], [0, 0, 1, 1], [], []>} : vector<16x64xf32>, vector<64x32xf32>, vector<16x32xf32> -> vector<16x32xf32>
    %c480 = arith.constant 480 : index
    %c0_91 = arith.constant 0 : index
    %262 = vector.load %arg2[%c480, %c0_91] : memref<504x128xf32, #tpu.memory_space<vmem>>, vector<1x32xf32>
    %263 = vector.broadcast %262 : vector<1x32xf32> to vector<16x32xf32>
    %264 = arith.addf %261, %263 : vector<16x32xf32>
    %265 = arith.addf %252, %264 : vector<16x32xf32>
    %cst_92 = arith.constant dense<0.000000e+00> : vector<16xf32>
    %266 = vector.multi_reduction <add>, %265, %cst_92 [1] : vector<16x32xf32> to vector<16xf32>
    %267 = vector.shape_cast %266 : vector<16xf32> to vector<16x1xf32>
    %cst_93 = arith.constant 3.200000e+01 : f32
    %268 = vector.broadcast %cst_93 : f32 to vector<16x1xf32>
    %269 = arith.divf %267, %268 : vector<16x1xf32>
    %270 = vector.broadcast %269 : vector<16x1xf32> to vector<16x32xf32>
    %271 = arith.subf %265, %270 : vector<16x32xf32>
    %272 = arith.mulf %271, %271 : vector<16x32xf32>
    %cst_94 = arith.constant dense<0.000000e+00> : vector<16xf32>
    %273 = vector.multi_reduction <add>, %272, %cst_94 [1] : vector<16x32xf32> to vector<16xf32>
    %274 = vector.shape_cast %273 : vector<16xf32> to vector<16x1xf32>
    %cst_95 = arith.constant 3.200000e+01 : f32
    %275 = vector.broadcast %cst_95 : f32 to vector<16x1xf32>
    %276 = arith.divf %274, %275 : vector<16x1xf32>
    %cst_96 = arith.constant 9.99999974E-6 : f32
    %277 = vector.broadcast %cst_96 : f32 to vector<16x1xf32>
    %278 = arith.addf %276, %277 : vector<16x1xf32>
    %279 = math.rsqrt %278 : vector<16x1xf32>
    %280 = vector.broadcast %279 : vector<16x1xf32> to vector<16x32xf32>
    %281 = arith.mulf %271, %280 : vector<16x32xf32>
    %c488 = arith.constant 488 : index
    %c0_97 = arith.constant 0 : index
    %282 = vector.load %arg2[%c488, %c0_97] : memref<504x128xf32, #tpu.memory_space<vmem>>, vector<1x32xf32>
    %283 = vector.broadcast %282 : vector<1x32xf32> to vector<16x32xf32>
    %284 = arith.mulf %281, %283 : vector<16x32xf32>
    %c496 = arith.constant 496 : index
    %c0_98 = arith.constant 0 : index
    %285 = vector.load %arg2[%c496, %c0_98] : memref<504x128xf32, #tpu.memory_space<vmem>>, vector<1x32xf32>
    %286 = vector.broadcast %285 : vector<1x32xf32> to vector<16x32xf32>
    %287 = arith.addf %284, %286 : vector<16x32xf32>
    %288 = vector.shape_cast %287 : vector<16x32xf32> to vector<1x16x32xf32>
    %c0_99 = arith.constant 0 : index
    %c0_100 = arith.constant 0 : index
    %c0_101 = arith.constant 0 : index
    %289 = vector.load %arg3[%c0_99, %c0_100, %c0_101] : memref<4x16x32xf32, #tpu.memory_space<vmem>>, vector<4x16x32xf32>
    %290 = vector.broadcast %288 : vector<1x16x32xf32> to vector<4x16x32xf32>
    %291 = arith.mulf %290, %289 : vector<4x16x32xf32>
    %cst_102 = arith.constant dense<0.000000e+00> : vector<4x16xf32>
    %292 = vector.multi_reduction <add>, %291, %cst_102 [2] : vector<4x16x32xf32> to vector<4x16xf32>
    %c40 = arith.constant 40 : index
    %c0_103 = arith.constant 0 : index
    %293 = vector.load %arg2[%c40, %c0_103] : memref<504x128xf32, #tpu.memory_space<vmem>>, vector<2x16xf32>
    "tpu.trace_start"() <{level = 10 : i32, message = "bn,on->bo"}> : () -> ()
    %cst_104 = arith.constant dense<0.000000e+00> : vector<2x4xf32>
    %294 = tpu.matmul %293, %292, %cst_104 {dimension_numbers = #tpu.dot_dimension_numbers<[1], [1], [0], [0], [0, 0, 1, 0], [], []>} : vector<2x16xf32>, vector<4x16xf32>, vector<2x4xf32> -> vector<2x4xf32>
    "tpu.trace_stop"() : () -> ()
    %c48 = arith.constant 48 : index
    %c0_105 = arith.constant 0 : index
    %295 = vector.load %arg2[%c48, %c0_105] : memref<504x128xf32, #tpu.memory_space<vmem>>, vector<1x4xf32>
    %296 = vector.broadcast %295 : vector<1x4xf32> to vector<2x4xf32>
    %297 = arith.addf %294, %296 : vector<2x4xf32>
    %c0_106 = arith.constant 0 : index
    %c0_107 = arith.constant 0 : index
    %c0_108 = arith.constant 0 : index
    %298 = vector.load %arg4[%c0_106, %c0_107, %c0_108] : memref<1x2x4xf32, #tpu.memory_space<vmem>>, vector<1x2x4xf32>
    %299 = vector.shape_cast %298 : vector<1x2x4xf32> to vector<2x4xf32>
    %300 = vector.shape_cast %297 : vector<2x4xf32> to vector<1x2x4xf32>
    tpu.vector_store %arg4[%c0_106, %c0_107, %c0_108], %300 {strides = array<i32>} : memref<1x2x4xf32, #tpu.memory_space<vmem>>, vector<1x2x4xf32>,
    return
  }
  func.func @transform_0(%arg0: i32) -> (i32, i32) {
    %c0_i32 = arith.constant 0 : i32
    %c0_i32_0 = arith.constant 0 : i32
    return %arg0, %c0_i32 : i32, i32
  }
  func.func @transform_1(%arg0: i32) -> (i32, i32) {
    %c0_i32 = arith.constant 0 : i32
    %c0_i32_0 = arith.constant 0 : i32
    %c0_i32_1 = arith.constant 0 : i32
    return %c0_i32, %c0_i32_0 : i32, i32
  }
  func.func @transform_2(%arg0: i32) -> (i32, i32, i32) {
    %c0_i32 = arith.constant 0 : i32
    %c0_i32_0 = arith.constant 0 : i32
    %c0_i32_1 = arith.constant 0 : i32
    %c0_i32_2 = arith.constant 0 : i32
    return %c0_i32, %c0_i32_0, %c0_i32_1 : i32, i32, i32
  }
  func.func @transform_3(%arg0: i32) -> (i32, i32, i32) {
    %c0_i32 = arith.constant 0 : i32
    %c0_i32_0 = arith.constant 0 : i32
    %c0_i32_1 = arith.constant 0 : i32
    return %arg0, %c0_i32, %c0_i32_0 : i32, i32, i32
  }
}

</mosaic_0001>

<llo_original>
// kernel: transformer_forward.1
$region0: #{transformer_forward.1}
  #allocation0 [shape = 'u32[]', space=smem, size = 0x4, offset = 0x4, fixed_abs, tag = 'smem constant byte address 0x4 - core index']
  #allocation1 [shape = 'u32[144,128]{1,0:T(1,128)}', space=vmem, size = 0x12000, scoped, tag = 'internal scratch']
  %s0 = inlined_call_operand.hbm [shape: f32[32,8], index: 0, kind: input, shape index: {}]
  %s1 = inlined_call_operand.hbm [shape: f32[504,128], index: 1, kind: input, shape index: {}]
  %s2 = inlined_call_operand.hbm [shape: f32[4,16,32], index: 2, kind: input, shape index: {}]
  %s3 = inlined_call_operand.hbm [shape: f32[2,2,4], index: 3, kind: output, shape index: {}]
  %s4 = sld [smem:[#allocation0]]
  $region57: #{transformer_forward.1} parent=0
    _
  %s6 = ssub.s32 1, %s4
  %s7 = scalar_select 0, %s6, %s4
  $region1: #{transformer_forward.1} parent=0
    #allocation2 [shape = 'u8[16384]{0}', space=vmem, size = 0x4000, scoped, tag = 'input window, operand 0']
    #allocation3 [shape = 's32[2]{0}', space=sflag, size = 0x8, scoped, tag = 'scoped memory for transformer_forward.1']
    #allocation4 [shape = 's32[2]{0}', space=sflag, size = 0x8, scoped, tag = 'scoped memory for transformer_forward.1']
    #allocation5 [shape = 'u8[258048]{0}', space=vmem, size = 0x3f000, scoped, tag = 'input window, operand 1, single buffered']
    #allocation6 [shape = 's32[1]{0}', space=sflag, size = 0x4, scoped, tag = 'scoped memory for transformer_forward.1']
    #allocation7 [shape = 'u8[32768]{0}', space=vmem, size = 0x8000, scoped, tag = 'input window, operand 2, single buffered']
    #allocation8 [shape = 'u8[2048]{0}', space=vmem, size = 0x800, scoped, tag = 'output window, operand 0']
    %8 = vsyncpa [#allocation3], 0
    %s9 = scalar_lea.sflag [#allocation3], 1
    %10 = vsyncpa %s9, 0
    %11 = vsyncpa [#allocation6], 0
    %12 = vsyncpa [#allocation4], 0
    %s13 = scalar_lea.sflag [#allocation4], 1
    %14 = vsyncpa %s13, 0
    loop: start=0, step=1, limit=4
    $region2: #{transformer_forward.1} parent=1 // loop_pre_header
      _
    $region3: #{transformer_forward.1} parent=1 // loop_header
      %s16 = sphi 0, %s20
      %p17 = scmp.ge.s32.totalorder %s16, 4
      %s26 = sphi 0, %s28
      %s29 = sphi 0, %s26
      %s30 = sphi 0, %s29
      %s46 = sphi 0, %s30
      %s50 = sphi 0, %s50
      %s52 = sphi 0, %s50
      %s53 = sphi 0, %s52
      %s67 = sphi 0, %s53
      %s71 = sphi 0, %s71
      %s73 = sphi 0, %s71
      %s74 = sphi 0, %s73
      %s88 = sphi 0, %s74
      %s94 = sphi 0, %s96
      %s97 = sphi 0, %s94
      %s98 = sphi 0, %s97
      %s114 = sphi 0, %s98
    $region4: #{transformer_forward.1} parent=1 // loop_header_branch
      %19 = sbr.rel (%p17) target = $region8
    $region5: #{transformer_forward.1} parent=1 // loop_body
      %s21 = ssub.s32 %s16, 1
      %s22 = ssub.s32 %s16, 2
      %s23 = sadd.s32 %s16, 1
      %s24 = ssub.s32 %s16, %s23
      %p25 = scmp.eq.s32.totalorder %s24, 0
      %s27 = sadd.s32 %s26, 1
      %s28 = scalar_select %p25, %s26, %s27
      %p31 = pneg %p25
      %p32 = scmp.eq.s32.totalorder %s16, 1
      %p33 = por %p31, %p32
      %p34 = scmp.ne.s32.totalorder %s26, %s29
      %p35 = scmp.eq.s32.totalorder %s16, 0
      %p36 = por %p34, %p35
      %p37 = scmp.ne.s32.totalorder %s26, %s29
      %p38 = scmp.eq.s32.totalorder %s21, 1
      %p39 = por %p37, %p38
      %p40 = scmp.ne.s32.totalorder %s29, %s30
      %p41 = scmp.eq.s32.totalorder %s21, 0
      %p42 = por %p40, %p41
      %p43 = scmp.ne.s32.totalorder %s29, %s30
      %p44 = scmp.eq.s32.totalorder %s22, 1
      %p45 = por %p43, %p44
      %p47 = scmp.ne.s32.totalorder %s30, %s46
      %p48 = scmp.eq.s32.totalorder %s22, 0
      %p49 = por %p47, %p48
      %s51 = sadd.s32 %s50, 1
      %p54 = scmp.eq.s32.totalorder %s16, 1
      %p55 = scmp.ne.s32.totalorder %s50, %s52
      %p56 = scmp.eq.s32.totalorder %s16, 0
      %p57 = por %p55, %p56
      %p58 = scmp.ne.s32.totalorder %s50, %s52
      %p59 = scmp.eq.s32.totalorder %s21, 1
      %p60 = por %p58, %p59
      %p61 = scmp.ne.s32.totalorder %s52, %s53
      %p62 = scmp.eq.s32.totalorder %s21, 0
      %p63 = por %p61, %p62
      %p64 = scmp.ne.s32.totalorder %s52, %s53
      %p65 = scmp.eq.s32.totalorder %s22, 1
      %p66 = por %p64, %p65
      %p68 = scmp.ne.s32.totalorder %s53, %s67
      %p69 = scmp.eq.s32.totalorder %s22, 0
      %p70 = por %p68, %p69
      %s72 = sadd.s32 %s71, 1
      %p75 = scmp.eq.s32.totalorder %s16, 1
      %p76 = scmp.ne.s32.totalorder %s71, %s73
      %p77 = scmp.eq.s32.totalorder %s16, 0
      %p78 = por %p76, %p77
      %p79 = scmp.ne.s32.totalorder %s71, %s73
      %p80 = scmp.eq.s32.totalorder %s21, 1
      %p81 = por %p79, %p80
      %p82 = scmp.ne.s32.totalorder %s73, %s74
      %p83 = scmp.eq.s32.totalorder %s21, 0
      %p84 = por %p82, %p83
      %p85 = scmp.ne.s32.totalorder %s73, %s74
      %p86 = scmp.eq.s32.totalorder %s22, 1
      %p87 = por %p85, %p86
      %p89 = scmp.ne.s32.totalorder %s74, %s88
      %p90 = scmp.eq.s32.totalorder %s22, 0
      %p91 = por %p89, %p90
      %s92 = ssub.s32 %s16, %s23
      %p93 = scmp.eq.s32.totalorder %s92, 0
      %s95 = sadd.s32 %s94, 1
      %s96 = scalar_select %p93, %s94, %s95
      %p99 = pneg %p93
      %p100 = scmp.eq.s32.totalorder %s16, 1
      %p101 = por %p99, %p100
      %p102 = scmp.ne.s32.totalorder %s94, %s97
      %p103 = scmp.eq.s32.totalorder %s16, 0
      %p104 = por %p102, %p103
      %p105 = scmp.ne.s32.totalorder %s94, %s97
      %p106 = scmp.eq.s32.totalorder %s21, 1
      %p107 = por %p105, %p106
      %p108 = scmp.ne.s32.totalorder %s97, %s98
      %p109 = scmp.eq.s32.totalorder %s21, 0
      %p110 = por %p108, %p109
      %p111 = scmp.ne.s32.totalorder %s97, %s98
      %p112 = scmp.eq.s32.totalorder %s22, 1
      %p113 = por %p111, %p112
      %p115 = scmp.ne.s32.totalorder %s98, %s114
      %p116 = scmp.eq.s32.totalorder %s22, 0
      %p117 = por %p115, %p116
      %p118 = scmp.le.s32.totalorder 1, %s16
      %p119 = scmp.lt.s32.totalorder %s16, 3
      %p120 = pnand %p118, %p119
      %p121 = pneg %p120
      // Predicated region
      $region9: #{transformer_forward.1} parent=5 // pred_check
        _
      $region10: #{transformer_forward.1} parent=5 // pred_check_branch
        %123 = sbr.rel (%p120) target = $region12
      $region11: #{transformer_forward.1} parent=5 // pred_region
        %s124 = ssub.s32 %s16, 1
        // Predicated region
        $region13: #{transformer_forward.1} parent=11 // pred_check
          %p125 = pneg %p63
        $region14: #{transformer_forward.1} parent=11 // pred_check_branch
          %127 = sbr.rel (%p125) target = $region16
        $region15: #{transformer_forward.1} parent=11 // pred_region
          %s129 = ssub.s32 8064, 8064
          %130 = vsyncadd [#allocation6], %s129
          %s131 = sshll.u32 [#allocation5], 4
          %s132 = int_to_ptr.vmem [resolvable:$true] %s131
          %137 = dma.hbm_to_vmem [thread:$0]  %s1, 8064, %s132, [#allocation6], 128, 128, 8
        $region16: #{transformer_forward.1} parent=11 // pred_fallthru
          _
        // Predicated region
        $region17: #{transformer_forward.1} parent=11 // pred_check
          %p138 = pneg %p84
        $region18: #{transformer_forward.1} parent=11 // pred_check_branch
          %140 = sbr.rel (%p138) target = $region20
        $region19: #{transformer_forward.1} parent=11 // pred_region
          %s142 = ssub.s32 1024, 1024
          %143 = vsyncadd [#allocation6], %s142
          %s144 = sshll.u32 [#allocation7], 4
          %s145 = int_to_ptr.vmem [resolvable:$true] %s144
          %150 = dma.hbm_to_vmem [thread:$0]  %s2, 1024, %s145, [#allocation6], 128, 128, 8
        $region20: #{transformer_forward.1} parent=11 // pred_fallthru
          _
      $region12: #{transformer_forward.1} parent=5 // pred_fallthru
        _
      %p151 = scmp.lt.s32.totalorder %s16, 2
      // Predicated region
      $region21: #{transformer_forward.1} parent=5 // pred_check
        %p152 = pneg %p151
      $region22: #{transformer_forward.1} parent=5 // pred_check_branch
        %154 = sbr.rel (%p152) target = $region24
      $region23: #{transformer_forward.1} parent=5 // pred_region
        // Predicated region
        $region25: #{transformer_forward.1} parent=23 // pred_check
          %p155 = pneg %p36
        $region26: #{transformer_forward.1} parent=23 // pred_check_branch
          %157 = sbr.rel (%p155) target = $region28
        $region27: #{transformer_forward.1} parent=23 // pred_region
          %s158 = sand.u32 %s26, 1
          %s159 = scalar_lea.sflag [#allocation3], %s158
          %s160 = sand.u32 %s26, 1
          %s161 = smul.addr %s160, 16
          %s162 = scalar_lea.vmem [#allocation2], %s161
          %s163 = smul.u32 2, %s16
          %s165 = ssub.s32 256, 256
          %166 = vsyncadd %s159, %s165
          %s167 = smul.addr %s163, 128
          %s168 = scalar_lea.hbm %s0, %s167
          %s169 = sshll.u32 %s162, 4
          %s170 = int_to_ptr.vmem [resolvable:$true] %s169
          %175 = dma.hbm_to_vmem [thread:$0]  %s168, 256, %s170, %s159, 128, 128, 8
        $region28: #{transformer_forward.1} parent=23 // pred_fallthru
          _
      $region24: #{transformer_forward.1} parent=5 // pred_fallthru
        _
      %p176 = scmp.le.s32.totalorder 1, %s16
      %p177 = scmp.lt.s32.totalorder %s16, 3
      %p178 = pnand %p176, %p177
      %p179 = pneg %p178
      // Predicated region
      $region29: #{transformer_forward.1} parent=5 // pred_check
        _
      $region30: #{transformer_forward.1} parent=5 // pred_check_branch
        %181 = sbr.rel (%p178) target = $region32
      $region31: #{transformer_forward.1} parent=5 // pred_region
        %s182 = ssub.s32 %s16, 1
        %s183 = sand.u32 %s29, 1
        %s184 = scalar_lea.sflag [#allocation3], %s183
        %s185 = sand.u32 %s29, 1
        %s186 = smul.addr %s185, 16
        %s187 = scalar_lea.vmem [#allocation2], %s186
        // Predicated region
        $region33: #{transformer_forward.1} parent=31 // pred_check
          %p188 = pneg %p42
        $region34: #{transformer_forward.1} parent=31 // pred_check_branch
          %190 = sbr.rel (%p188) target = $region36
        $region35: #{transformer_forward.1} parent=31 // pred_region
          %191 = dma.done %s184, 256
        $region36: #{transformer_forward.1} parent=31 // pred_fallthru
          _
        // Predicated region
        $region37: #{transformer_forward.1} parent=31 // pred_check
          %p192 = pneg %p63
        $region38: #{transformer_forward.1} parent=31 // pred_check_branch
          %194 = sbr.rel (%p192) target = $region40
        $region39: #{transformer_forward.1} parent=31 // pred_region
          %195 = dma.done [#allocation6], 8064
        $region40: #{transformer_forward.1} parent=31 // pred_fallthru
          _
        // Predicated region
        $region41: #{transformer_forward.1} parent=31 // pred_check
          %p196 = pneg %p84
        $region42: #{transformer_forward.1} parent=31 // pred_check_branch
          %198 = sbr.rel (%p196) target = $region44
        $region43: #{transformer_forward.1} parent=31 // pred_region
          %199 = dma.done [#allocation6], 1024
        $region44: #{transformer_forward.1} parent=31 // pred_fallthru
          _
        %s200 = sand.u32 %s29, 1
        %s201 = scalar_lea.sflag [#allocation3], %s200
        %s202 = sand.u32 %s29, 1
        %s203 = smul.addr %s202, 16
        %s204 = scalar_lea.vmem [#allocation2], %s203
        %p205 = pneg %p42
        %p206 = pneg %p39
        %p207 = pneg %p63
        %p208 = pneg %p60
        %p209 = pneg %p84
        %p210 = pneg %p81
        %p211 = pneg %p110
        %p212 = pneg %p107
        %s213 = sand.u32 %s97, 1
        %s214 = scalar_lea.sflag [#allocation4], %s213
        %s215 = sand.u32 %s97, 1
        %s216 = smul.addr %s215, 2
        %s217 = scalar_lea.vmem [#allocation8], %s216
        %s218 = smul.u32 2, %s21
        %v219 = vld [vmem:[%s187] sm:$0xff]
        %v220 = vld [vmem:[%s187 + $0x8] sm:$0xff]
        %v221 = vld [vmem:[#allocation5] sm:$0xff]
        %v222 = vld [vmem:[#allocation5 + $0x8] sm:$0xff]
        %v223 = vld [vmem:[#allocation5 + $0x10] sm:$0xff]
        %vm224 = vcmask 64512
        %v226 = vsel %vm224, %v219, 0
        %v229 = vsel %vm224, %v220, 0
        %231 = vmatprep.subr.mxu0 0.0
        %232 = vmatpush1.msra.mxu0 %v221
        %233 = vmatprep.subr.mxu0 0.0
        %234 = vmatpush1.msra.mxu0 0.0
        %235 = vmatprep.subr.mxu0 0.0
        %236 = vmatpush1.msra.mxu0 0.0
        %237 = vmatprep.subr.mxu0 0.0
        %238 = vmatpush1.msra.mxu0 0.0
        %239 = vmatprep.subr.mxu0 0.0
        %240 = vmatpush1.msra.mxu0 0.0
        %241 = vmatprep.subr.mxu0 0.0
        %242 = vmatpush1.msra.mxu0 0.0
        %243 = vmatprep.subr.mxu0 0.0
        %244 = vmatpush1.msra.mxu0 0.0
        %245 = vmatprep.subr.mxu0 0.0
        %246 = vmatpush1.msra.mxu0 0.0
        %247 = vmatprep.subr.mxu0 0.0
        %248 = vmatpush1.msra.mxu0 0.0
        %249 = vmatprep.subr.mxu0 0.0
        %250 = vmatpush1.msra.mxu0 0.0
        %251 = vmatprep.subr.mxu0 0.0
        %252 = vmatpush1.msra.mxu0 0.0
        %253 = vmatprep.subr.mxu0 0.0
        %254 = vmatpush1.msra.mxu0 0.0
        %255 = vmatprep.subr.mxu0 0.0
        %256 = vmatpush1.msra.mxu0 0.0
        %257 = vmatprep.subr.mxu0 0.0
        %258 = vmatpush1.msra.mxu0 0.0
        %259 = vmatprep.subr.mxu0 0.0
        %260 = vmatpush1.msra.mxu0 0.0
        %261 = vmatprep.subr.mxu0 0.0
        %262 = vmatpush1.msra.mxu0 0.0
        %263 = vmatprep.subr.mxu0 0.0
        %264 = vmatpush1.msra.mxu0 0.0
        %265 = vmatprep.subr.mxu0 0.0
        %266 = vmatpush1.msra.mxu0 0.0
        %267 = vmatprep.subr.mxu0 0.0
        %268 = vmatpush1.msra.mxu0 0.0
        %269 = vmatprep.subr.mxu0 0.0
        %270 = vmatpush1.msra.mxu0 0.0
        %271 = vmatprep.subr.mxu0 0.0
        %272 = vmatpush1.msra.mxu0 0.0
        %273 = vmatprep.subr.mxu0 0.0
        %274 = vmatpush1.msra.mxu0 0.0
        %275 = vmatprep.subr.mxu0 0.0
        %276 = vmatpush1.msra.mxu0 0.0
        %277 = vmatprep.subr.mxu0 0.0
        %278 = vmatpush1.msra.mxu0 0.0
        %279 = vmatprep.subr.mxu0 0.0
        %280 = vmatpush1.msra.mxu0 0.0
        %281 = vmatprep.subr.mxu0 0.0
        %282 = vmatpush1.msra.mxu0 0.0
        %283 = vmatprep.subr.mxu0 0.0
        %284 = vmatpush1.msra.mxu0 0.0
        %285 = vmatprep.subr.mxu0 0.0
        %286 = vmatpush1.msra.mxu0 0.0
        %287 = vmatprep.subr.mxu0 0.0
        %288 = vmatpush1.msra.mxu0 0.0
        %289 = vmatprep.subr.mxu0 0.0
        %290 = vmatpush1.msra.mxu0 0.0
        %291 = vmatprep.subr.mxu0 0.0
        %292 = vmatpush1.msra.mxu0 0.0
        %293 = vmatprep.subr.mxu0 0.0
        %294 = vmatpush1.msra.mxu0 0.0
        %295 = vmatprep.mubr.f32.mxu0 0.0
        %296 = vmatmul.mubr.f32.gmra.mrb[0].mxu0 %v226
        %v297 = vpop.f32.mrb[0].mxu0
        %v298 = vadd.f32 %v222, %v297
        %v299 = vpop.f32.mrb[0].mxu0
        %300 = vmatprep.mubr.f32.mxu0 0.0
        %301 = vmatmul.mubr.f32.gmra.mrb[0].mxu0 %v229
        %v302 = vpop.f32.mrb[0].mxu0
        %v303 = vadd.f32 %v223, %v302
        %v304 = vpop.f32.mrb[0].mxu0
        %305 = vdwg.mxu0
        %v306 = vld [vmem:[#allocation5 + $0x18] sm:$0xff]
        %v307 = vld [vmem:[#allocation5 + $0x20] sm:$0xff]
        %v308 = vld [vmem:[#allocation5 + $0x38] sm:$0xff]
        %v309 = vld [vmem:[#allocation5 + $0x40] sm:$0xff]
        %v310 = vld [vmem:[#allocation5 + $0x48] sm:$0xff]
        %v311 = vld [vmem:[#allocation5 + $0x50] sm:$0xff]
        %v312 = vld [vmem:[#allocation5 + $0x58] sm:$0x1]
        %v313 = vlaneseq
        %v314 = vshrl.u32 %v313, 7
        %v315 = vsub.s32 0, %v314
        %v316 = vrot.slane %v312, %v315
        %vm317 = vcmask 261120
        %v319 = vsel %vm317, %v298, 0
        %v322 = vsel %vm317, %v303, 0
        %324 = vmatprep.subr.mxu0 0.0
        %325 = vmatpush1.msra.mxu0 %v308
        %326 = vmatprep.subr.mxu0 0.0
        %327 = vmatpush1.msra.mxu0 %v309
        %328 = vmatprep.subr.mxu0 0.0
        %329 = vmatpush1.msra.mxu0 %v310
        %330 = vmatprep.subr.mxu0 0.0
        %331 = vmatpush1.msra.mxu0 %v311
        %332 = vmatprep.subr.mxu0 0.0
        %333 = vmatpush1.msra.mxu0 0.0
        %334 = vmatprep.subr.mxu0 0.0
        %335 = vmatpush1.msra.mxu0 0.0
        %336 = vmatprep.subr.mxu0 0.0
        %337 = vmatpush1.msra.mxu0 0.0
        %338 = vmatprep.subr.mxu0 0.0
        %339 = vmatpush1.msra.mxu0 0.0
        %340 = vmatprep.subr.mxu0 0.0
        %341 = vmatpush1.msra.mxu0 0.0
        %342 = vmatprep.subr.mxu0 0.0
        %343 = vmatpush1.msra.mxu0 0.0
        %344 = vmatprep.subr.mxu0 0.0
        %345 = vmatpush1.msra.mxu0 0.0
        %346 = vmatprep.subr.mxu0 0.0
        %347 = vmatpush1.msra.mxu0 0.0
        %348 = vmatprep.subr.mxu0 0.0
        %349 = vmatpush1.msra.mxu0 0.0
        %350 = vmatprep.subr.mxu0 0.0
        %351 = vmatpush1.msra.mxu0 0.0
        %352 = vmatprep.subr.mxu0 0.0
        %353 = vmatpush1.msra.mxu0 0.0
        %354 = vmatprep.subr.mxu0 0.0
        %355 = vmatpush1.msra.mxu0 0.0
        %356 = vmatprep.subr.mxu0 0.0
        %357 = vmatpush1.msra.mxu0 0.0
        %358 = vmatprep.subr.mxu0 0.0
        %359 = vmatpush1.msra.mxu0 0.0
        %360 = vmatprep.subr.mxu0 0.0
        %361 = vmatpush1.msra.mxu0 0.0
        %362 = vmatprep.subr.mxu0 0.0
        %363 = vmatpush1.msra.mxu0 0.0
        %364 = vmatprep.subr.mxu0 0.0
        %365 = vmatpush1.msra.mxu0 0.0
        %366 = vmatprep.subr.mxu0 0.0
        %367 = vmatpush1.msra.mxu0 0.0
        %368 = vmatprep.subr.mxu0 0.0
        %369 = vmatpush1.msra.mxu0 0.0
        %370 = vmatprep.subr.mxu0 0.0
        %371 = vmatpush1.msra.mxu0 0.0
        %372 = vmatprep.subr.mxu0 0.0
        %373 = vmatpush1.msra.mxu0 0.0
        %374 = vmatprep.subr.mxu0 0.0
        %375 = vmatpush1.msra.mxu0 0.0
        %376 = vmatprep.subr.mxu0 0.0
        %377 = vmatpush1.msra.mxu0 0.0
        %378 = vmatprep.subr.mxu0 0.0
        %379 = vmatpush1.msra.mxu0 0.0
        %380 = vmatprep.subr.mxu0 0.0
        %381 = vmatpush1.msra.mxu0 0.0
        %382 = vmatprep.subr.mxu0 0.0
        %383 = vmatpush1.msra.mxu0 0.0
        %384 = vmatprep.subr.mxu0 0.0
        %385 = vmatpush1.msra.mxu0 0.0
        %386 = vmatprep.subr.mxu0 0.0
        %387 = vmatpush1.msra.mxu0 0.0
        %388 = vmatprep.mubr.f32.mxu0 0.0
        %389 = vmatmul.mubr.f32.gmra.mrb[0].mxu0 %v319
        %v390 = vpop.f32.mrb[0].mxu0
        %v391 = vadd.f32 %v316, %v390
        %v392 = vpop.f32.mrb[0].mxu0
        %393 = vmatprep.mubr.f32.mxu0 0.0
        %394 = vmatmul.mubr.f32.gmra.mrb[0].mxu0 %v322
        %v395 = vpop.f32.mrb[0].mxu0
        %v396 = vadd.f32 %v316, %v395
        %v397 = vpop.f32.mrb[0].mxu0
        %398 = vdwg.mxu0
        %401 = vrot.lane.b32.xlu0 %v391, 96
        %v402 = vpop.permute.xlu0 %401
        %403 = vrot.lane.b32.xlu0 %v396, 96
        %v404 = vpop.permute.xlu0 %403
        %v405 = vsel %vm224, %v391, 0
        %v407 = vsel %vm224, %v396, 0
        %v409 = vsel %vm224, %v402, 0
        %v411 = vsel %vm224, %v404, 0
        %413 = vmatprep.subr.mxu0 0.0
        %414 = vmatpush1.xpose.msra.mxu0 %v409
        %415 = vmatprep.subr.mxu0 0.0
        %416 = vmatpush1.xpose.msra.mxu0 %v411
        %417 = vmatprep.subr.mxu0 0.0
        %418 = vmatpush1.xpose.msra.mxu0 0.0
        %419 = vmatprep.subr.mxu0 0.0
        %420 = vmatpush1.xpose.msra.mxu0 0.0
        %421 = vmatprep.subr.mxu0 0.0
        %422 = vmatpush1.xpose.msra.mxu0 0.0
        %423 = vmatprep.subr.mxu0 0.0
        %424 = vmatpush1.xpose.msra.mxu0 0.0
        %425 = vmatprep.subr.mxu0 0.0
        %426 = vmatpush1.xpose.msra.mxu0 0.0
        %427 = vmatprep.subr.mxu0 0.0
        %428 = vmatpush1.xpose.msra.mxu0 0.0
        %429 = vmatprep.subr.mxu0 0.0
        %430 = vmatpush1.xpose.msra.mxu0 0.0
        %431 = vmatprep.subr.mxu0 0.0
        %432 = vmatpush1.xpose.msra.mxu0 0.0
        %433 = vmatprep.subr.mxu0 0.0
        %434 = vmatpush1.xpose.msra.mxu0 0.0
        %435 = vmatprep.subr.mxu0 0.0
        %436 = vmatpush1.xpose.msra.mxu0 0.0
        %437 = vmatprep.subr.mxu0 0.0
        %438 = vmatpush1.xpose.msra.mxu0 0.0
        %439 = vmatprep.subr.mxu0 0.0
        %440 = vmatpush1.xpose.msra.mxu0 0.0
        %441 = vmatprep.subr.mxu0 0.0
        %442 = vmatpush1.xpose.msra.mxu0 0.0
        %443 = vmatprep.subr.mxu0 0.0
        %444 = vmatpush1.xpose.msra.mxu0 0.0
        %445 = vmatprep.subr.mxu0 0.0
        %446 = vmatpush1.xpose.msra.mxu0 0.0
        %447 = vmatprep.subr.mxu0 0.0
        %448 = vmatpush1.xpose.msra.mxu0 0.0
        %449 = vmatprep.subr.mxu0 0.0
        %450 = vmatpush1.xpose.msra.mxu0 0.0
        %451 = vmatprep.subr.mxu0 0.0
        %452 = vmatpush1.xpose.msra.mxu0 0.0
        %453 = vmatprep.subr.mxu0 0.0
        %454 = vmatpush1.xpose.msra.mxu0 0.0
        %455 = vmatprep.subr.mxu0 0.0
        %456 = vmatpush1.xpose.msra.mxu0 0.0
        %457 = vmatprep.subr.mxu0 0.0
        %458 = vmatpush1.xpose.msra.mxu0 0.0
        %459 = vmatprep.subr.mxu0 0.0
        %460 = vmatpush1.xpose.msra.mxu0 0.0
        %461 = vmatprep.subr.mxu0 0.0
        %462 = vmatpush1.xpose.msra.mxu0 0.0
        %463 = vmatprep.subr.mxu0 0.0
        %464 = vmatpush1.xpose.msra.mxu0 0.0
        %465 = vmatprep.subr.mxu0 0.0
        %466 = vmatpush1.xpose.msra.mxu0 0.0
        %467 = vmatprep.subr.mxu0 0.0
        %468 = vmatpush1.xpose.msra.mxu0 0.0
        %469 = vmatprep.subr.mxu0 0.0
        %470 = vmatpush1.xpose.msra.mxu0 0.0
        %471 = vmatprep.subr.mxu0 0.0
        %472 = vmatpush1.xpose.msra.mxu0 0.0
        %473 = vmatprep.subr.mxu0 0.0
        %474 = vmatpush1.xpose.msra.mxu0 0.0
        %475 = vmatprep.subr.mxu0 0.0
        %476 = vmatpush1.xpose.msra.mxu0 0.0
        %477 = vmatprep.mubr.f32.mxu0 0.0
        %478 = vmatmul.mubr.f32.gmra.mrb[0].mxu0 %v405
        %v479 = vpop.f32.mrb[0].mxu0
        %v480 = vadd.f32 0.0, %v479
        %v481 = vpop.f32.mrb[0].mxu0
        %482 = vmatprep.mubr.f32.mxu0 0.0
        %483 = vmatmul.mubr.f32.gmra.mrb[0].mxu0 %v407
        %v484 = vpop.f32.mrb[0].mxu0
        %v485 = vadd.f32 0.0, %v484
        %v486 = vpop.f32.mrb[0].mxu0
        %487 = vdwg.mxu0
        %v488 = vmul.f32 %v480, 0.35355338
        %v489 = vmul.f32 %v485, 0.35355338
        %v490 = vadd.f32 %v488, %v306
        %v491 = vadd.f32 %v489, %v307
        %vm492 = vcmask 130048
        %v493 = vsel %vm492, %v490, -inf
        %494 = vmax.xlane.f32.xlu0 %v493
        %v495 = vpop.xlane.xlu0 %494
        %v496 = vsel %vm492, %v491, -inf
        %497 = vmax.xlane.f32.xlu0 %v496
        %v498 = vpop.xlane.xlu0 %497
        %v499 = vsub.f32 %v490, %v495
        %v500 = vsub.f32 %v491, %v498
        %v501 = vmul.f32 %v499, 1.442695
        %v502 = vpow.pop %v501
        %v503 = vmul.f32 %v500, 1.442695
        %v504 = vpow.pop %v503
        %v505 = vsel %vm492, %v502, 0.0
        %506 = vadd.xlane.f32.xlu0 %v505
        %v507 = vpop.xlane.xlu0 %506
        %v508 = vsel %vm492, %v504, 0.0
        %509 = vadd.xlane.f32.xlu0 %v508
        %v510 = vpop.xlane.xlu0 %509
        %v511 = vrcp.pop %v507
        %v512 = vrcp.pop %v510
        %v513 = vmul.f32 %v502, %v511
        %v514 = vmul.f32 %v504, %v512
        %515 = vrot.lane.b32.xlu0 %v391, 64
        %v516 = vpop.permute.xlu0 %515
        %517 = vrot.lane.b32.xlu0 %v396, 64
        %v518 = vpop.permute.xlu0 %517
        %v522 = vsel %vm492, %v513, 0
        %v525 = vsel %vm492, %v514, 0
        %527 = vmatprep.subr.mxu0 0.0
        %528 = vmatpush1.msra.mxu0 %v516
        %529 = vmatprep.subr.mxu0 0.0
        %530 = vmatpush1.msra.mxu0 %v518
        %531 = vmatprep.subr.mxu0 0.0
        %532 = vmatpush1.msra.mxu0 0.0
        %533 = vmatprep.subr.mxu0 0.0
        %534 = vmatpush1.msra.mxu0 0.0
        %535 = vmatprep.subr.mxu0 0.0
        %536 = vmatpush1.msra.mxu0 0.0
        %537 = vmatprep.subr.mxu0 0.0
        %538 = vmatpush1.msra.mxu0 0.0
        %539 = vmatprep.subr.mxu0 0.0
        %540 = vmatpush1.msra.mxu0 0.0
        %541 = vmatprep.subr.mxu0 0.0
        %542 = vmatpush1.msra.mxu0 0.0
        %543 = vmatprep.subr.mxu0 0.0
        %544 = vmatpush1.msra.mxu0 0.0
        %545 = vmatprep.subr.mxu0 0.0
        %546 = vmatpush1.msra.mxu0 0.0
        %547 = vmatprep.subr.mxu0 0.0
        %548 = vmatpush1.msra.mxu0 0.0
        %549 = vmatprep.subr.mxu0 0.0
        %550 = vmatpush1.msra.mxu0 0.0
        %551 = vmatprep.subr.mxu0 0.0
        %552 = vmatpush1.msra.mxu0 0.0
        %553 = vmatprep.subr.mxu0 0.0
        %554 = vmatpush1.msra.mxu0 0.0
        %555 = vmatprep.subr.mxu0 0.0
        %556 = vmatpush1.msra.mxu0 0.0
        %557 = vmatprep.subr.mxu0 0.0
        %558 = vmatpush1.msra.mxu0 0.0
        %559 = vmatprep.subr.mxu0 0.0
        %560 = vmatpush1.msra.mxu0 0.0
        %561 = vmatprep.subr.mxu0 0.0
        %562 = vmatpush1.msra.mxu0 0.0
        %563 = vmatprep.subr.mxu0 0.0
        %564 = vmatpush1.msra.mxu0 0.0
        %565 = vmatprep.subr.mxu0 0.0
        %566 = vmatpush1.msra.mxu0 0.0
        %567 = vmatprep.subr.mxu0 0.0
        %568 = vmatpush1.msra.mxu0 0.0
        %569 = vmatprep.subr.mxu0 0.0
        %570 = vmatpush1.msra.mxu0 0.0
        %571 = vmatprep.subr.mxu0 0.0
        %572 = vmatpush1.msra.mxu0 0.0
        %573 = vmatprep.subr.mxu0 0.0
        %574 = vmatpush1.msra.mxu0 0.0
        %575 = vmatprep.subr.mxu0 0.0
        %576 = vmatpush1.msra.mxu0 0.0
        %577 = vmatprep.subr.mxu0 0.0
        %578 = vmatpush1.msra.mxu0 0.0
        %579 = vmatprep.subr.mxu0 0.0
        %580 = vmatpush1.msra.mxu0 0.0
        %581 = vmatprep.subr.mxu0 0.0
        %582 = vmatpush1.msra.mxu0 0.0
        %583 = vmatprep.subr.mxu0 0.0
        %584 = vmatpush1.msra.mxu0 0.0
        %585 = vmatprep.subr.mxu0 0.0
        %586 = vmatpush1.msra.mxu0 0.0
        %587 = vmatprep.subr.mxu0 0.0
        %588 = vmatpush1.msra.mxu0 0.0
        %589 = vmatprep.subr.mxu0 0.0
        %590 = vmatpush1.msra.mxu0 0.0
        %591 = vmatprep.mubr.f32.mxu0 0.0
        %592 = vmatmul.mubr.f32.gmra.mrb[0].mxu0 %v522
        %v593 = vpop.f32.mrb[0].mxu0
        %v594 = vadd.f32 0.0, %v593
        %v595 = vpop.f32.mrb[0].mxu0
        %596 = vmatprep.mubr.f32.mxu0 0.0
        %597 = vmatmul.mubr.f32.gmra.mrb[0].mxu0 %v525
        %v598 = vpop.f32.mrb[0].mxu0
        %v599 = vadd.f32 0.0, %v598
        %v600 = vpop.f32.mrb[0].mxu0
        %601 = vdwg.mxu0
        %602 = vrot.lane.b32.xlu0 %v391, 120
        %v603 = vpop.permute.xlu0 %602
        %604 = vrot.lane.b32.xlu0 %v396, 120
        %v605 = vpop.permute.xlu0 %604
        %606 = vrot.lane.b32.xlu0 %v391, 88
        %v607 = vpop.permute.xlu0 %606
        %608 = vrot.lane.b32.xlu0 %v396, 88
        %v609 = vpop.permute.xlu0 %608
        %v610 = vsel %vm224, %v603, 0
        %v612 = vsel %vm224, %v605, 0
        %v614 = vsel %vm224, %v607, 0
        %v616 = vsel %vm224, %v609, 0
        %618 = vmatprep.subr.mxu0 0.0
        %619 = vmatpush1.xpose.msra.mxu0 %v614
        %620 = vmatprep.subr.mxu0 0.0
        %621 = vmatpush1.xpose.msra.mxu0 %v616
        %622 = vmatprep.subr.mxu0 0.0
        %623 = vmatpush1.xpose.msra.mxu0 0.0
        %624 = vmatprep.subr.mxu0 0.0
        %625 = vmatpush1.xpose.msra.mxu0 0.0
        %626 = vmatprep.subr.mxu0 0.0
        %627 = vmatpush1.xpose.msra.mxu0 0.0
        %628 = vmatprep.subr.mxu0 0.0
        %629 = vmatpush1.xpose.msra.mxu0 0.0
        %630 = vmatprep.subr.mxu0 0.0
        %631 = vmatpush1.xpose.msra.mxu0 0.0
        %632 = vmatprep.subr.mxu0 0.0
        %633 = vmatpush1.xpose.msra.mxu0 0.0
        %634 = vmatprep.subr.mxu0 0.0
        %635 = vmatpush1.xpose.msra.mxu0 0.0
        %636 = vmatprep.subr.mxu0 0.0
        %637 = vmatpush1.xpose.msra.mxu0 0.0
        %638 = vmatprep.subr.mxu0 0.0
        %639 = vmatpush1.xpose.msra.mxu0 0.0
        %640 = vmatprep.subr.mxu0 0.0
        %641 = vmatpush1.xpose.msra.mxu0 0.0
        %642 = vmatprep.subr.mxu0 0.0
        %643 = vmatpush1.xpose.msra.mxu0 0.0
        %644 = vmatprep.subr.mxu0 0.0
        %645 = vmatpush1.xpose.msra.mxu0 0.0
        %646 = vmatprep.subr.mxu0 0.0
        %647 = vmatpush1.xpose.msra.mxu0 0.0
        %648 = vmatprep.subr.mxu0 0.0
        %649 = vmatpush1.xpose.msra.mxu0 0.0
        %650 = vmatprep.subr.mxu0 0.0
        %651 = vmatpush1.xpose.msra.mxu0 0.0
        %652 = vmatprep.subr.mxu0 0.0
        %653 = vmatpush1.xpose.msra.mxu0 0.0
        %654 = vmatprep.subr.mxu0 0.0
        %655 = vmatpush1.xpose.msra.mxu0 0.0
        %656 = vmatprep.subr.mxu0 0.0
        %657 = vmatpush1.xpose.msra.mxu0 0.0
        %658 = vmatprep.subr.mxu0 0.0
        %659 = vmatpush1.xpose.msra.mxu0 0.0
        %660 = vmatprep.subr.mxu0 0.0
        %661 = vmatpush1.xpose.msra.mxu0 0.0
        %662 = vmatprep.subr.mxu0 0.0
        %663 = vmatpush1.xpose.msra.mxu0 0.0
        %664 = vmatprep.subr.mxu0 0.0
        %665 = vmatpush1.xpose.msra.mxu0 0.0
        %666 = vmatprep.subr.mxu0 0.0
        %667 = vmatpush1.xpose.msra.mxu0 0.0
        %668 = vmatprep.subr.mxu0 0.0
        %669 = vmatpush1.xpose.msra.mxu0 0.0
        %670 = vmatprep.subr.mxu0 0.0
        %671 = vmatpush1.xpose.msra.mxu0 0.0
        %672 = vmatprep.subr.mxu0 0.0
        %673 = vmatpush1.xpose.msra.mxu0 0.0
        %674 = vmatprep.subr.mxu0 0.0
        %675 = vmatpush1.xpose.msra.mxu0 0.0
        %676 = vmatprep.subr.mxu0 0.0
        %677 = vmatpush1.xpose.msra.mxu0 0.0
        %678 = vmatprep.subr.mxu0 0.0
        %679 = vmatpush1.xpose.msra.mxu0 0.0
        %680 = vmatprep.subr.mxu0 0.0
        %681 = vmatpush1.xpose.msra.mxu0 0.0
        %682 = vmatprep.mubr.f32.mxu0 0.0
        %683 = vmatmul.mubr.f32.gmra.mrb[0].mxu0 %v610
        %v684 = vpop.f32.mrb[0].mxu0
        %v685 = vadd.f32 0.0, %v684
        %v686 = vpop.f32.mrb[0].mxu0
        %687 = vmatprep.mubr.f32.mxu0 0.0
        %688 = vmatmul.mubr.f32.gmra.mrb[0].mxu0 %v612
        %v689 = vpop.f32.mrb[0].mxu0
        %v690 = vadd.f32 0.0, %v689
        %v691 = vpop.f32.mrb[0].mxu0
        %692 = vdwg.mxu0
        %v693 = vmul.f32 %v685, 0.35355338
        %v694 = vmul.f32 %v690, 0.35355338
        %v695 = vadd.f32 %v693, %v306
        %v696 = vadd.f32 %v694, %v307
        %v697 = vsel %vm492, %v695, -inf
        %698 = vmax.xlane.f32.xlu0 %v697
        %v699 = vpop.xlane.xlu0 %698
        %v700 = vsel %vm492, %v696, -inf
        %701 = vmax.xlane.f32.xlu0 %v700
        %v702 = vpop.xlane.xlu0 %701
        %v703 = vsub.f32 %v695, %v699
        %v704 = vsub.f32 %v696, %v702
        %v705 = vmul.f32 %v703, 1.442695
        %v706 = vpow.pop %v705
        %v707 = vmul.f32 %v704, 1.442695
        %v708 = vpow.pop %v707
        %v709 = vsel %vm492, %v706, 0.0
        %710 = vadd.xlane.f32.xlu0 %v709
        %v711 = vpop.xlane.xlu0 %710
        %v712 = vsel %vm492, %v708, 0.0
        %713 = vadd.xlane.f32.xlu0 %v712
        %v714 = vpop.xlane.xlu0 %713
        %v715 = vrcp.pop %v711
        %v716 = vrcp.pop %v714
        %v717 = vmul.f32 %v706, %v715
        %v718 = vmul.f32 %v708, %v716
        %719 = vrot.lane.b32.xlu0 %v391, 56
        %v720 = vpop.permute.xlu0 %719
        %721 = vrot.lane.b32.xlu0 %v396, 56
        %v722 = vpop.permute.xlu0 %721
        %v726 = vsel %vm492, %v717, 0
        %v729 = vsel %vm492, %v718, 0
        %731 = vmatprep.subr.mxu0 0.0
        %732 = vmatpush1.msra.mxu0 %v720
        %733 = vmatprep.subr.mxu0 0.0
        %734 = vmatpush1.msra.mxu0 %v722
        %735 = vmatprep.subr.mxu0 0.0
        %736 = vmatpush1.msra.mxu0 0.0
        %737 = vmatprep.subr.mxu0 0.0
        %738 = vmatpush1.msra.mxu0 0.0
        %739 = vmatprep.subr.mxu0 0.0
        %740 = vmatpush1.msra.mxu0 0.0
        %741 = vmatprep.subr.mxu0 0.0
        %742 = vmatpush1.msra.mxu0 0.0
        %743 = vmatprep.subr.mxu0 0.0
        %744 = vmatpush1.msra.mxu0 0.0
        %745 = vmatprep.subr.mxu0 0.0
        %746 = vmatpush1.msra.mxu0 0.0
        %747 = vmatprep.subr.mxu0 0.0
        %748 = vmatpush1.msra.mxu0 0.0
        %749 = vmatprep.subr.mxu0 0.0
        %750 = vmatpush1.msra.mxu0 0.0
        %751 = vmatprep.subr.mxu0 0.0
        %752 = vmatpush1.msra.mxu0 0.0
        %753 = vmatprep.subr.mxu0 0.0
        %754 = vmatpush1.msra.mxu0 0.0
        %755 = vmatprep.subr.mxu0 0.0
        %756 = vmatpush1.msra.mxu0 0.0
        %757 = vmatprep.subr.mxu0 0.0
        %758 = vmatpush1.msra.mxu0 0.0
        %759 = vmatprep.subr.mxu0 0.0
        %760 = vmatpush1.msra.mxu0 0.0
        %761 = vmatprep.subr.mxu0 0.0
        %762 = vmatpush1.msra.mxu0 0.0
        %763 = vmatprep.subr.mxu0 0.0
        %764 = vmatpush1.msra.mxu0 0.0
        %765 = vmatprep.subr.mxu0 0.0
        %766 = vmatpush1.msra.mxu0 0.0
        %767 = vmatprep.subr.mxu0 0.0
        %768 = vmatpush1.msra.mxu0 0.0
        %769 = vmatprep.subr.mxu0 0.0
        %770 = vmatpush1.msra.mxu0 0.0
        %771 = vmatprep.subr.mxu0 0.0
        %772 = vmatpush1.msra.mxu0 0.0
        %773 = vmatprep.subr.mxu0 0.0
        %774 = vmatpush1.msra.mxu0 0.0
        %775 = vmatprep.subr.mxu0 0.0
        %776 = vmatpush1.msra.mxu0 0.0
        %777 = vmatprep.subr.mxu0 0.0
        %778 = vmatpush1.msra.mxu0 0.0
        %779 = vmatprep.subr.mxu0 0.0
        %780 = vmatpush1.msra.mxu0 0.0
        %781 = vmatprep.subr.mxu0 0.0
        %782 = vmatpush1.msra.mxu0 0.0
        %783 = vmatprep.subr.mxu0 0.0
        %784 = vmatpush1.msra.mxu0 0.0
        %785 = vmatprep.subr.mxu0 0.0
        %786 = vmatpush1.msra.mxu0 0.0
        %787 = vmatprep.subr.mxu0 0.0
        %788 = vmatpush1.msra.mxu0 0.0
        %789 = vmatprep.subr.mxu0 0.0
        %790 = vmatpush1.msra.mxu0 0.0
        %791 = vmatprep.subr.mxu0 0.0
        %792 = vmatpush1.msra.mxu0 0.0
        %793 = vmatprep.subr.mxu0 0.0
        %794 = vmatpush1.msra.mxu0 0.0
        %795 = vmatprep.mubr.f32.mxu0 0.0
        %796 = vmatmul.mubr.f32.gmra.mrb[0].mxu0 %v726
        %v797 = vpop.f32.mrb[0].mxu0
        %v798 = vadd.f32 0.0, %v797
        %v799 = vpop.f32.mrb[0].mxu0
        %800 = vmatprep.mubr.f32.mxu0 0.0
        %801 = vmatmul.mubr.f32.gmra.mrb[0].mxu0 %v729
        %v802 = vpop.f32.mrb[0].mxu0
        %v803 = vadd.f32 0.0, %v802
        %v804 = vpop.f32.mrb[0].mxu0
        %805 = vdwg.mxu0
        %806 = vrot.lane.b32.xlu0 %v391, 112
        %v807 = vpop.permute.xlu0 %806
        %808 = vrot.lane.b32.xlu0 %v396, 112
        %v809 = vpop.permute.xlu0 %808
        %810 = vrot.lane.b32.xlu0 %v391, 80
        %v811 = vpop.permute.xlu0 %810
        %812 = vrot.lane.b32.xlu0 %v396, 80
        %v813 = vpop.permute.xlu0 %812
        %v814 = vsel %vm224, %v807, 0
        %v816 = vsel %vm224, %v809, 0
        %v818 = vsel %vm224, %v811, 0
        %v820 = vsel %vm224, %v813, 0
        %822 = vmatprep.subr.mxu0 0.0
        %823 = vmatpush1.xpose.msra.mxu0 %v818
        %824 = vmatprep.subr.mxu0 0.0
        %825 = vmatpush1.xpose.msra.mxu0 %v820
        %826 = vmatprep.subr.mxu0 0.0
        %827 = vmatpush1.xpose.msra.mxu0 0.0
        %828 = vmatprep.subr.mxu0 0.0
        %829 = vmatpush1.xpose.msra.mxu0 0.0
        %830 = vmatprep.subr.mxu0 0.0
        %831 = vmatpush1.xpose.msra.mxu0 0.0
        %832 = vmatprep.subr.mxu0 0.0
        %833 = vmatpush1.xpose.msra.mxu0 0.0
        %834 = vmatprep.subr.mxu0 0.0
        %835 = vmatpush1.xpose.msra.mxu0 0.0
        %836 = vmatprep.subr.mxu0 0.0
        %837 = vmatpush1.xpose.msra.mxu0 0.0
        %838 = vmatprep.subr.mxu0 0.0
        %839 = vmatpush1.xpose.msra.mxu0 0.0
        %840 = vmatprep.subr.mxu0 0.0
        %841 = vmatpush1.xpose.msra.mxu0 0.0
        %842 = vmatprep.subr.mxu0 0.0
        %843 = vmatpush1.xpose.msra.mxu0 0.0
        %844 = vmatprep.subr.mxu0 0.0
        %845 = vmatpush1.xpose.msra.mxu0 0.0
        %846 = vmatprep.subr.mxu0 0.0
        %847 = vmatpush1.xpose.msra.mxu0 0.0
        %848 = vmatprep.subr.mxu0 0.0
        %849 = vmatpush1.xpose.msra.mxu0 0.0
        %850 = vmatprep.subr.mxu0 0.0
        %851 = vmatpush1.xpose.msra.mxu0 0.0
        %852 = vmatprep.subr.mxu0 0.0
        %853 = vmatpush1.xpose.msra.mxu0 0.0
        %854 = vmatprep.subr.mxu0 0.0
        %855 = vmatpush1.xpose.msra.mxu0 0.0
        %856 = vmatprep.subr.mxu0 0.0
        %857 = vmatpush1.xpose.msra.mxu0 0.0
        %858 = vmatprep.subr.mxu0 0.0
        %859 = vmatpush1.xpose.msra.mxu0 0.0
        %860 = vmatprep.subr.mxu0 0.0
        %861 = vmatpush1.xpose.msra.mxu0 0.0
        %862 = vmatprep.subr.mxu0 0.0
        %863 = vmatpush1.xpose.msra.mxu0 0.0
        %864 = vmatprep.subr.mxu0 0.0
        %865 = vmatpush1.xpose.msra.mxu0 0.0
        %866 = vmatprep.subr.mxu0 0.0
        %867 = vmatpush1.xpose.msra.mxu0 0.0
        %868 = vmatprep.subr.mxu0 0.0
        %869 = vmatpush1.xpose.msra.mxu0 0.0
        %870 = vmatprep.subr.mxu0 0.0
        %871 = vmatpush1.xpose.msra.mxu0 0.0
        %872 = vmatprep.subr.mxu0 0.0
        %873 = vmatpush1.xpose.msra.mxu0 0.0
        %874 = vmatprep.subr.mxu0 0.0
        %875 = vmatpush1.xpose.msra.mxu0 0.0
        %876 = vmatprep.subr.mxu0 0.0
        %877 = vmatpush1.xpose.msra.mxu0 0.0
        %878 = vmatprep.subr.mxu0 0.0
        %879 = vmatpush1.xpose.msra.mxu0 0.0
        %880 = vmatprep.subr.mxu0 0.0
        %881 = vmatpush1.xpose.msra.mxu0 0.0
        %882 = vmatprep.subr.mxu0 0.0
        %883 = vmatpush1.xpose.msra.mxu0 0.0
        %884 = vmatprep.subr.mxu0 0.0
        %885 = vmatpush1.xpose.msra.mxu0 0.0
        %886 = vmatprep.mubr.f32.mxu0 0.0
        %887 = vmatmul.mubr.f32.gmra.mrb[0].mxu0 %v814
        %v888 = vpop.f32.mrb[0].mxu0
        %v889 = vadd.f32 0.0, %v888
        %v890 = vpop.f32.mrb[0].mxu0
        %891 = vmatprep.mubr.f32.mxu0 0.0
        %892 = vmatmul.mubr.f32.gmra.mrb[0].mxu0 %v816
        %v893 = vpop.f32.mrb[0].mxu0
        %v894 = vadd.f32 0.0, %v893
        %v895 = vpop.f32.mrb[0].mxu0
        %896 = vdwg.mxu0
        %v897 = vmul.f32 %v889, 0.35355338
        %v898 = vmul.f32 %v894, 0.35355338
        %v899 = vadd.f32 %v897, %v306
        %v900 = vadd.f32 %v898, %v307
        %v901 = vsel %vm492, %v899, -inf
        %902 = vmax.xlane.f32.xlu0 %v901
        %v903 = vpop.xlane.xlu0 %902
        %v904 = vsel %vm492, %v900, -inf
        %905 = vmax.xlane.f32.xlu0 %v904
        %v906 = vpop.xlane.xlu0 %905
        %v907 = vsub.f32 %v899, %v903
        %v908 = vsub.f32 %v900, %v906
        %v909 = vmul.f32 %v907, 1.442695
        %v910 = vpow.pop %v909
        %v911 = vmul.f32 %v908, 1.442695
        %v912 = vpow.pop %v911
        %v913 = vsel %vm492, %v910, 0.0
        %914 = vadd.xlane.f32.xlu0 %v913
        %v915 = vpop.xlane.xlu0 %914
        %v916 = vsel %vm492, %v912, 0.0
        %917 = vadd.xlane.f32.xlu0 %v916
        %v918 = vpop.xlane.xlu0 %917
        %v919 = vrcp.pop %v915
        %v920 = vrcp.pop %v918
        %v921 = vmul.f32 %v910, %v919
        %v922 = vmul.f32 %v912, %v920
        %923 = vrot.lane.b32.xlu0 %v391, 48
        %v924 = vpop.permute.xlu0 %923
        %925 = vrot.lane.b32.xlu0 %v396, 48
        %v926 = vpop.permute.xlu0 %925
        %v930 = vsel %vm492, %v921, 0
        %v933 = vsel %vm492, %v922, 0
        %935 = vmatprep.subr.mxu0 0.0
        %936 = vmatpush1.msra.mxu0 %v924
        %937 = vmatprep.subr.mxu0 0.0
        %938 = vmatpush1.msra.mxu0 %v926
        %939 = vmatprep.subr.mxu0 0.0
        %940 = vmatpush1.msra.mxu0 0.0
        %941 = vmatprep.subr.mxu0 0.0
        %942 = vmatpush1.msra.mxu0 0.0
        %943 = vmatprep.subr.mxu0 0.0
        %944 = vmatpush1.msra.mxu0 0.0
        %945 = vmatprep.subr.mxu0 0.0
        %946 = vmatpush1.msra.mxu0 0.0
        %947 = vmatprep.subr.mxu0 0.0
        %948 = vmatpush1.msra.mxu0 0.0
        %949 = vmatprep.subr.mxu0 0.0
        %950 = vmatpush1.msra.mxu0 0.0
        %951 = vmatprep.subr.mxu0 0.0
        %952 = vmatpush1.msra.mxu0 0.0
        %953 = vmatprep.subr.mxu0 0.0
        %954 = vmatpush1.msra.mxu0 0.0
        %955 = vmatprep.subr.mxu0 0.0
        %956 = vmatpush1.msra.mxu0 0.0
        %957 = vmatprep.subr.mxu0 0.0
        %958 = vmatpush1.msra.mxu0 0.0
        %959 = vmatprep.subr.mxu0 0.0
        %960 = vmatpush1.msra.mxu0 0.0
        %961 = vmatprep.subr.mxu0 0.0
        %962 = vmatpush1.msra.mxu0 0.0
        %963 = vmatprep.subr.mxu0 0.0
        %964 = vmatpush1.msra.mxu0 0.0
        %965 = vmatprep.subr.mxu0 0.0
        %966 = vmatpush1.msra.mxu0 0.0
        %967 = vmatprep.subr.mxu0 0.0
        %968 = vmatpush1.msra.mxu0 0.0
        %969 = vmatprep.subr.mxu0 0.0
        %970 = vmatpush1.msra.mxu0 0.0
        %971 = vmatprep.subr.mxu0 0.0
        %972 = vmatpush1.msra.mxu0 0.0
        %973 = vmatprep.subr.mxu0 0.0
        %974 = vmatpush1.msra.mxu0 0.0
        %975 = vmatprep.subr.mxu0 0.0
        %976 = vmatpush1.msra.mxu0 0.0
        %977 = vmatprep.subr.mxu0 0.0
        %978 = vmatpush1.msra.mxu0 0.0
        %979 = vmatprep.subr.mxu0 0.0
        %980 = vmatpush1.msra.mxu0 0.0
        %981 = vmatprep.subr.mxu0 0.0
        %982 = vmatpush1.msra.mxu0 0.0
        %983 = vmatprep.subr.mxu0 0.0
        %984 = vmatpush1.msra.mxu0 0.0
        %985 = vmatprep.subr.mxu0 0.0
        %986 = vmatpush1.msra.mxu0 0.0
        %987 = vmatprep.subr.mxu0 0.0
        %988 = vmatpush1.msra.mxu0 0.0
        %989 = vmatprep.subr.mxu0 0.0
        %990 = vmatpush1.msra.mxu0 0.0
        %991 = vmatprep.subr.mxu0 0.0
        %992 = vmatpush1.msra.mxu0 0.0
        %993 = vmatprep.subr.mxu0 0.0
        %994 = vmatpush1.msra.mxu0 0.0
        %995 = vmatprep.subr.mxu0 0.0
        %996 = vmatpush1.msra.mxu0 0.0
        %997 = vmatprep.subr.mxu0 0.0
        %998 = vmatpush1.msra.mxu0 0.0
        %999 = vmatprep.mubr.f32.mxu0 0.0
        %1000 = vmatmul.mubr.f32.gmra.mrb[0].mxu0 %v930
        %v1001 = vpop.f32.mrb[0].mxu0
        %v1002 = vadd.f32 0.0, %v1001
        %v1003 = vpop.f32.mrb[0].mxu0
        %1004 = vmatprep.mubr.f32.mxu0 0.0
        %1005 = vmatmul.mubr.f32.gmra.mrb[0].mxu0 %v933
        %v1006 = vpop.f32.mrb[0].mxu0
        %v1007 = vadd.f32 0.0, %v1006
        %v1008 = vpop.f32.mrb[0].mxu0
        %1009 = vdwg.mxu0
        %1010 = vrot.lane.b32.xlu0 %v391, 104
        %v1011 = vpop.permute.xlu0 %1010
        %1012 = vrot.lane.b32.xlu0 %v396, 104
        %v1013 = vpop.permute.xlu0 %1012
        %1014 = vrot.lane.b32.xlu0 %v391, 72
        %v1015 = vpop.permute.xlu0 %1014
        %1016 = vrot.lane.b32.xlu0 %v396, 72
        %v1017 = vpop.permute.xlu0 %1016
        %v1018 = vsel %vm224, %v1011, 0
        %v1020 = vsel %vm224, %v1013, 0
        %v1022 = vsel %vm224, %v1015, 0
        %v1024 = vsel %vm224, %v1017, 0
        %1026 = vmatprep.subr.mxu0 0.0
        %1027 = vmatpush1.xpose.msra.mxu0 %v1022
        %1028 = vmatprep.subr.mxu0 0.0
        %1029 = vmatpush1.xpose.msra.mxu0 %v1024
        %1030 = vmatprep.subr.mxu0 0.0
        %1031 = vmatpush1.xpose.msra.mxu0 0.0
        %1032 = vmatprep.subr.mxu0 0.0
        %1033 = vmatpush1.xpose.msra.mxu0 0.0
        %1034 = vmatprep.subr.mxu0 0.0
        %1035 = vmatpush1.xpose.msra.mxu0 0.0
        %1036 = vmatprep.subr.mxu0 0.0
        %1037 = vmatpush1.xpose.msra.mxu0 0.0
        %1038 = vmatprep.subr.mxu0 0.0
        %1039 = vmatpush1.xpose.msra.mxu0 0.0
        %1040 = vmatprep.subr.mxu0 0.0
        %1041 = vmatpush1.xpose.msra.mxu0 0.0
        %1042 = vmatprep.subr.mxu0 0.0
        %1043 = vmatpush1.xpose.msra.mxu0 0.0
        %1044 = vmatprep.subr.mxu0 0.0
        %1045 = vmatpush1.xpose.msra.mxu0 0.0
        %1046 = vmatprep.subr.mxu0 0.0
        %1047 = vmatpush1.xpose.msra.mxu0 0.0
        %1048 = vmatprep.subr.mxu0 0.0
        %1049 = vmatpush1.xpose.msra.mxu0 0.0
        %1050 = vmatprep.subr.mxu0 0.0
        %1051 = vmatpush1.xpose.msra.mxu0 0.0
        %1052 = vmatprep.subr.mxu0 0.0
        %1053 = vmatpush1.xpose.msra.mxu0 0.0
        %1054 = vmatprep.subr.mxu0 0.0
        %1055 = vmatpush1.xpose.msra.mxu0 0.0
        %1056 = vmatprep.subr.mxu0 0.0
        %1057 = vmatpush1.xpose.msra.mxu0 0.0
        %1058 = vmatprep.subr.mxu0 0.0
        %1059 = vmatpush1.xpose.msra.mxu0 0.0
        %1060 = vmatprep.subr.mxu0 0.0
        %1061 = vmatpush1.xpose.msra.mxu0 0.0
        %1062 = vmatprep.subr.mxu0 0.0
        %1063 = vmatpush1.xpose.msra.mxu0 0.0
        %1064 = vmatprep.subr.mxu0 0.0
        %1065 = vmatpush1.xpose.msra.mxu0 0.0
        %1066 = vmatprep.subr.mxu0 0.0
        %1067 = vmatpush1.xpose.msra.mxu0 0.0
        %1068 = vmatprep.subr.mxu0 0.0
        %1069 = vmatpush1.xpose.msra.mxu0 0.0
        %1070 = vmatprep.subr.mxu0 0.0
        %1071 = vmatpush1.xpose.msra.mxu0 0.0
        %1072 = vmatprep.subr.mxu0 0.0
        %1073 = vmatpush1.xpose.msra.mxu0 0.0
        %1074 = vmatprep.subr.mxu0 0.0
        %1075 = vmatpush1.xpose.msra.mxu0 0.0
        %1076 = vmatprep.subr.mxu0 0.0
        %1077 = vmatpush1.xpose.msra.mxu0 0.0
        %1078 = vmatprep.subr.mxu0 0.0
        %1079 = vmatpush1.xpose.msra.mxu0 0.0
        %1080 = vmatprep.subr.mxu0 0.0
        %1081 = vmatpush1.xpose.msra.mxu0 0.0
        %1082 = vmatprep.subr.mxu0 0.0
        %1083 = vmatpush1.xpose.msra.mxu0 0.0
        %1084 = vmatprep.subr.mxu0 0.0
        %1085 = vmatpush1.xpose.msra.mxu0 0.0
        %1086 = vmatprep.subr.mxu0 0.0
        %1087 = vmatpush1.xpose.msra.mxu0 0.0
        %1088 = vmatprep.subr.mxu0 0.0
        %1089 = vmatpush1.xpose.msra.mxu0 0.0
        %1090 = vmatprep.mubr.f32.mxu0 0.0
        %1091 = vmatmul.mubr.f32.gmra.mrb[0].mxu0 %v1018
        %v1092 = vpop.f32.mrb[0].mxu0
        %v1093 = vadd.f32 0.0, %v1092
        %v1094 = vpop.f32.mrb[0].mxu0
        %1095 = vmatprep.mubr.f32.mxu0 0.0
        %1096 = vmatmul.mubr.f32.gmra.mrb[0].mxu0 %v1020
        %v1097 = vpop.f32.mrb[0].mxu0
        %v1098 = vadd.f32 0.0, %v1097
        %v1099 = vpop.f32.mrb[0].mxu0
        %1100 = vdwg.mxu0
        %v1101 = vmul.f32 %v1093, 0.35355338
        %v1102 = vmul.f32 %v1098, 0.35355338
        %v1103 = vadd.f32 %v1101, %v306
        %v1104 = vadd.f32 %v1102, %v307
        %v1105 = vsel %vm492, %v1103, -inf
        %1106 = vmax.xlane.f32.xlu0 %v1105
        %v1107 = vpop.xlane.xlu0 %1106
        %v1108 = vsel %vm492, %v1104, -inf
        %1109 = vmax.xlane.f32.xlu0 %v1108
        %v1110 = vpop.xlane.xlu0 %1109
        %v1111 = vsub.f32 %v1103, %v1107
        %v1112 = vsub.f32 %v1104, %v1110
        %v1113 = vmul.f32 %v1111, 1.442695
        %v1114 = vpow.pop %v1113
        %v1115 = vmul.f32 %v1112, 1.442695
        %v1116 = vpow.pop %v1115
        %v1117 = vsel %vm492, %v1114, 0.0
        %1118 = vadd.xlane.f32.xlu0 %v1117
        %v1119 = vpop.xlane.xlu0 %1118
        %v1120 = vsel %vm492, %v1116, 0.0
        %1121 = vadd.xlane.f32.xlu0 %v1120
        %v1122 = vpop.xlane.xlu0 %1121
        %v1123 = vrcp.pop %v1119
        %v1124 = vrcp.pop %v1122
        %v1125 = vmul.f32 %v1114, %v1123
        %v1126 = vmul.f32 %v1116, %v1124
        %1127 = vrot.lane.b32.xlu0 %v391, 40
        %v1128 = vpop.permute.xlu0 %1127
        %1129 = vrot.lane.b32.xlu0 %v396, 40
        %v1130 = vpop.permute.xlu0 %1129
        %v1134 = vsel %vm492, %v1125, 0
        %v1137 = vsel %vm492, %v1126, 0
        %1139 = vmatprep.subr.mxu0 0.0
        %1140 = vmatpush1.msra.mxu0 %v1128
        %1141 = vmatprep.subr.mxu0 0.0
        %1142 = vmatpush1.msra.mxu0 %v1130
        %1143 = vmatprep.subr.mxu0 0.0
        %1144 = vmatpush1.msra.mxu0 0.0
        %1145 = vmatprep.subr.mxu0 0.0
        %1146 = vmatpush1.msra.mxu0 0.0
        %1147 = vmatprep.subr.mxu0 0.0
        %1148 = vmatpush1.msra.mxu0 0.0
        %1149 = vmatprep.subr.mxu0 0.0
        %1150 = vmatpush1.msra.mxu0 0.0
        %1151 = vmatprep.subr.mxu0 0.0
        %1152 = vmatpush1.msra.mxu0 0.0
        %1153 = vmatprep.subr.mxu0 0.0
        %1154 = vmatpush1.msra.mxu0 0.0
        %1155 = vmatprep.subr.mxu0 0.0
        %1156 = vmatpush1.msra.mxu0 0.0
        %1157 = vmatprep.subr.mxu0 0.0
        %1158 = vmatpush1.msra.mxu0 0.0
        %1159 = vmatprep.subr.mxu0 0.0
        %1160 = vmatpush1.msra.mxu0 0.0
        %1161 = vmatprep.subr.mxu0 0.0
        %1162 = vmatpush1.msra.mxu0 0.0
        %1163 = vmatprep.subr.mxu0 0.0
        %1164 = vmatpush1.msra.mxu0 0.0
        %1165 = vmatprep.subr.mxu0 0.0
        %1166 = vmatpush1.msra.mxu0 0.0
        %1167 = vmatprep.subr.mxu0 0.0
        %1168 = vmatpush1.msra.mxu0 0.0
        %1169 = vmatprep.subr.mxu0 0.0
        %1170 = vmatpush1.msra.mxu0 0.0
        %1171 = vmatprep.subr.mxu0 0.0
        %1172 = vmatpush1.msra.mxu0 0.0
        %1173 = vmatprep.subr.mxu0 0.0
        %1174 = vmatpush1.msra.mxu0 0.0
        %1175 = vmatprep.subr.mxu0 0.0
        %1176 = vmatpush1.msra.mxu0 0.0
        %1177 = vmatprep.subr.mxu0 0.0
        %1178 = vmatpush1.msra.mxu0 0.0
        %1179 = vmatprep.subr.mxu0 0.0
        %1180 = vmatpush1.msra.mxu0 0.0
        %1181 = vmatprep.subr.mxu0 0.0
        %1182 = vmatpush1.msra.mxu0 0.0
        %1183 = vmatprep.subr.mxu0 0.0
        %1184 = vmatpush1.msra.mxu0 0.0
        %1185 = vmatprep.subr.mxu0 0.0
        %1186 = vmatpush1.msra.mxu0 0.0
        %1187 = vmatprep.subr.mxu0 0.0
        %1188 = vmatpush1.msra.mxu0 0.0
        %1189 = vmatprep.subr.mxu0 0.0
        %1190 = vmatpush1.msra.mxu0 0.0
        %1191 = vmatprep.subr.mxu0 0.0
        %1192 = vmatpush1.msra.mxu0 0.0
        %1193 = vmatprep.subr.mxu0 0.0
        %1194 = vmatpush1.msra.mxu0 0.0
        %1195 = vmatprep.subr.mxu0 0.0
        %1196 = vmatpush1.msra.mxu0 0.0
        %1197 = vmatprep.subr.mxu0 0.0
        %1198 = vmatpush1.msra.mxu0 0.0
        %1199 = vmatprep.subr.mxu0 0.0
        %1200 = vmatpush1.msra.mxu0 0.0
        %1201 = vmatprep.subr.mxu0 0.0
        %1202 = vmatpush1.msra.mxu0 0.0
        %1203 = vmatprep.mubr.f32.mxu0 0.0
        %1204 = vmatmul.mubr.f32.gmra.mrb[0].mxu0 %v1134
        %v1205 = vpop.f32.mrb[0].mxu0
        %v1206 = vadd.f32 0.0, %v1205
        %v1207 = vpop.f32.mrb[0].mxu0
        %1208 = vmatprep.mubr.f32.mxu0 0.0
        %1209 = vmatmul.mubr.f32.gmra.mrb[0].mxu0 %v1137
        %v1210 = vpop.f32.mrb[0].mxu0
        %v1211 = vadd.f32 0.0, %v1210
        %v1212 = vpop.f32.mrb[0].mxu0
        %1213 = vdwg.mxu0
        %1216 = vrot.lane.b32.xlu0 %v798, 8
        %v1217 = vpop.permute.xlu0 %1216
        %1218 = vrot.lane.b32.xlu0 %v803, 8
        %v1219 = vpop.permute.xlu0 %1218
        %1224 = vrot.lane.b32.xlu0 %v1002, 16
        %v1225 = vpop.permute.xlu0 %1224
        %1226 = vrot.lane.b32.xlu0 %v1007, 16
        %v1227 = vpop.permute.xlu0 %1226
        %1232 = vrot.lane.b32.xlu0 %v1206, 24
        %v1233 = vpop.permute.xlu0 %1232
        %1234 = vrot.lane.b32.xlu0 %v1211, 24
        %v1235 = vpop.permute.xlu0 %1234
        %v1238 = vsel %vm224, %v594, %v1217
        %v1239 = vsel %vm224, %v599, %v1219
        %v1240 = vsel %vm492, %v1238, %v1225
        %v1241 = vsel %vm492, %v1239, %v1227
        %vm1242 = vcmask 195584
        %v1243 = vsel %vm1242, %v1240, %v1233
        %v1244 = vsel %vm1242, %v1241, %v1235
        %v1245 = vld [vmem:[#allocation5 + $0x60] sm:$0xff]
        %v1246 = vld [vmem:[#allocation5 + $0x68] sm:$0xff]
        %v1247 = vld [vmem:[#allocation5 + $0x70] sm:$0xff]
        %v1248 = vld [vmem:[#allocation5 + $0x78] sm:$0xff]
        %v1249 = vld [vmem:[#allocation5 + $0x80] sm:$0x1]
        %v1250 = vlaneseq
        %v1251 = vshrl.u32 %v1250, 7
        %v1252 = vsub.s32 0, %v1251
        %v1253 = vrot.slane %v1249, %v1252
        %v1255 = vsel %vm317, %v1243, 0
        %v1258 = vsel %vm317, %v1244, 0
        %1260 = vmatprep.subr.mxu0 0.0
        %1261 = vmatpush1.msra.mxu0 %v1245
        %1262 = vmatprep.subr.mxu0 0.0
        %1263 = vmatpush1.msra.mxu0 %v1246
        %1264 = vmatprep.subr.mxu0 0.0
        %1265 = vmatpush1.msra.mxu0 %v1247
        %1266 = vmatprep.subr.mxu0 0.0
        %1267 = vmatpush1.msra.mxu0 %v1248
        %1268 = vmatprep.subr.mxu0 0.0
        %1269 = vmatpush1.msra.mxu0 0.0
        %1270 = vmatprep.subr.mxu0 0.0
        %1271 = vmatpush1.msra.mxu0 0.0
        %1272 = vmatprep.subr.mxu0 0.0
        %1273 = vmatpush1.msra.mxu0 0.0
        %1274 = vmatprep.subr.mxu0 0.0
        %1275 = vmatpush1.msra.mxu0 0.0
        %1276 = vmatprep.subr.mxu0 0.0
        %1277 = vmatpush1.msra.mxu0 0.0
        %1278 = vmatprep.subr.mxu0 0.0
        %1279 = vmatpush1.msra.mxu0 0.0
        %1280 = vmatprep.subr.mxu0 0.0
        %1281 = vmatpush1.msra.mxu0 0.0
        %1282 = vmatprep.subr.mxu0 0.0
        %1283 = vmatpush1.msra.mxu0 0.0
        %1284 = vmatprep.subr.mxu0 0.0
        %1285 = vmatpush1.msra.mxu0 0.0
        %1286 = vmatprep.subr.mxu0 0.0
        %1287 = vmatpush1.msra.mxu0 0.0
        %1288 = vmatprep.subr.mxu0 0.0
        %1289 = vmatpush1.msra.mxu0 0.0
        %1290 = vmatprep.subr.mxu0 0.0
        %1291 = vmatpush1.msra.mxu0 0.0
        %1292 = vmatprep.subr.mxu0 0.0
        %1293 = vmatpush1.msra.mxu0 0.0
        %1294 = vmatprep.subr.mxu0 0.0
        %1295 = vmatpush1.msra.mxu0 0.0
        %1296 = vmatprep.subr.mxu0 0.0
        %1297 = vmatpush1.msra.mxu0 0.0
        %1298 = vmatprep.subr.mxu0 0.0
        %1299 = vmatpush1.msra.mxu0 0.0
        %1300 = vmatprep.subr.mxu0 0.0
        %1301 = vmatpush1.msra.mxu0 0.0
        %1302 = vmatprep.subr.mxu0 0.0
        %1303 = vmatpush1.msra.mxu0 0.0
        %1304 = vmatprep.subr.mxu0 0.0
        %1305 = vmatpush1.msra.mxu0 0.0
        %1306 = vmatprep.subr.mxu0 0.0
        %1307 = vmatpush1.msra.mxu0 0.0
        %1308 = vmatprep.subr.mxu0 0.0
        %1309 = vmatpush1.msra.mxu0 0.0
        %1310 = vmatprep.subr.mxu0 0.0
        %1311 = vmatpush1.msra.mxu0 0.0
        %1312 = vmatprep.subr.mxu0 0.0
        %1313 = vmatpush1.msra.mxu0 0.0
        %1314 = vmatprep.subr.mxu0 0.0
        %1315 = vmatpush1.msra.mxu0 0.0
        %1316 = vmatprep.subr.mxu0 0.0
        %1317 = vmatpush1.msra.mxu0 0.0
        %1318 = vmatprep.subr.mxu0 0.0
        %1319 = vmatpush1.msra.mxu0 0.0
        %1320 = vmatprep.subr.mxu0 0.0
        %1321 = vmatpush1.msra.mxu0 0.0
        %1322 = vmatprep.subr.mxu0 0.0
        %1323 = vmatpush1.msra.mxu0 0.0
        %1324 = vmatprep.mubr.f32.mxu0 0.0
        %1325 = vmatmul.mubr.f32.gmra.mrb[0].mxu0 %v1255
        %v1326 = vpop.f32.mrb[0].mxu0
        %v1327 = vadd.f32 %v1253, %v1326
        %v1328 = vpop.f32.mrb[0].mxu0
        %1329 = vmatprep.mubr.f32.mxu0 0.0
        %1330 = vmatmul.mubr.f32.gmra.mrb[0].mxu0 %v1258
        %v1331 = vpop.f32.mrb[0].mxu0
        %v1332 = vadd.f32 %v1253, %v1331
        %v1333 = vpop.f32.mrb[0].mxu0
        %1334 = vdwg.mxu0
        %v1335 = vadd.f32 %v298, %v1327
        %v1336 = vadd.f32 %v303, %v1332
        %v1337 = vsel %vm317, %v1335, 0.0
        %1338 = vadd.xlane.f32.xlu0 %v1337
        %v1339 = vpop.xlane.xlu0 %1338
        %v1340 = vsel %vm317, %v1336, 0.0
        %1341 = vadd.xlane.f32.xlu0 %v1340
        %v1342 = vpop.xlane.xlu0 %1341
        %v1343 = vrcp.pop 32.0
        %v1344 = vmul.f32 %v1339, %v1343
        %v1345 = vmul.f32 %v1342, %v1343
        %v1346 = vsub.f32 %v1335, %v1344
        %v1347 = vsub.f32 %v1336, %v1345
        %v1348 = vmul.f32 %v1346, %v1346
        %v1349 = vmul.f32 %v1347, %v1347
        %v1350 = vsel %vm317, %v1348, 0.0
        %1351 = vadd.xlane.f32.xlu0 %v1350
        %v1352 = vpop.xlane.xlu0 %1351
        %v1353 = vsel %vm317, %v1349, 0.0
        %1354 = vadd.xlane.f32.xlu0 %v1353
        %v1355 = vpop.xlane.xlu0 %1354
        %v1356 = vmul.f32 %v1352, %v1343
        %v1357 = vmul.f32 %v1355, %v1343
        %v1358 = vadd.f32 %v1356, 1e-05
        %v1359 = vadd.f32 %v1357, 1e-05
        %v1360 = vrsqrt.pop %v1358
        %v1361 = vrsqrt.pop %v1359
        %v1362 = vmul.f32 %v1346, %v1360
        %v1363 = vmul.f32 %v1347, %v1361
        %v1364 = vld [vmem:[#allocation5 + $0x88] sm:$0x1]
        %v1365 = vlaneseq
        %v1366 = vshrl.u32 %v1365, 7
        %v1367 = vsub.s32 0, %v1366
        %v1368 = vrot.slane %v1364, %v1367
        %v1369 = vmul.f32 %v1362, %v1368
        %v1370 = vmul.f32 %v1363, %v1368
        %v1371 = vld [vmem:[#allocation5 + $0x90] sm:$0x1]
        %v1372 = vlaneseq
        %v1373 = vshrl.u32 %v1372, 7
        %v1374 = vsub.s32 0, %v1373
        %v1375 = vrot.slane %v1371, %v1374
        %v1376 = vadd.f32 %v1369, %v1375
        %v1377 = vadd.f32 %v1370, %v1375
        %v1378 = vld [vmem:[#allocation5 + $0x98] sm:$0xff]
        %v1379 = vld [vmem:[#allocation5 + $0xa0] sm:$0xff]
        %v1380 = vld [vmem:[#allocation5 + $0xa8] sm:$0xff]
        %v1381 = vld [vmem:[#allocation5 + $0xb0] sm:$0xff]
        %v1382 = vld [vmem:[#allocation5 + $0xb8] sm:$0x1]
        %v1383 = vlaneseq
        %v1384 = vshrl.u32 %v1383, 7
        %v1385 = vsub.s32 0, %v1384
        %v1386 = vrot.slane %v1382, %v1385
        %v1388 = vsel %vm317, %v1376, 0
        %v1391 = vsel %vm317, %v1377, 0
        %1393 = vmatprep.subr.mxu0 0.0
        %1394 = vmatpush1.msra.mxu0 %v1378
        %1395 = vmatprep.subr.mxu0 0.0
        %1396 = vmatpush1.msra.mxu0 %v1379
        %1397 = vmatprep.subr.mxu0 0.0
        %1398 = vmatpush1.msra.mxu0 %v1380
        %1399 = vmatprep.subr.mxu0 0.0
        %1400 = vmatpush1.msra.mxu0 %v1381
        %1401 = vmatprep.subr.mxu0 0.0
        %1402 = vmatpush1.msra.mxu0 0.0
        %1403 = vmatprep.subr.mxu0 0.0
        %1404 = vmatpush1.msra.mxu0 0.0
        %1405 = vmatprep.subr.mxu0 0.0
        %1406 = vmatpush1.msra.mxu0 0.0
        %1407 = vmatprep.subr.mxu0 0.0
        %1408 = vmatpush1.msra.mxu0 0.0
        %1409 = vmatprep.subr.mxu0 0.0
        %1410 = vmatpush1.msra.mxu0 0.0
        %1411 = vmatprep.subr.mxu0 0.0
        %1412 = vmatpush1.msra.mxu0 0.0
        %1413 = vmatprep.subr.mxu0 0.0
        %1414 = vmatpush1.msra.mxu0 0.0
        %1415 = vmatprep.subr.mxu0 0.0
        %1416 = vmatpush1.msra.mxu0 0.0
        %1417 = vmatprep.subr.mxu0 0.0
        %1418 = vmatpush1.msra.mxu0 0.0
        %1419 = vmatprep.subr.mxu0 0.0
        %1420 = vmatpush1.msra.mxu0 0.0
        %1421 = vmatprep.subr.mxu0 0.0
        %1422 = vmatpush1.msra.mxu0 0.0
        %1423 = vmatprep.subr.mxu0 0.0
        %1424 = vmatpush1.msra.mxu0 0.0
        %1425 = vmatprep.subr.mxu0 0.0
        %1426 = vmatpush1.msra.mxu0 0.0
        %1427 = vmatprep.subr.mxu0 0.0
        %1428 = vmatpush1.msra.mxu0 0.0
        %1429 = vmatprep.subr.mxu0 0.0
        %1430 = vmatpush1.msra.mxu0 0.0
        %1431 = vmatprep.subr.mxu0 0.0
        %1432 = vmatpush1.msra.mxu0 0.0
        %1433 = vmatprep.subr.mxu0 0.0
        %1434 = vmatpush1.msra.mxu0 0.0
        %1435 = vmatprep.subr.mxu0 0.0
        %1436 = vmatpush1.msra.mxu0 0.0
        %1437 = vmatprep.subr.mxu0 0.0
        %1438 = vmatpush1.msra.mxu0 0.0
        %1439 = vmatprep.subr.mxu0 0.0
        %1440 = vmatpush1.msra.mxu0 0.0
        %1441 = vmatprep.subr.mxu0 0.0
        %1442 = vmatpush1.msra.mxu0 0.0
        %1443 = vmatprep.subr.mxu0 0.0
        %1444 = vmatpush1.msra.mxu0 0.0
        %1445 = vmatprep.subr.mxu0 0.0
        %1446 = vmatpush1.msra.mxu0 0.0
        %1447 = vmatprep.subr.mxu0 0.0
        %1448 = vmatpush1.msra.mxu0 0.0
        %1449 = vmatprep.subr.mxu0 0.0
        %1450 = vmatpush1.msra.mxu0 0.0
        %1451 = vmatprep.subr.mxu0 0.0
        %1452 = vmatpush1.msra.mxu0 0.0
        %1453 = vmatprep.subr.mxu0 0.0
        %1454 = vmatpush1.msra.mxu0 0.0
        %1455 = vmatprep.subr.mxu0 0.0
        %1456 = vmatpush1.msra.mxu0 0.0
        %1457 = vmatprep.mubr.f32.mxu0 0.0
        %1458 = vmatmul.mubr.f32.gmra.mrb[0].mxu0 %v1388
        %v1459 = vpop.f32.mrb[0].mxu0
        %v1460 = vadd.f32 %v1386, %v1459
        %v1461 = vpop.f32.mrb[0].mxu0
        %1462 = vmatprep.mubr.f32.mxu0 0.0
        %1463 = vmatmul.mubr.f32.gmra.mrb[0].mxu0 %v1391
        %v1464 = vpop.f32.mrb[0].mxu0
        %v1465 = vadd.f32 %v1386, %v1464
        %v1466 = vpop.f32.mrb[0].mxu0
        %1467 = vdwg.mxu0
        %v1468 = vmax.f32 %v1460, 0.0
        %v1469 = vmax.f32 %v1465, 0.0
        %v1470 = vld [vmem:[#allocation5 + $0xc0] sm:$0xff]
        %v1471 = vld [vmem:[#allocation5 + $0xc8] sm:$0xff]
        %v1472 = vld [vmem:[#allocation5 + $0xd0] sm:$0xff]
        %v1473 = vld [vmem:[#allocation5 + $0xd8] sm:$0xff]
        %v1474 = vld [vmem:[#allocation5 + $0xe0] sm:$0xff]
        %v1475 = vld [vmem:[#allocation5 + $0xe8] sm:$0xff]
        %v1476 = vld [vmem:[#allocation5 + $0xf0] sm:$0xff]
        %v1477 = vld [vmem:[#allocation5 + $0xf8] sm:$0xff]
        %v1478 = vld [vmem:[#allocation5 + $0x100] sm:$0x1]
        %v1479 = vlaneseq
        %v1480 = vshrl.u32 %v1479, 7
        %v1481 = vsub.s32 0, %v1480
        %v1482 = vrot.slane %v1478, %v1481
        %vm1483 = vcmask 523264
        %v1485 = vsel %vm1483, %v1468, 0
        %v1488 = vsel %vm1483, %v1469, 0
        %1490 = vmatprep.subr.mxu0 0.0
        %1491 = vmatpush1.msra.mxu0 %v1470
        %1492 = vmatprep.subr.mxu0 0.0
        %1493 = vmatpush1.msra.mxu0 %v1471
        %1494 = vmatprep.subr.mxu0 0.0
        %1495 = vmatpush1.msra.mxu0 %v1472
        %1496 = vmatprep.subr.mxu0 0.0
        %1497 = vmatpush1.msra.mxu0 %v1473
        %1498 = vmatprep.subr.mxu0 0.0
        %1499 = vmatpush1.msra.mxu0 %v1474
        %1500 = vmatprep.subr.mxu0 0.0
        %1501 = vmatpush1.msra.mxu0 %v1475
        %1502 = vmatprep.subr.mxu0 0.0
        %1503 = vmatpush1.msra.mxu0 %v1476
        %1504 = vmatprep.subr.mxu0 0.0
        %1505 = vmatpush1.msra.mxu0 %v1477
        %1506 = vmatprep.subr.mxu0 0.0
        %1507 = vmatpush1.msra.mxu0 0.0
        %1508 = vmatprep.subr.mxu0 0.0
        %1509 = vmatpush1.msra.mxu0 0.0
        %1510 = vmatprep.subr.mxu0 0.0
        %1511 = vmatpush1.msra.mxu0 0.0
        %1512 = vmatprep.subr.mxu0 0.0
        %1513 = vmatpush1.msra.mxu0 0.0
        %1514 = vmatprep.subr.mxu0 0.0
        %1515 = vmatpush1.msra.mxu0 0.0
        %1516 = vmatprep.subr.mxu0 0.0
        %1517 = vmatpush1.msra.mxu0 0.0
        %1518 = vmatprep.subr.mxu0 0.0
        %1519 = vmatpush1.msra.mxu0 0.0
        %1520 = vmatprep.subr.mxu0 0.0
        %1521 = vmatpush1.msra.mxu0 0.0
        %1522 = vmatprep.subr.mxu0 0.0
        %1523 = vmatpush1.msra.mxu0 0.0
        %1524 = vmatprep.subr.mxu0 0.0
        %1525 = vmatpush1.msra.mxu0 0.0
        %1526 = vmatprep.subr.mxu0 0.0
        %1527 = vmatpush1.msra.mxu0 0.0
        %1528 = vmatprep.subr.mxu0 0.0
        %1529 = vmatpush1.msra.mxu0 0.0
        %1530 = vmatprep.subr.mxu0 0.0
        %1531 = vmatpush1.msra.mxu0 0.0
        %1532 = vmatprep.subr.mxu0 0.0
        %1533 = vmatpush1.msra.mxu0 0.0
        %1534 = vmatprep.subr.mxu0 0.0
        %1535 = vmatpush1.msra.mxu0 0.0
        %1536 = vmatprep.subr.mxu0 0.0
        %1537 = vmatpush1.msra.mxu0 0.0
        %1538 = vmatprep.subr.mxu0 0.0
        %1539 = vmatpush1.msra.mxu0 0.0
        %1540 = vmatprep.subr.mxu0 0.0
        %1541 = vmatpush1.msra.mxu0 0.0
        %1542 = vmatprep.subr.mxu0 0.0
        %1543 = vmatpush1.msra.mxu0 0.0
        %1544 = vmatprep.subr.mxu0 0.0
        %1545 = vmatpush1.msra.mxu0 0.0
        %1546 = vmatprep.subr.mxu0 0.0
        %1547 = vmatpush1.msra.mxu0 0.0
        %1548 = vmatprep.subr.mxu0 0.0
        %1549 = vmatpush1.msra.mxu0 0.0
        %1550 = vmatprep.subr.mxu0 0.0
        %1551 = vmatpush1.msra.mxu0 0.0
        %1552 = vmatprep.subr.mxu0 0.0
        %1553 = vmatpush1.msra.mxu0 0.0
        %1554 = vmatprep.mubr.f32.mxu0 0.0
        %1555 = vmatmul.mubr.f32.gmra.mrb[0].mxu0 %v1485
        %v1556 = vpop.f32.mrb[0].mxu0
        %v1557 = vadd.f32 %v1482, %v1556
        %v1558 = vpop.f32.mrb[0].mxu0
        %1559 = vmatprep.mubr.f32.mxu0 0.0
        %1560 = vmatmul.mubr.f32.gmra.mrb[0].mxu0 %v1488
        %v1561 = vpop.f32.mrb[0].mxu0
        %v1562 = vadd.f32 %v1482, %v1561
        %v1563 = vpop.f32.mrb[0].mxu0
        %1564 = vdwg.mxu0
        %v1565 = vadd.f32 %v1376, %v1557
        %v1566 = vadd.f32 %v1377, %v1562
        %v1567 = vsel %vm317, %v1565, 0.0
        %1568 = vadd.xlane.f32.xlu0 %v1567
        %v1569 = vpop.xlane.xlu0 %1568
        %v1570 = vsel %vm317, %v1566, 0.0
        %1571 = vadd.xlane.f32.xlu0 %v1570
        %v1572 = vpop.xlane.xlu0 %1571
        %v1573 = vmul.f32 %v1569, %v1343
        %v1574 = vmul.f32 %v1572, %v1343
        %v1575 = vsub.f32 %v1565, %v1573
        %v1576 = vsub.f32 %v1566, %v1574
        %v1577 = vmul.f32 %v1575, %v1575
        %v1578 = vmul.f32 %v1576, %v1576
        %v1579 = vsel %vm317, %v1577, 0.0
        %1580 = vadd.xlane.f32.xlu0 %v1579
        %v1581 = vpop.xlane.xlu0 %1580
        %v1582 = vsel %vm317, %v1578, 0.0
        %1583 = vadd.xlane.f32.xlu0 %v1582
        %v1584 = vpop.xlane.xlu0 %1583
        %v1585 = vmul.f32 %v1581, %v1343
        %v1586 = vmul.f32 %v1584, %v1343
        %v1587 = vadd.f32 %v1585, 1e-05
        %v1588 = vadd.f32 %v1586, 1e-05
        %v1589 = vrsqrt.pop %v1587
        %v1590 = vrsqrt.pop %v1588
        %v1591 = vmul.f32 %v1575, %v1589
        %v1592 = vmul.f32 %v1576, %v1590
        %v1593 = vld [vmem:[#allocation5 + $0x108] sm:$0x1]
        %v1594 = vlaneseq
        %v1595 = vshrl.u32 %v1594, 7
        %v1596 = vsub.s32 0, %v1595
        %v1597 = vrot.slane %v1593, %v1596
        %v1598 = vmul.f32 %v1591, %v1597
        %v1599 = vmul.f32 %v1592, %v1597
        %v1600 = vld [vmem:[#allocation5 + $0x110] sm:$0x1]
        %v1601 = vlaneseq
        %v1602 = vshrl.u32 %v1601, 7
        %v1603 = vsub.s32 0, %v1602
        %v1604 = vrot.slane %v1600, %v1603
        %v1605 = vadd.f32 %v1598, %v1604
        %v1606 = vadd.f32 %v1599, %v1604
        %v1607 = vld [vmem:[#allocation5 + $0x118] sm:$0xff]
        %v1608 = vld [vmem:[#allocation5 + $0x120] sm:$0xff]
        %v1609 = vld [vmem:[#allocation5 + $0x128] sm:$0xff]
        %v1610 = vld [vmem:[#allocation5 + $0x130] sm:$0xff]
        %v1611 = vld [vmem:[#allocation5 + $0x138] sm:$0x1]
        %v1612 = vlaneseq
        %v1613 = vshrl.u32 %v1612, 7
        %v1614 = vsub.s32 0, %v1613
        %v1615 = vrot.slane %v1611, %v1614
        %v1617 = vsel %vm317, %v1605, 0
        %v1620 = vsel %vm317, %v1606, 0
        %1622 = vmatprep.subr.mxu0 0.0
        %1623 = vmatpush1.msra.mxu0 %v1607
        %1624 = vmatprep.subr.mxu0 0.0
        %1625 = vmatpush1.msra.mxu0 %v1608
        %1626 = vmatprep.subr.mxu0 0.0
        %1627 = vmatpush1.msra.mxu0 %v1609
        %1628 = vmatprep.subr.mxu0 0.0
        %1629 = vmatpush1.msra.mxu0 %v1610
        %1630 = vmatprep.subr.mxu0 0.0
        %1631 = vmatpush1.msra.mxu0 0.0
        %1632 = vmatprep.subr.mxu0 0.0
        %1633 = vmatpush1.msra.mxu0 0.0
        %1634 = vmatprep.subr.mxu0 0.0
        %1635 = vmatpush1.msra.mxu0 0.0
        %1636 = vmatprep.subr.mxu0 0.0
        %1637 = vmatpush1.msra.mxu0 0.0
        %1638 = vmatprep.subr.mxu0 0.0
        %1639 = vmatpush1.msra.mxu0 0.0
        %1640 = vmatprep.subr.mxu0 0.0
        %1641 = vmatpush1.msra.mxu0 0.0
        %1642 = vmatprep.subr.mxu0 0.0
        %1643 = vmatpush1.msra.mxu0 0.0
        %1644 = vmatprep.subr.mxu0 0.0
        %1645 = vmatpush1.msra.mxu0 0.0
        %1646 = vmatprep.subr.mxu0 0.0
        %1647 = vmatpush1.msra.mxu0 0.0
        %1648 = vmatprep.subr.mxu0 0.0
        %1649 = vmatpush1.msra.mxu0 0.0
        %1650 = vmatprep.subr.mxu0 0.0
        %1651 = vmatpush1.msra.mxu0 0.0
        %1652 = vmatprep.subr.mxu0 0.0
        %1653 = vmatpush1.msra.mxu0 0.0
        %1654 = vmatprep.subr.mxu0 0.0
        %1655 = vmatpush1.msra.mxu0 0.0
        %1656 = vmatprep.subr.mxu0 0.0
        %1657 = vmatpush1.msra.mxu0 0.0
        %1658 = vmatprep.subr.mxu0 0.0
        %1659 = vmatpush1.msra.mxu0 0.0
        %1660 = vmatprep.subr.mxu0 0.0
        %1661 = vmatpush1.msra.mxu0 0.0
        %1662 = vmatprep.subr.mxu0 0.0
        %1663 = vmatpush1.msra.mxu0 0.0
        %1664 = vmatprep.subr.mxu0 0.0
        %1665 = vmatpush1.msra.mxu0 0.0
        %1666 = vmatprep.subr.mxu0 0.0
        %1667 = vmatpush1.msra.mxu0 0.0
        %1668 = vmatprep.subr.mxu0 0.0
        %1669 = vmatpush1.msra.mxu0 0.0
        %1670 = vmatprep.subr.mxu0 0.0
        %1671 = vmatpush1.msra.mxu0 0.0
        %1672 = vmatprep.subr.mxu0 0.0
        %1673 = vmatpush1.msra.mxu0 0.0
        %1674 = vmatprep.subr.mxu0 0.0
        %1675 = vmatpush1.msra.mxu0 0.0
        %1676 = vmatprep.subr.mxu0 0.0
        %1677 = vmatpush1.msra.mxu0 0.0
        %1678 = vmatprep.subr.mxu0 0.0
        %1679 = vmatpush1.msra.mxu0 0.0
        %1680 = vmatprep.subr.mxu0 0.0
        %1681 = vmatpush1.msra.mxu0 0.0
        %1682 = vmatprep.subr.mxu0 0.0
        %1683 = vmatpush1.msra.mxu0 0.0
        %1684 = vmatprep.subr.mxu0 0.0
        %1685 = vmatpush1.msra.mxu0 0.0
        %1686 = vmatprep.mubr.f32.mxu0 0.0
        %1687 = vmatmul.mubr.f32.gmra.mrb[0].mxu0 %v1617
        %v1688 = vpop.f32.mrb[0].mxu0
        %v1689 = vadd.f32 %v1615, %v1688
        %v1690 = vpop.f32.mrb[0].mxu0
        %1691 = vmatprep.mubr.f32.mxu0 0.0
        %1692 = vmatmul.mubr.f32.gmra.mrb[0].mxu0 %v1620
        %v1693 = vpop.f32.mrb[0].mxu0
        %v1694 = vadd.f32 %v1615, %v1693
        %v1695 = vpop.f32.mrb[0].mxu0
        %1696 = vdwg.mxu0
        %1699 = vrot.lane.b32.xlu0 %v1689, 96
        %v1700 = vpop.permute.xlu0 %1699
        %1701 = vrot.lane.b32.xlu0 %v1694, 96
        %v1702 = vpop.permute.xlu0 %1701
        %v1703 = vsel %vm224, %v1689, 0
        %v1705 = vsel %vm224, %v1694, 0
        %v1707 = vsel %vm224, %v1700, 0
        %v1709 = vsel %vm224, %v1702, 0
        %1711 = vmatprep.subr.mxu0 0.0
        %1712 = vmatpush1.xpose.msra.mxu0 %v1707
        %1713 = vmatprep.subr.mxu0 0.0
        %1714 = vmatpush1.xpose.msra.mxu0 %v1709
        %1715 = vmatprep.subr.mxu0 0.0
        %1716 = vmatpush1.xpose.msra.mxu0 0.0
        %1717 = vmatprep.subr.mxu0 0.0
        %1718 = vmatpush1.xpose.msra.mxu0 0.0
        %1719 = vmatprep.subr.mxu0 0.0
        %1720 = vmatpush1.xpose.msra.mxu0 0.0
        %1721 = vmatprep.subr.mxu0 0.0
        %1722 = vmatpush1.xpose.msra.mxu0 0.0
        %1723 = vmatprep.subr.mxu0 0.0
        %1724 = vmatpush1.xpose.msra.mxu0 0.0
        %1725 = vmatprep.subr.mxu0 0.0
        %1726 = vmatpush1.xpose.msra.mxu0 0.0
        %1727 = vmatprep.subr.mxu0 0.0
        %1728 = vmatpush1.xpose.msra.mxu0 0.0
        %1729 = vmatprep.subr.mxu0 0.0
        %1730 = vmatpush1.xpose.msra.mxu0 0.0
        %1731 = vmatprep.subr.mxu0 0.0
        %1732 = vmatpush1.xpose.msra.mxu0 0.0
        %1733 = vmatprep.subr.mxu0 0.0
        %1734 = vmatpush1.xpose.msra.mxu0 0.0
        %1735 = vmatprep.subr.mxu0 0.0
        %1736 = vmatpush1.xpose.msra.mxu0 0.0
        %1737 = vmatprep.subr.mxu0 0.0
        %1738 = vmatpush1.xpose.msra.mxu0 0.0
        %1739 = vmatprep.subr.mxu0 0.0
        %1740 = vmatpush1.xpose.msra.mxu0 0.0
        %1741 = vmatprep.subr.mxu0 0.0
        %1742 = vmatpush1.xpose.msra.mxu0 0.0
        %1743 = vmatprep.subr.mxu0 0.0
        %1744 = vmatpush1.xpose.msra.mxu0 0.0
        %1745 = vmatprep.subr.mxu0 0.0
        %1746 = vmatpush1.xpose.msra.mxu0 0.0
        %1747 = vmatprep.subr.mxu0 0.0
        %1748 = vmatpush1.xpose.msra.mxu0 0.0
        %1749 = vmatprep.subr.mxu0 0.0
        %1750 = vmatpush1.xpose.msra.mxu0 0.0
        %1751 = vmatprep.subr.mxu0 0.0
        %1752 = vmatpush1.xpose.msra.mxu0 0.0
        %1753 = vmatprep.subr.mxu0 0.0
        %1754 = vmatpush1.xpose.msra.mxu0 0.0
        %1755 = vmatprep.subr.mxu0 0.0
        %1756 = vmatpush1.xpose.msra.mxu0 0.0
        %1757 = vmatprep.subr.mxu0 0.0
        %1758 = vmatpush1.xpose.msra.mxu0 0.0
        %1759 = vmatprep.subr.mxu0 0.0
        %1760 = vmatpush1.xpose.msra.mxu0 0.0
        %1761 = vmatprep.subr.mxu0 0.0
        %1762 = vmatpush1.xpose.msra.mxu0 0.0
        %1763 = vmatprep.subr.mxu0 0.0
        %1764 = vmatpush1.xpose.msra.mxu0 0.0
        %1765 = vmatprep.subr.mxu0 0.0
        %1766 = vmatpush1.xpose.msra.mxu0 0.0
        %1767 = vmatprep.subr.mxu0 0.0
        %1768 = vmatpush1.xpose.msra.mxu0 0.0
        %1769 = vmatprep.subr.mxu0 0.0
        %1770 = vmatpush1.xpose.msra.mxu0 0.0
        %1771 = vmatprep.subr.mxu0 0.0
        %1772 = vmatpush1.xpose.msra.mxu0 0.0
        %1773 = vmatprep.subr.mxu0 0.0
        %1774 = vmatpush1.xpose.msra.mxu0 0.0
        %1775 = vmatprep.mubr.f32.mxu0 0.0
        %1776 = vmatmul.mubr.f32.gmra.mrb[0].mxu0 %v1703
        %v1777 = vpop.f32.mrb[0].mxu0
        %v1778 = vadd.f32 0.0, %v1777
        %v1779 = vpop.f32.mrb[0].mxu0
        %1780 = vmatprep.mubr.f32.mxu0 0.0
        %1781 = vmatmul.mubr.f32.gmra.mrb[0].mxu0 %v1705
        %v1782 = vpop.f32.mrb[0].mxu0
        %v1783 = vadd.f32 0.0, %v1782
        %v1784 = vpop.f32.mrb[0].mxu0
        %1785 = vdwg.mxu0
        %v1786 = vmul.f32 %v1778, 0.35355338
        %v1787 = vmul.f32 %v1783, 0.35355338
        %v1788 = vadd.f32 %v1786, %v306
        %v1789 = vadd.f32 %v1787, %v307
        %v1790 = vsel %vm492, %v1788, -inf
        %1791 = vmax.xlane.f32.xlu0 %v1790
        %v1792 = vpop.xlane.xlu0 %1791
        %v1793 = vsel %vm492, %v1789, -inf
        %1794 = vmax.xlane.f32.xlu0 %v1793
        %v1795 = vpop.xlane.xlu0 %1794
        %v1796 = vsub.f32 %v1788, %v1792
        %v1797 = vsub.f32 %v1789, %v1795
        %v1798 = vmul.f32 %v1796, 1.442695
        %v1799 = vpow.pop %v1798
        %v1800 = vmul.f32 %v1797, 1.442695
        %v1801 = vpow.pop %v1800
        %v1802 = vsel %vm492, %v1799, 0.0
        %1803 = vadd.xlane.f32.xlu0 %v1802
        %v1804 = vpop.xlane.xlu0 %1803
        %v1805 = vsel %vm492, %v1801, 0.0
        %1806 = vadd.xlane.f32.xlu0 %v1805
        %v1807 = vpop.xlane.xlu0 %1806
        %v1808 = vrcp.pop %v1804
        %v1809 = vrcp.pop %v1807
        %v1810 = vmul.f32 %v1799, %v1808
        %v1811 = vmul.f32 %v1801, %v1809
        %1812 = vrot.lane.b32.xlu0 %v1689, 64
        %v1813 = vpop.permute.xlu0 %1812
        %1814 = vrot.lane.b32.xlu0 %v1694, 64
        %v1815 = vpop.permute.xlu0 %1814
        %v1819 = vsel %vm492, %v1810, 0
        %v1822 = vsel %vm492, %v1811, 0
        %1824 = vmatprep.subr.mxu0 0.0
        %1825 = vmatpush1.msra.mxu0 %v1813
        %1826 = vmatprep.subr.mxu0 0.0
        %1827 = vmatpush1.msra.mxu0 %v1815
        %1828 = vmatprep.subr.mxu0 0.0
        %1829 = vmatpush1.msra.mxu0 0.0
        %1830 = vmatprep.subr.mxu0 0.0
        %1831 = vmatpush1.msra.mxu0 0.0
        %1832 = vmatprep.subr.mxu0 0.0
        %1833 = vmatpush1.msra.mxu0 0.0
        %1834 = vmatprep.subr.mxu0 0.0
        %1835 = vmatpush1.msra.mxu0 0.0
        %1836 = vmatprep.subr.mxu0 0.0
        %1837 = vmatpush1.msra.mxu0 0.0
        %1838 = vmatprep.subr.mxu0 0.0
        %1839 = vmatpush1.msra.mxu0 0.0
        %1840 = vmatprep.subr.mxu0 0.0
        %1841 = vmatpush1.msra.mxu0 0.0
        %1842 = vmatprep.subr.mxu0 0.0
        %1843 = vmatpush1.msra.mxu0 0.0
        %1844 = vmatprep.subr.mxu0 0.0
        %1845 = vmatpush1.msra.mxu0 0.0
        %1846 = vmatprep.subr.mxu0 0.0
        %1847 = vmatpush1.msra.mxu0 0.0
        %1848 = vmatprep.subr.mxu0 0.0
        %1849 = vmatpush1.msra.mxu0 0.0
        %1850 = vmatprep.subr.mxu0 0.0
        %1851 = vmatpush1.msra.mxu0 0.0
        %1852 = vmatprep.subr.mxu0 0.0
        %1853 = vmatpush1.msra.mxu0 0.0
        %1854 = vmatprep.subr.mxu0 0.0
        %1855 = vmatpush1.msra.mxu0 0.0
        %1856 = vmatprep.subr.mxu0 0.0
        %1857 = vmatpush1.msra.mxu0 0.0
        %1858 = vmatprep.subr.mxu0 0.0
        %1859 = vmatpush1.msra.mxu0 0.0
        %1860 = vmatprep.subr.mxu0 0.0
        %1861 = vmatpush1.msra.mxu0 0.0
        %1862 = vmatprep.subr.mxu0 0.0
        %1863 = vmatpush1.msra.mxu0 0.0
        %1864 = vmatprep.subr.mxu0 0.0
        %1865 = vmatpush1.msra.mxu0 0.0
        %1866 = vmatprep.subr.mxu0 0.0
        %1867 = vmatpush1.msra.mxu0 0.0
        %1868 = vmatprep.subr.mxu0 0.0
        %1869 = vmatpush1.msra.mxu0 0.0
        %1870 = vmatprep.subr.mxu0 0.0
        %1871 = vmatpush1.msra.mxu0 0.0
        %1872 = vmatprep.subr.mxu0 0.0
        %1873 = vmatpush1.msra.mxu0 0.0
        %1874 = vmatprep.subr.mxu0 0.0
        %1875 = vmatpush1.msra.mxu0 0.0
        %1876 = vmatprep.subr.mxu0 0.0
        %1877 = vmatpush1.msra.mxu0 0.0
        %1878 = vmatprep.subr.mxu0 0.0
        %1879 = vmatpush1.msra.mxu0 0.0
        %1880 = vmatprep.subr.mxu0 0.0
        %1881 = vmatpush1.msra.mxu0 0.0
        %1882 = vmatprep.subr.mxu0 0.0
        %1883 = vmatpush1.msra.mxu0 0.0
        %1884 = vmatprep.subr.mxu0 0.0
        %1885 = vmatpush1.msra.mxu0 0.0
        %1886 = vmatprep.subr.mxu0 0.0
        %1887 = vmatpush1.msra.mxu0 0.0
        %1888 = vmatprep.mubr.f32.mxu0 0.0
        %1889 = vmatmul.mubr.f32.gmra.mrb[0].mxu0 %v1819
        %v1890 = vpop.f32.mrb[0].mxu0
        %v1891 = vadd.f32 0.0, %v1890
        %v1892 = vpop.f32.mrb[0].mxu0
        %1893 = vmatprep.mubr.f32.mxu0 0.0
        %1894 = vmatmul.mubr.f32.gmra.mrb[0].mxu0 %v1822
        %v1895 = vpop.f32.mrb[0].mxu0
        %v1896 = vadd.f32 0.0, %v1895
        %v1897 = vpop.f32.mrb[0].mxu0
        %1898 = vdwg.mxu0
        %1899 = vrot.lane.b32.xlu0 %v1689, 120
        %v1900 = vpop.permute.xlu0 %1899
        %1901 = vrot.lane.b32.xlu0 %v1694, 120
        %v1902 = vpop.permute.xlu0 %1901
        %1903 = vrot.lane.b32.xlu0 %v1689, 88
        %v1904 = vpop.permute.xlu0 %1903
        %1905 = vrot.lane.b32.xlu0 %v1694, 88
        %v1906 = vpop.permute.xlu0 %1905
        %v1907 = vsel %vm224, %v1900, 0
        %v1909 = vsel %vm224, %v1902, 0
        %v1911 = vsel %vm224, %v1904, 0
        %v1913 = vsel %vm224, %v1906, 0
        %1915 = vmatprep.subr.mxu0 0.0
        %1916 = vmatpush1.xpose.msra.mxu0 %v1911
        %1917 = vmatprep.subr.mxu0 0.0
        %1918 = vmatpush1.xpose.msra.mxu0 %v1913
        %1919 = vmatprep.subr.mxu0 0.0
        %1920 = vmatpush1.xpose.msra.mxu0 0.0
        %1921 = vmatprep.subr.mxu0 0.0
        %1922 = vmatpush1.xpose.msra.mxu0 0.0
        %1923 = vmatprep.subr.mxu0 0.0
        %1924 = vmatpush1.xpose.msra.mxu0 0.0
        %1925 = vmatprep.subr.mxu0 0.0
        %1926 = vmatpush1.xpose.msra.mxu0 0.0
        %1927 = vmatprep.subr.mxu0 0.0
        %1928 = vmatpush1.xpose.msra.mxu0 0.0
        %1929 = vmatprep.subr.mxu0 0.0
        %1930 = vmatpush1.xpose.msra.mxu0 0.0
        %1931 = vmatprep.subr.mxu0 0.0
        %1932 = vmatpush1.xpose.msra.mxu0 0.0
        %1933 = vmatprep.subr.mxu0 0.0
        %1934 = vmatpush1.xpose.msra.mxu0 0.0
        %1935 = vmatprep.subr.mxu0 0.0
        %1936 = vmatpush1.xpose.msra.mxu0 0.0
        %1937 = vmatprep.subr.mxu0 0.0
        %1938 = vmatpush1.xpose.msra.mxu0 0.0
        %1939 = vmatprep.subr.mxu0 0.0
        %1940 = vmatpush1.xpose.msra.mxu0 0.0
        %1941 = vmatprep.subr.mxu0 0.0
        %1942 = vmatpush1.xpose.msra.mxu0 0.0
        %1943 = vmatprep.subr.mxu0 0.0
        %1944 = vmatpush1.xpose.msra.mxu0 0.0
        %1945 = vmatprep.subr.mxu0 0.0
        %1946 = vmatpush1.xpose.msra.mxu0 0.0
        %1947 = vmatprep.subr.mxu0 0.0
        %1948 = vmatpush1.xpose.msra.mxu0 0.0
        %1949 = vmatprep.subr.mxu0 0.0
        %1950 = vmatpush1.xpose.msra.mxu0 0.0
        %1951 = vmatprep.subr.mxu0 0.0
        %1952 = vmatpush1.xpose.msra.mxu0 0.0
        %1953 = vmatprep.subr.mxu0 0.0
        %1954 = vmatpush1.xpose.msra.mxu0 0.0
        %1955 = vmatprep.subr.mxu0 0.0
        %1956 = vmatpush1.xpose.msra.mxu0 0.0
        %1957 = vmatprep.subr.mxu0 0.0
        %1958 = vmatpush1.xpose.msra.mxu0 0.0
        %1959 = vmatprep.subr.mxu0 0.0
        %1960 = vmatpush1.xpose.msra.mxu0 0.0
        %1961 = vmatprep.subr.mxu0 0.0
        %1962 = vmatpush1.xpose.msra.mxu0 0.0
        %1963 = vmatprep.subr.mxu0 0.0
        %1964 = vmatpush1.xpose.msra.mxu0 0.0
        %1965 = vmatprep.subr.mxu0 0.0
        %1966 = vmatpush1.xpose.msra.mxu0 0.0
        %1967 = vmatprep.subr.mxu0 0.0
        %1968 = vmatpush1.xpose.msra.mxu0 0.0
        %1969 = vmatprep.subr.mxu0 0.0
        %1970 = vmatpush1.xpose.msra.mxu0 0.0
        %1971 = vmatprep.subr.mxu0 0.0
        %1972 = vmatpush1.xpose.msra.mxu0 0.0
        %1973 = vmatprep.subr.mxu0 0.0
        %1974 = vmatpush1.xpose.msra.mxu0 0.0
        %1975 = vmatprep.subr.mxu0 0.0
        %1976 = vmatpush1.xpose.msra.mxu0 0.0
        %1977 = vmatprep.subr.mxu0 0.0
        %1978 = vmatpush1.xpose.msra.mxu0 0.0
        %1979 = vmatprep.mubr.f32.mxu0 0.0
        %1980 = vmatmul.mubr.f32.gmra.mrb[0].mxu0 %v1907
        %v1981 = vpop.f32.mrb[0].mxu0
        %v1982 = vadd.f32 0.0, %v1981
        %v1983 = vpop.f32.mrb[0].mxu0
        %1984 = vmatprep.mubr.f32.mxu0 0.0
        %1985 = vmatmul.mubr.f32.gmra.mrb[0].mxu0 %v1909
        %v1986 = vpop.f32.mrb[0].mxu0
        %v1987 = vadd.f32 0.0, %v1986
        %v1988 = vpop.f32.mrb[0].mxu0
        %1989 = vdwg.mxu0
        %v1990 = vmul.f32 %v1982, 0.35355338
        %v1991 = vmul.f32 %v1987, 0.35355338
        %v1992 = vadd.f32 %v1990, %v306
        %v1993 = vadd.f32 %v1991, %v307
        %v1994 = vsel %vm492, %v1992, -inf
        %1995 = vmax.xlane.f32.xlu0 %v1994
        %v1996 = vpop.xlane.xlu0 %1995
        %v1997 = vsel %vm492, %v1993, -inf
        %1998 = vmax.xlane.f32.xlu0 %v1997
        %v1999 = vpop.xlane.xlu0 %1998
        %v2000 = vsub.f32 %v1992, %v1996
        %v2001 = vsub.f32 %v1993, %v1999
        %v2002 = vmul.f32 %v2000, 1.442695
        %v2003 = vpow.pop %v2002
        %v2004 = vmul.f32 %v2001, 1.442695
        %v2005 = vpow.pop %v2004
        %v2006 = vsel %vm492, %v2003, 0.0
        %2007 = vadd.xlane.f32.xlu0 %v2006
        %v2008 = vpop.xlane.xlu0 %2007
        %v2009 = vsel %vm492, %v2005, 0.0
        %2010 = vadd.xlane.f32.xlu0 %v2009
        %v2011 = vpop.xlane.xlu0 %2010
        %v2012 = vrcp.pop %v2008
        %v2013 = vrcp.pop %v2011
        %v2014 = vmul.f32 %v2003, %v2012
        %v2015 = vmul.f32 %v2005, %v2013
        %2016 = vrot.lane.b32.xlu0 %v1689, 56
        %v2017 = vpop.permute.xlu0 %2016
        %2018 = vrot.lane.b32.xlu0 %v1694, 56
        %v2019 = vpop.permute.xlu0 %2018
        %v2023 = vsel %vm492, %v2014, 0
        %v2026 = vsel %vm492, %v2015, 0
        %2028 = vmatprep.subr.mxu0 0.0
        %2029 = vmatpush1.msra.mxu0 %v2017
        %2030 = vmatprep.subr.mxu0 0.0
        %2031 = vmatpush1.msra.mxu0 %v2019
        %2032 = vmatprep.subr.mxu0 0.0
        %2033 = vmatpush1.msra.mxu0 0.0
        %2034 = vmatprep.subr.mxu0 0.0
        %2035 = vmatpush1.msra.mxu0 0.0
        %2036 = vmatprep.subr.mxu0 0.0
        %2037 = vmatpush1.msra.mxu0 0.0
        %2038 = vmatprep.subr.mxu0 0.0
        %2039 = vmatpush1.msra.mxu0 0.0
        %2040 = vmatprep.subr.mxu0 0.0
        %2041 = vmatpush1.msra.mxu0 0.0
        %2042 = vmatprep.subr.mxu0 0.0
        %2043 = vmatpush1.msra.mxu0 0.0
        %2044 = vmatprep.subr.mxu0 0.0
        %2045 = vmatpush1.msra.mxu0 0.0
        %2046 = vmatprep.subr.mxu0 0.0
        %2047 = vmatpush1.msra.mxu0 0.0
        %2048 = vmatprep.subr.mxu0 0.0
        %2049 = vmatpush1.msra.mxu0 0.0
        %2050 = vmatprep.subr.mxu0 0.0
        %2051 = vmatpush1.msra.mxu0 0.0
        %2052 = vmatprep.subr.mxu0 0.0
        %2053 = vmatpush1.msra.mxu0 0.0
        %2054 = vmatprep.subr.mxu0 0.0
        %2055 = vmatpush1.msra.mxu0 0.0
        %2056 = vmatprep.subr.mxu0 0.0
        %2057 = vmatpush1.msra.mxu0 0.0
        %2058 = vmatprep.subr.mxu0 0.0
        %2059 = vmatpush1.msra.mxu0 0.0
        %2060 = vmatprep.subr.mxu0 0.0
        %2061 = vmatpush1.msra.mxu0 0.0
        %2062 = vmatprep.subr.mxu0 0.0
        %2063 = vmatpush1.msra.mxu0 0.0
        %2064 = vmatprep.subr.mxu0 0.0
        %2065 = vmatpush1.msra.mxu0 0.0
        %2066 = vmatprep.subr.mxu0 0.0
        %2067 = vmatpush1.msra.mxu0 0.0
        %2068 = vmatprep.subr.mxu0 0.0
        %2069 = vmatpush1.msra.mxu0 0.0
        %2070 = vmatprep.subr.mxu0 0.0
        %2071 = vmatpush1.msra.mxu0 0.0
        %2072 = vmatprep.subr.mxu0 0.0
        %2073 = vmatpush1.msra.mxu0 0.0
        %2074 = vmatprep.subr.mxu0 0.0
        %2075 = vmatpush1.msra.mxu0 0.0
        %2076 = vmatprep.subr.mxu0 0.0
        %2077 = vmatpush1.msra.mxu0 0.0
        %2078 = vmatprep.subr.mxu0 0.0
        %2079 = vmatpush1.msra.mxu0 0.0
        %2080 = vmatprep.subr.mxu0 0.0
        %2081 = vmatpush1.msra.mxu0 0.0
        %2082 = vmatprep.subr.mxu0 0.0
        %2083 = vmatpush1.msra.mxu0 0.0
        %2084 = vmatprep.subr.mxu0 0.0
        %2085 = vmatpush1.msra.mxu0 0.0
        %2086 = vmatprep.subr.mxu0 0.0
        %2087 = vmatpush1.msra.mxu0 0.0
        %2088 = vmatprep.subr.mxu0 0.0
        %2089 = vmatpush1.msra.mxu0 0.0
        %2090 = vmatprep.subr.mxu0 0.0
        %2091 = vmatpush1.msra.mxu0 0.0
        %2092 = vmatprep.mubr.f32.mxu0 0.0
        %2093 = vmatmul.mubr.f32.gmra.mrb[0].mxu0 %v2023
        %v2094 = vpop.f32.mrb[0].mxu0
        %v2095 = vadd.f32 0.0, %v2094
        %v2096 = vpop.f32.mrb[0].mxu0
        %2097 = vmatprep.mubr.f32.mxu0 0.0
        %2098 = vmatmul.mubr.f32.gmra.mrb[0].mxu0 %v2026
        %v2099 = vpop.f32.mrb[0].mxu0
        %v2100 = vadd.f32 0.0, %v2099
        %v2101 = vpop.f32.mrb[0].mxu0
        %2102 = vdwg.mxu0
        %2103 = vrot.lane.b32.xlu0 %v1689, 112
        %v2104 = vpop.permute.xlu0 %2103
        %2105 = vrot.lane.b32.xlu0 %v1694, 112
        %v2106 = vpop.permute.xlu0 %2105
        %2107 = vrot.lane.b32.xlu0 %v1689, 80
        %v2108 = vpop.permute.xlu0 %2107
        %2109 = vrot.lane.b32.xlu0 %v1694, 80
        %v2110 = vpop.permute.xlu0 %2109
        %v2111 = vsel %vm224, %v2104, 0
        %v2113 = vsel %vm224, %v2106, 0
        %v2115 = vsel %vm224, %v2108, 0
        %v2117 = vsel %vm224, %v2110, 0
        %2119 = vmatprep.subr.mxu0 0.0
        %2120 = vmatpush1.xpose.msra.mxu0 %v2115
        %2121 = vmatprep.subr.mxu0 0.0
        %2122 = vmatpush1.xpose.msra.mxu0 %v2117
        %2123 = vmatprep.subr.mxu0 0.0
        %2124 = vmatpush1.xpose.msra.mxu0 0.0
        %2125 = vmatprep.subr.mxu0 0.0
        %2126 = vmatpush1.xpose.msra.mxu0 0.0
        %2127 = vmatprep.subr.mxu0 0.0
        %2128 = vmatpush1.xpose.msra.mxu0 0.0
        %2129 = vmatprep.subr.mxu0 0.0
        %2130 = vmatpush1.xpose.msra.mxu0 0.0
        %2131 = vmatprep.subr.mxu0 0.0
        %2132 = vmatpush1.xpose.msra.mxu0 0.0
        %2133 = vmatprep.subr.mxu0 0.0
        %2134 = vmatpush1.xpose.msra.mxu0 0.0
        %2135 = vmatprep.subr.mxu0 0.0
        %2136 = vmatpush1.xpose.msra.mxu0 0.0
        %2137 = vmatprep.subr.mxu0 0.0
        %2138 = vmatpush1.xpose.msra.mxu0 0.0
        %2139 = vmatprep.subr.mxu0 0.0
        %2140 = vmatpush1.xpose.msra.mxu0 0.0
        %2141 = vmatprep.subr.mxu0 0.0
        %2142 = vmatpush1.xpose.msra.mxu0 0.0
        %2143 = vmatprep.subr.mxu0 0.0
        %2144 = vmatpush1.xpose.msra.mxu0 0.0
        %2145 = vmatprep.subr.mxu0 0.0
        %2146 = vmatpush1.xpose.msra.mxu0 0.0
        %2147 = vmatprep.subr.mxu0 0.0
        %2148 = vmatpush1.xpose.msra.mxu0 0.0
        %2149 = vmatprep.subr.mxu0 0.0
        %2150 = vmatpush1.xpose.msra.mxu0 0.0
        %2151 = vmatprep.subr.mxu0 0.0
        %2152 = vmatpush1.xpose.msra.mxu0 0.0
        %2153 = vmatprep.subr.mxu0 0.0
        %2154 = vmatpush1.xpose.msra.mxu0 0.0
        %2155 = vmatprep.subr.mxu0 0.0
        %2156 = vmatpush1.xpose.msra.mxu0 0.0
        %2157 = vmatprep.subr.mxu0 0.0
        %2158 = vmatpush1.xpose.msra.mxu0 0.0
        %2159 = vmatprep.subr.mxu0 0.0
        %2160 = vmatpush1.xpose.msra.mxu0 0.0
        %2161 = vmatprep.subr.mxu0 0.0
        %2162 = vmatpush1.xpose.msra.mxu0 0.0
        %2163 = vmatprep.subr.mxu0 0.0
        %2164 = vmatpush1.xpose.msra.mxu0 0.0
        %2165 = vmatprep.subr.mxu0 0.0
        %2166 = vmatpush1.xpose.msra.mxu0 0.0
        %2167 = vmatprep.subr.mxu0 0.0
        %2168 = vmatpush1.xpose.msra.mxu0 0.0
        %2169 = vmatprep.subr.mxu0 0.0
        %2170 = vmatpush1.xpose.msra.mxu0 0.0
        %2171 = vmatprep.subr.mxu0 0.0
        %2172 = vmatpush1.xpose.msra.mxu0 0.0
        %2173 = vmatprep.subr.mxu0 0.0
        %2174 = vmatpush1.xpose.msra.mxu0 0.0
        %2175 = vmatprep.subr.mxu0 0.0
        %2176 = vmatpush1.xpose.msra.mxu0 0.0
        %2177 = vmatprep.subr.mxu0 0.0
        %2178 = vmatpush1.xpose.msra.mxu0 0.0
        %2179 = vmatprep.subr.mxu0 0.0
        %2180 = vmatpush1.xpose.msra.mxu0 0.0
        %2181 = vmatprep.subr.mxu0 0.0
        %2182 = vmatpush1.xpose.msra.mxu0 0.0
        %2183 = vmatprep.mubr.f32.mxu0 0.0
        %2184 = vmatmul.mubr.f32.gmra.mrb[0].mxu0 %v2111
        %v2185 = vpop.f32.mrb[0].mxu0
        %v2186 = vadd.f32 0.0, %v2185
        %v2187 = vpop.f32.mrb[0].mxu0
        %2188 = vmatprep.mubr.f32.mxu0 0.0
        %2189 = vmatmul.mubr.f32.gmra.mrb[0].mxu0 %v2113
        %v2190 = vpop.f32.mrb[0].mxu0
        %v2191 = vadd.f32 0.0, %v2190
        %v2192 = vpop.f32.mrb[0].mxu0
        %2193 = vdwg.mxu0
        %v2194 = vmul.f32 %v2186, 0.35355338
        %v2195 = vmul.f32 %v2191, 0.35355338
        %v2196 = vadd.f32 %v2194, %v306
        %v2197 = vadd.f32 %v2195, %v307
        %v2198 = vsel %vm492, %v2196, -inf
        %2199 = vmax.xlane.f32.xlu0 %v2198
        %v2200 = vpop.xlane.xlu0 %2199
        %v2201 = vsel %vm492, %v2197, -inf
        %2202 = vmax.xlane.f32.xlu0 %v2201
        %v2203 = vpop.xlane.xlu0 %2202
        %v2204 = vsub.f32 %v2196, %v2200
        %v2205 = vsub.f32 %v2197, %v2203
        %v2206 = vmul.f32 %v2204, 1.442695
        %v2207 = vpow.pop %v2206
        %v2208 = vmul.f32 %v2205, 1.442695
        %v2209 = vpow.pop %v2208
        %v2210 = vsel %vm492, %v2207, 0.0
        %2211 = vadd.xlane.f32.xlu0 %v2210
        %v2212 = vpop.xlane.xlu0 %2211
        %v2213 = vsel %vm492, %v2209, 0.0
        %2214 = vadd.xlane.f32.xlu0 %v2213
        %v2215 = vpop.xlane.xlu0 %2214
        %v2216 = vrcp.pop %v2212
        %v2217 = vrcp.pop %v2215
        %v2218 = vmul.f32 %v2207, %v2216
        %v2219 = vmul.f32 %v2209, %v2217
        %2220 = vrot.lane.b32.xlu0 %v1689, 48
        %v2221 = vpop.permute.xlu0 %2220
        %2222 = vrot.lane.b32.xlu0 %v1694, 48
        %v2223 = vpop.permute.xlu0 %2222
        %v2227 = vsel %vm492, %v2218, 0
        %v2230 = vsel %vm492, %v2219, 0
        %2232 = vmatprep.subr.mxu0 0.0
        %2233 = vmatpush1.msra.mxu0 %v2221
        %2234 = vmatprep.subr.mxu0 0.0
        %2235 = vmatpush1.msra.mxu0 %v2223
        %2236 = vmatprep.subr.mxu0 0.0
        %2237 = vmatpush1.msra.mxu0 0.0
        %2238 = vmatprep.subr.mxu0 0.0
        %2239 = vmatpush1.msra.mxu0 0.0
        %2240 = vmatprep.subr.mxu0 0.0
        %2241 = vmatpush1.msra.mxu0 0.0
        %2242 = vmatprep.subr.mxu0 0.0
        %2243 = vmatpush1.msra.mxu0 0.0
        %2244 = vmatprep.subr.mxu0 0.0
        %2245 = vmatpush1.msra.mxu0 0.0
        %2246 = vmatprep.subr.mxu0 0.0
        %2247 = vmatpush1.msra.mxu0 0.0
        %2248 = vmatprep.subr.mxu0 0.0
        %2249 = vmatpush1.msra.mxu0 0.0
        %2250 = vmatprep.subr.mxu0 0.0
        %2251 = vmatpush1.msra.mxu0 0.0
        %2252 = vmatprep.subr.mxu0 0.0
        %2253 = vmatpush1.msra.mxu0 0.0
        %2254 = vmatprep.subr.mxu0 0.0
        %2255 = vmatpush1.msra.mxu0 0.0
        %2256 = vmatprep.subr.mxu0 0.0
        %2257 = vmatpush1.msra.mxu0 0.0
        %2258 = vmatprep.subr.mxu0 0.0
        %2259 = vmatpush1.msra.mxu0 0.0
        %2260 = vmatprep.subr.mxu0 0.0
        %2261 = vmatpush1.msra.mxu0 0.0
        %2262 = vmatprep.subr.mxu0 0.0
        %2263 = vmatpush1.msra.mxu0 0.0
        %2264 = vmatprep.subr.mxu0 0.0
        %2265 = vmatpush1.msra.mxu0 0.0
        %2266 = vmatprep.subr.mxu0 0.0
        %2267 = vmatpush1.msra.mxu0 0.0
        %2268 = vmatprep.subr.mxu0 0.0
        %2269 = vmatpush1.msra.mxu0 0.0
        %2270 = vmatprep.subr.mxu0 0.0
        %2271 = vmatpush1.msra.mxu0 0.0
        %2272 = vmatprep.subr.mxu0 0.0
        %2273 = vmatpush1.msra.mxu0 0.0
        %2274 = vmatprep.subr.mxu0 0.0
        %2275 = vmatpush1.msra.mxu0 0.0
        %2276 = vmatprep.subr.mxu0 0.0
        %2277 = vmatpush1.msra.mxu0 0.0
        %2278 = vmatprep.subr.mxu0 0.0
        %2279 = vmatpush1.msra.mxu0 0.0
        %2280 = vmatprep.subr.mxu0 0.0
        %2281 = vmatpush1.msra.mxu0 0.0
        %2282 = vmatprep.subr.mxu0 0.0
        %2283 = vmatpush1.msra.mxu0 0.0
        %2284 = vmatprep.subr.mxu0 0.0
        %2285 = vmatpush1.msra.mxu0 0.0
        %2286 = vmatprep.subr.mxu0 0.0
        %2287 = vmatpush1.msra.mxu0 0.0
        %2288 = vmatprep.subr.mxu0 0.0
        %2289 = vmatpush1.msra.mxu0 0.0
        %2290 = vmatprep.subr.mxu0 0.0
        %2291 = vmatpush1.msra.mxu0 0.0
        %2292 = vmatprep.subr.mxu0 0.0
        %2293 = vmatpush1.msra.mxu0 0.0
        %2294 = vmatprep.subr.mxu0 0.0
        %2295 = vmatpush1.msra.mxu0 0.0
        %2296 = vmatprep.mubr.f32.mxu0 0.0
        %2297 = vmatmul.mubr.f32.gmra.mrb[0].mxu0 %v2227
        %v2298 = vpop.f32.mrb[0].mxu0
        %v2299 = vadd.f32 0.0, %v2298
        %v2300 = vpop.f32.mrb[0].mxu0
        %2301 = vmatprep.mubr.f32.mxu0 0.0
        %2302 = vmatmul.mubr.f32.gmra.mrb[0].mxu0 %v2230
        %v2303 = vpop.f32.mrb[0].mxu0
        %v2304 = vadd.f32 0.0, %v2303
        %v2305 = vpop.f32.mrb[0].mxu0
        %2306 = vdwg.mxu0
        %2307 = vrot.lane.b32.xlu0 %v1689, 104
        %v2308 = vpop.permute.xlu0 %2307
        %2309 = vrot.lane.b32.xlu0 %v1694, 104
        %v2310 = vpop.permute.xlu0 %2309
        %2311 = vrot.lane.b32.xlu0 %v1689, 72
        %v2312 = vpop.permute.xlu0 %2311
        %2313 = vrot.lane.b32.xlu0 %v1694, 72
        %v2314 = vpop.permute.xlu0 %2313
        %v2315 = vsel %vm224, %v2308, 0
        %v2317 = vsel %vm224, %v2310, 0
        %v2319 = vsel %vm224, %v2312, 0
        %v2321 = vsel %vm224, %v2314, 0
        %2323 = vmatprep.subr.mxu0 0.0
        %2324 = vmatpush1.xpose.msra.mxu0 %v2319
        %2325 = vmatprep.subr.mxu0 0.0
        %2326 = vmatpush1.xpose.msra.mxu0 %v2321
        %2327 = vmatprep.subr.mxu0 0.0
        %2328 = vmatpush1.xpose.msra.mxu0 0.0
        %2329 = vmatprep.subr.mxu0 0.0
        %2330 = vmatpush1.xpose.msra.mxu0 0.0
        %2331 = vmatprep.subr.mxu0 0.0
        %2332 = vmatpush1.xpose.msra.mxu0 0.0
        %2333 = vmatprep.subr.mxu0 0.0
        %2334 = vmatpush1.xpose.msra.mxu0 0.0
        %2335 = vmatprep.subr.mxu0 0.0
        %2336 = vmatpush1.xpose.msra.mxu0 0.0
        %2337 = vmatprep.subr.mxu0 0.0
        %2338 = vmatpush1.xpose.msra.mxu0 0.0
        %2339 = vmatprep.subr.mxu0 0.0
        %2340 = vmatpush1.xpose.msra.mxu0 0.0
        %2341 = vmatprep.subr.mxu0 0.0
        %2342 = vmatpush1.xpose.msra.mxu0 0.0
        %2343 = vmatprep.subr.mxu0 0.0
        %2344 = vmatpush1.xpose.msra.mxu0 0.0
        %2345 = vmatprep.subr.mxu0 0.0
        %2346 = vmatpush1.xpose.msra.mxu0 0.0
        %2347 = vmatprep.subr.mxu0 0.0
        %2348 = vmatpush1.xpose.msra.mxu0 0.0
        %2349 = vmatprep.subr.mxu0 0.0
        %2350 = vmatpush1.xpose.msra.mxu0 0.0
        %2351 = vmatprep.subr.mxu0 0.0
        %2352 = vmatpush1.xpose.msra.mxu0 0.0
        %2353 = vmatprep.subr.mxu0 0.0
        %2354 = vmatpush1.xpose.msra.mxu0 0.0
        %2355 = vmatprep.subr.mxu0 0.0
        %2356 = vmatpush1.xpose.msra.mxu0 0.0
        %2357 = vmatprep.subr.mxu0 0.0
        %2358 = vmatpush1.xpose.msra.mxu0 0.0
        %2359 = vmatprep.subr.mxu0 0.0
        %2360 = vmatpush1.xpose.msra.mxu0 0.0
        %2361 = vmatprep.subr.mxu0 0.0
        %2362 = vmatpush1.xpose.msra.mxu0 0.0
        %2363 = vmatprep.subr.mxu0 0.0
        %2364 = vmatpush1.xpose.msra.mxu0 0.0
        %2365 = vmatprep.subr.mxu0 0.0
        %2366 = vmatpush1.xpose.msra.mxu0 0.0
        %2367 = vmatprep.subr.mxu0 0.0
        %2368 = vmatpush1.xpose.msra.mxu0 0.0
        %2369 = vmatprep.subr.mxu0 0.0
        %2370 = vmatpush1.xpose.msra.mxu0 0.0
        %2371 = vmatprep.subr.mxu0 0.0
        %2372 = vmatpush1.xpose.msra.mxu0 0.0
        %2373 = vmatprep.subr.mxu0 0.0
        %2374 = vmatpush1.xpose.msra.mxu0 0.0
        %2375 = vmatprep.subr.mxu0 0.0
        %2376 = vmatpush1.xpose.msra.mxu0 0.0
        %2377 = vmatprep.subr.mxu0 0.0
        %2378 = vmatpush1.xpose.msra.mxu0 0.0
        %2379 = vmatprep.subr.mxu0 0.0
        %2380 = vmatpush1.xpose.msra.mxu0 0.0
        %2381 = vmatprep.subr.mxu0 0.0
        %2382 = vmatpush1.xpose.msra.mxu0 0.0
        %2383 = vmatprep.subr.mxu0 0.0
        %2384 = vmatpush1.xpose.msra.mxu0 0.0
        %2385 = vmatprep.subr.mxu0 0.0
        %2386 = vmatpush1.xpose.msra.mxu0 0.0
        %2387 = vmatprep.mubr.f32.mxu0 0.0
        %2388 = vmatmul.mubr.f32.gmra.mrb[0].mxu0 %v2315
        %v2389 = vpop.f32.mrb[0].mxu0
        %v2390 = vadd.f32 0.0, %v2389
        %v2391 = vpop.f32.mrb[0].mxu0
        %2392 = vmatprep.mubr.f32.mxu0 0.0
        %2393 = vmatmul.mubr.f32.gmra.mrb[0].mxu0 %v2317
        %v2394 = vpop.f32.mrb[0].mxu0
        %v2395 = vadd.f32 0.0, %v2394
        %v2396 = vpop.f32.mrb[0].mxu0
        %2397 = vdwg.mxu0
        %v2398 = vmul.f32 %v2390, 0.35355338
        %v2399 = vmul.f32 %v2395, 0.35355338
        %v2400 = vadd.f32 %v2398, %v306
        %v2401 = vadd.f32 %v2399, %v307
        %v2402 = vsel %vm492, %v2400, -inf
        %2403 = vmax.xlane.f32.xlu0 %v2402
        %v2404 = vpop.xlane.xlu0 %2403
        %v2405 = vsel %vm492, %v2401, -inf
        %2406 = vmax.xlane.f32.xlu0 %v2405
        %v2407 = vpop.xlane.xlu0 %2406
        %v2408 = vsub.f32 %v2400, %v2404
        %v2409 = vsub.f32 %v2401, %v2407
        %v2410 = vmul.f32 %v2408, 1.442695
        %v2411 = vpow.pop %v2410
        %v2412 = vmul.f32 %v2409, 1.442695
        %v2413 = vpow.pop %v2412
        %v2414 = vsel %vm492, %v2411, 0.0
        %2415 = vadd.xlane.f32.xlu0 %v2414
        %v2416 = vpop.xlane.xlu0 %2415
        %v2417 = vsel %vm492, %v2413, 0.0
        %2418 = vadd.xlane.f32.xlu0 %v2417
        %v2419 = vpop.xlane.xlu0 %2418
        %v2420 = vrcp.pop %v2416
        %v2421 = vrcp.pop %v2419
        %v2422 = vmul.f32 %v2411, %v2420
        %v2423 = vmul.f32 %v2413, %v2421
        %2424 = vrot.lane.b32.xlu0 %v1689, 40
        %v2425 = vpop.permute.xlu0 %2424
        %2426 = vrot.lane.b32.xlu0 %v1694, 40
        %v2427 = vpop.permute.xlu0 %2426
        %v2431 = vsel %vm492, %v2422, 0
        %v2434 = vsel %vm492, %v2423, 0
        %2436 = vmatprep.subr.mxu0 0.0
        %2437 = vmatpush1.msra.mxu0 %v2425
        %2438 = vmatprep.subr.mxu0 0.0
        %2439 = vmatpush1.msra.mxu0 %v2427
        %2440 = vmatprep.subr.mxu0 0.0
        %2441 = vmatpush1.msra.mxu0 0.0
        %2442 = vmatprep.subr.mxu0 0.0
        %2443 = vmatpush1.msra.mxu0 0.0
        %2444 = vmatprep.subr.mxu0 0.0
        %2445 = vmatpush1.msra.mxu0 0.0
        %2446 = vmatprep.subr.mxu0 0.0
        %2447 = vmatpush1.msra.mxu0 0.0
        %2448 = vmatprep.subr.mxu0 0.0
        %2449 = vmatpush1.msra.mxu0 0.0
        %2450 = vmatprep.subr.mxu0 0.0
        %2451 = vmatpush1.msra.mxu0 0.0
        %2452 = vmatprep.subr.mxu0 0.0
        %2453 = vmatpush1.msra.mxu0 0.0
        %2454 = vmatprep.subr.mxu0 0.0
        %2455 = vmatpush1.msra.mxu0 0.0
        %2456 = vmatprep.subr.mxu0 0.0
        %2457 = vmatpush1.msra.mxu0 0.0
        %2458 = vmatprep.subr.mxu0 0.0
        %2459 = vmatpush1.msra.mxu0 0.0
        %2460 = vmatprep.subr.mxu0 0.0
        %2461 = vmatpush1.msra.mxu0 0.0
        %2462 = vmatprep.subr.mxu0 0.0
        %2463 = vmatpush1.msra.mxu0 0.0
        %2464 = vmatprep.subr.mxu0 0.0
        %2465 = vmatpush1.msra.mxu0 0.0
        %2466 = vmatprep.subr.mxu0 0.0
        %2467 = vmatpush1.msra.mxu0 0.0
        %2468 = vmatprep.subr.mxu0 0.0
        %2469 = vmatpush1.msra.mxu0 0.0
        %2470 = vmatprep.subr.mxu0 0.0
        %2471 = vmatpush1.msra.mxu0 0.0
        %2472 = vmatprep.subr.mxu0 0.0
        %2473 = vmatpush1.msra.mxu0 0.0
        %2474 = vmatprep.subr.mxu0 0.0
        %2475 = vmatpush1.msra.mxu0 0.0
        %2476 = vmatprep.subr.mxu0 0.0
        %2477 = vmatpush1.msra.mxu0 0.0
        %2478 = vmatprep.subr.mxu0 0.0
        %2479 = vmatpush1.msra.mxu0 0.0
        %2480 = vmatprep.subr.mxu0 0.0
        %2481 = vmatpush1.msra.mxu0 0.0
        %2482 = vmatprep.subr.mxu0 0.0
        %2483 = vmatpush1.msra.mxu0 0.0
        %2484 = vmatprep.subr.mxu0 0.0
        %2485 = vmatpush1.msra.mxu0 0.0
        %2486 = vmatprep.subr.mxu0 0.0
        %2487 = vmatpush1.msra.mxu0 0.0
        %2488 = vmatprep.subr.mxu0 0.0
        %2489 = vmatpush1.msra.mxu0 0.0
        %2490 = vmatprep.subr.mxu0 0.0
        %2491 = vmatpush1.msra.mxu0 0.0
        %2492 = vmatprep.subr.mxu0 0.0
        %2493 = vmatpush1.msra.mxu0 0.0
        %2494 = vmatprep.subr.mxu0 0.0
        %2495 = vmatpush1.msra.mxu0 0.0
        %2496 = vmatprep.subr.mxu0 0.0
        %2497 = vmatpush1.msra.mxu0 0.0
        %2498 = vmatprep.subr.mxu0 0.0
        %2499 = vmatpush1.msra.mxu0 0.0
        %2500 = vmatprep.mubr.f32.mxu0 0.0
        %2501 = vmatmul.mubr.f32.gmra.mrb[0].mxu0 %v2431
        %v2502 = vpop.f32.mrb[0].mxu0
        %v2503 = vadd.f32 0.0, %v2502
        %v2504 = vpop.f32.mrb[0].mxu0
        %2505 = vmatprep.mubr.f32.mxu0 0.0
        %2506 = vmatmul.mubr.f32.gmra.mrb[0].mxu0 %v2434
        %v2507 = vpop.f32.mrb[0].mxu0
        %v2508 = vadd.f32 0.0, %v2507
        %v2509 = vpop.f32.mrb[0].mxu0
        %2510 = vdwg.mxu0
        %2513 = vrot.lane.b32.xlu0 %v2095, 8
        %v2514 = vpop.permute.xlu0 %2513
        %2515 = vrot.lane.b32.xlu0 %v2100, 8
        %v2516 = vpop.permute.xlu0 %2515
        %2521 = vrot.lane.b32.xlu0 %v2299, 16
        %v2522 = vpop.permute.xlu0 %2521
        %2523 = vrot.lane.b32.xlu0 %v2304, 16
        %v2524 = vpop.permute.xlu0 %2523
        %2529 = vrot.lane.b32.xlu0 %v2503, 24
        %v2530 = vpop.permute.xlu0 %2529
        %2531 = vrot.lane.b32.xlu0 %v2508, 24
        %v2532 = vpop.permute.xlu0 %2531
        %v2535 = vsel %vm224, %v1891, %v2514
        %v2536 = vsel %vm224, %v1896, %v2516
        %v2537 = vsel %vm492, %v2535, %v2522
        %v2538 = vsel %vm492, %v2536, %v2524
        %v2539 = vsel %vm1242, %v2537, %v2530
        %v2540 = vsel %vm1242, %v2538, %v2532
        %v2541 = vld [vmem:[#allocation5 + $0x140] sm:$0xff]
        %v2542 = vld [vmem:[#allocation5 + $0x148] sm:$0xff]
        %v2543 = vld [vmem:[#allocation5 + $0x150] sm:$0xff]
        %v2544 = vld [vmem:[#allocation5 + $0x158] sm:$0xff]
        %v2545 = vld [vmem:[#allocation5 + $0x160] sm:$0x1]
        %v2546 = vlaneseq
        %v2547 = vshrl.u32 %v2546, 7
        %v2548 = vsub.s32 0, %v2547
        %v2549 = vrot.slane %v2545, %v2548
        %v2551 = vsel %vm317, %v2539, 0
        %v2554 = vsel %vm317, %v2540, 0
        %2556 = vmatprep.subr.mxu0 0.0
        %2557 = vmatpush1.msra.mxu0 %v2541
        %2558 = vmatprep.subr.mxu0 0.0
        %2559 = vmatpush1.msra.mxu0 %v2542
        %2560 = vmatprep.subr.mxu0 0.0
        %2561 = vmatpush1.msra.mxu0 %v2543
        %2562 = vmatprep.subr.mxu0 0.0
        %2563 = vmatpush1.msra.mxu0 %v2544
        %2564 = vmatprep.subr.mxu0 0.0
        %2565 = vmatpush1.msra.mxu0 0.0
        %2566 = vmatprep.subr.mxu0 0.0
        %2567 = vmatpush1.msra.mxu0 0.0
        %2568 = vmatprep.subr.mxu0 0.0
        %2569 = vmatpush1.msra.mxu0 0.0
        %2570 = vmatprep.subr.mxu0 0.0
        %2571 = vmatpush1.msra.mxu0 0.0
        %2572 = vmatprep.subr.mxu0 0.0
        %2573 = vmatpush1.msra.mxu0 0.0
        %2574 = vmatprep.subr.mxu0 0.0
        %2575 = vmatpush1.msra.mxu0 0.0
        %2576 = vmatprep.subr.mxu0 0.0
        %2577 = vmatpush1.msra.mxu0 0.0
        %2578 = vmatprep.subr.mxu0 0.0
        %2579 = vmatpush1.msra.mxu0 0.0
        %2580 = vmatprep.subr.mxu0 0.0
        %2581 = vmatpush1.msra.mxu0 0.0
        %2582 = vmatprep.subr.mxu0 0.0
        %2583 = vmatpush1.msra.mxu0 0.0
        %2584 = vmatprep.subr.mxu0 0.0
        %2585 = vmatpush1.msra.mxu0 0.0
        %2586 = vmatprep.subr.mxu0 0.0
        %2587 = vmatpush1.msra.mxu0 0.0
        %2588 = vmatprep.subr.mxu0 0.0
        %2589 = vmatpush1.msra.mxu0 0.0
        %2590 = vmatprep.subr.mxu0 0.0
        %2591 = vmatpush1.msra.mxu0 0.0
        %2592 = vmatprep.subr.mxu0 0.0
        %2593 = vmatpush1.msra.mxu0 0.0
        %2594 = vmatprep.subr.mxu0 0.0
        %2595 = vmatpush1.msra.mxu0 0.0
        %2596 = vmatprep.subr.mxu0 0.0
        %2597 = vmatpush1.msra.mxu0 0.0
        %2598 = vmatprep.subr.mxu0 0.0
        %2599 = vmatpush1.msra.mxu0 0.0
        %2600 = vmatprep.subr.mxu0 0.0
        %2601 = vmatpush1.msra.mxu0 0.0
        %2602 = vmatprep.subr.mxu0 0.0
        %2603 = vmatpush1.msra.mxu0 0.0
        %2604 = vmatprep.subr.mxu0 0.0
        %2605 = vmatpush1.msra.mxu0 0.0
        %2606 = vmatprep.subr.mxu0 0.0
        %2607 = vmatpush1.msra.mxu0 0.0
        %2608 = vmatprep.subr.mxu0 0.0
        %2609 = vmatpush1.msra.mxu0 0.0
        %2610 = vmatprep.subr.mxu0 0.0
        %2611 = vmatpush1.msra.mxu0 0.0
        %2612 = vmatprep.subr.mxu0 0.0
        %2613 = vmatpush1.msra.mxu0 0.0
        %2614 = vmatprep.subr.mxu0 0.0
        %2615 = vmatpush1.msra.mxu0 0.0
        %2616 = vmatprep.subr.mxu0 0.0
        %2617 = vmatpush1.msra.mxu0 0.0
        %2618 = vmatprep.subr.mxu0 0.0
        %2619 = vmatpush1.msra.mxu0 0.0
        %2620 = vmatprep.mubr.f32.mxu0 0.0
        %2621 = vmatmul.mubr.f32.gmra.mrb[0].mxu0 %v2551
        %v2622 = vpop.f32.mrb[0].mxu0
        %v2623 = vadd.f32 %v2549, %v2622
        %v2624 = vpop.f32.mrb[0].mxu0
        %2625 = vmatprep.mubr.f32.mxu0 0.0
        %2626 = vmatmul.mubr.f32.gmra.mrb[0].mxu0 %v2554
        %v2627 = vpop.f32.mrb[0].mxu0
        %v2628 = vadd.f32 %v2549, %v2627
        %v2629 = vpop.f32.mrb[0].mxu0
        %2630 = vdwg.mxu0
        %v2631 = vadd.f32 %v1605, %v2623
        %v2632 = vadd.f32 %v1606, %v2628
        %v2633 = vsel %vm317, %v2631, 0.0
        %2634 = vadd.xlane.f32.xlu0 %v2633
        %v2635 = vpop.xlane.xlu0 %2634
        %v2636 = vsel %vm317, %v2632, 0.0
        %2637 = vadd.xlane.f32.xlu0 %v2636
        %v2638 = vpop.xlane.xlu0 %2637
        %v2639 = vmul.f32 %v2635, %v1343
        %v2640 = vmul.f32 %v2638, %v1343
        %v2641 = vsub.f32 %v2631, %v2639
        %v2642 = vsub.f32 %v2632, %v2640
        %v2643 = vmul.f32 %v2641, %v2641
        %v2644 = vmul.f32 %v2642, %v2642
        %v2645 = vsel %vm317, %v2643, 0.0
        %2646 = vadd.xlane.f32.xlu0 %v2645
        %v2647 = vpop.xlane.xlu0 %2646
        %v2648 = vsel %vm317, %v2644, 0.0
        %2649 = vadd.xlane.f32.xlu0 %v2648
        %v2650 = vpop.xlane.xlu0 %2649
        %v2651 = vmul.f32 %v2647, %v1343
        %v2652 = vmul.f32 %v2650, %v1343
        %v2653 = vadd.f32 %v2651, 1e-05
        %v2654 = vadd.f32 %v2652, 1e-05
        %v2655 = vrsqrt.pop %v2653
        %v2656 = vrsqrt.pop %v2654
        %v2657 = vmul.f32 %v2641, %v2655
        %v2658 = vmul.f32 %v2642, %v2656
        %v2659 = vld [vmem:[#allocation5 + $0x168] sm:$0x1]
        %v2660 = vlaneseq
        %v2661 = vshrl.u32 %v2660, 7
        %v2662 = vsub.s32 0, %v2661
        %v2663 = vrot.slane %v2659, %v2662
        %v2664 = vmul.f32 %v2657, %v2663
        %v2665 = vmul.f32 %v2658, %v2663
        %v2666 = vld [vmem:[#allocation5 + $0x170] sm:$0x1]
        %v2667 = vlaneseq
        %v2668 = vshrl.u32 %v2667, 7
        %v2669 = vsub.s32 0, %v2668
        %v2670 = vrot.slane %v2666, %v2669
        %v2671 = vadd.f32 %v2664, %v2670
        %v2672 = vadd.f32 %v2665, %v2670
        %v2673 = vld [vmem:[#allocation5 + $0x178] sm:$0xff]
        %v2674 = vld [vmem:[#allocation5 + $0x180] sm:$0xff]
        %v2675 = vld [vmem:[#allocation5 + $0x188] sm:$0xff]
        %v2676 = vld [vmem:[#allocation5 + $0x190] sm:$0xff]
        %v2677 = vld [vmem:[#allocation5 + $0x198] sm:$0x1]
        %v2678 = vlaneseq
        %v2679 = vshrl.u32 %v2678, 7
        %v2680 = vsub.s32 0, %v2679
        %v2681 = vrot.slane %v2677, %v2680
        %v2683 = vsel %vm317, %v2671, 0
        %v2686 = vsel %vm317, %v2672, 0
        %2688 = vmatprep.subr.mxu0 0.0
        %2689 = vmatpush1.msra.mxu0 %v2673
        %2690 = vmatprep.subr.mxu0 0.0
        %2691 = vmatpush1.msra.mxu0 %v2674
        %2692 = vmatprep.subr.mxu0 0.0
        %2693 = vmatpush1.msra.mxu0 %v2675
        %2694 = vmatprep.subr.mxu0 0.0
        %2695 = vmatpush1.msra.mxu0 %v2676
        %2696 = vmatprep.subr.mxu0 0.0
        %2697 = vmatpush1.msra.mxu0 0.0
        %2698 = vmatprep.subr.mxu0 0.0
        %2699 = vmatpush1.msra.mxu0 0.0
        %2700 = vmatprep.subr.mxu0 0.0
        %2701 = vmatpush1.msra.mxu0 0.0
        %2702 = vmatprep.subr.mxu0 0.0
        %2703 = vmatpush1.msra.mxu0 0.0
        %2704 = vmatprep.subr.mxu0 0.0
        %2705 = vmatpush1.msra.mxu0 0.0
        %2706 = vmatprep.subr.mxu0 0.0
        %2707 = vmatpush1.msra.mxu0 0.0
        %2708 = vmatprep.subr.mxu0 0.0
        %2709 = vmatpush1.msra.mxu0 0.0
        %2710 = vmatprep.subr.mxu0 0.0
        %2711 = vmatpush1.msra.mxu0 0.0
        %2712 = vmatprep.subr.mxu0 0.0
        %2713 = vmatpush1.msra.mxu0 0.0
        %2714 = vmatprep.subr.mxu0 0.0
        %2715 = vmatpush1.msra.mxu0 0.0
        %2716 = vmatprep.subr.mxu0 0.0
        %2717 = vmatpush1.msra.mxu0 0.0
        %2718 = vmatprep.subr.mxu0 0.0
        %2719 = vmatpush1.msra.mxu0 0.0
        %2720 = vmatprep.subr.mxu0 0.0
        %2721 = vmatpush1.msra.mxu0 0.0
        %2722 = vmatprep.subr.mxu0 0.0
        %2723 = vmatpush1.msra.mxu0 0.0
        %2724 = vmatprep.subr.mxu0 0.0
        %2725 = vmatpush1.msra.mxu0 0.0
        %2726 = vmatprep.subr.mxu0 0.0
        %2727 = vmatpush1.msra.mxu0 0.0
        %2728 = vmatprep.subr.mxu0 0.0
        %2729 = vmatpush1.msra.mxu0 0.0
        %2730 = vmatprep.subr.mxu0 0.0
        %2731 = vmatpush1.msra.mxu0 0.0
        %2732 = vmatprep.subr.mxu0 0.0
        %2733 = vmatpush1.msra.mxu0 0.0
        %2734 = vmatprep.subr.mxu0 0.0
        %2735 = vmatpush1.msra.mxu0 0.0
        %2736 = vmatprep.subr.mxu0 0.0
        %2737 = vmatpush1.msra.mxu0 0.0
        %2738 = vmatprep.subr.mxu0 0.0
        %2739 = vmatpush1.msra.mxu0 0.0
        %2740 = vmatprep.subr.mxu0 0.0
        %2741 = vmatpush1.msra.mxu0 0.0
        %2742 = vmatprep.subr.mxu0 0.0
        %2743 = vmatpush1.msra.mxu0 0.0
        %2744 = vmatprep.subr.mxu0 0.0
        %2745 = vmatpush1.msra.mxu0 0.0
        %2746 = vmatprep.subr.mxu0 0.0
        %2747 = vmatpush1.msra.mxu0 0.0
        %2748 = vmatprep.subr.mxu0 0.0
        %2749 = vmatpush1.msra.mxu0 0.0
        %2750 = vmatprep.subr.mxu0 0.0
        %2751 = vmatpush1.msra.mxu0 0.0
        %2752 = vmatprep.mubr.f32.mxu0 0.0
        %2753 = vmatmul.mubr.f32.gmra.mrb[0].mxu0 %v2683
        %v2754 = vpop.f32.mrb[0].mxu0
        %v2755 = vadd.f32 %v2681, %v2754
        %v2756 = vpop.f32.mrb[0].mxu0
        %2757 = vmatprep.mubr.f32.mxu0 0.0
        %2758 = vmatmul.mubr.f32.gmra.mrb[0].mxu0 %v2686
        %v2759 = vpop.f32.mrb[0].mxu0
        %v2760 = vadd.f32 %v2681, %v2759
        %v2761 = vpop.f32.mrb[0].mxu0
        %2762 = vdwg.mxu0
        %v2763 = vmax.f32 %v2755, 0.0
        %v2764 = vmax.f32 %v2760, 0.0
        %v2765 = vld [vmem:[#allocation5 + $0x1a0] sm:$0xff]
        %v2766 = vld [vmem:[#allocation5 + $0x1a8] sm:$0xff]
        %v2767 = vld [vmem:[#allocation5 + $0x1b0] sm:$0xff]
        %v2768 = vld [vmem:[#allocation5 + $0x1b8] sm:$0xff]
        %v2769 = vld [vmem:[#allocation5 + $0x1c0] sm:$0xff]
        %v2770 = vld [vmem:[#allocation5 + $0x1c8] sm:$0xff]
        %v2771 = vld [vmem:[#allocation5 + $0x1d0] sm:$0xff]
        %v2772 = vld [vmem:[#allocation5 + $0x1d8] sm:$0xff]
        %v2773 = vld [vmem:[#allocation5 + $0x1e0] sm:$0x1]
        %v2774 = vlaneseq
        %v2775 = vshrl.u32 %v2774, 7
        %v2776 = vsub.s32 0, %v2775
        %v2777 = vrot.slane %v2773, %v2776
        %v2779 = vsel %vm1483, %v2763, 0
        %v2782 = vsel %vm1483, %v2764, 0
        %2784 = vmatprep.subr.mxu0 0.0
        %2785 = vmatpush1.msra.mxu0 %v2765
        %2786 = vmatprep.subr.mxu0 0.0
        %2787 = vmatpush1.msra.mxu0 %v2766
        %2788 = vmatprep.subr.mxu0 0.0
        %2789 = vmatpush1.msra.mxu0 %v2767
        %2790 = vmatprep.subr.mxu0 0.0
        %2791 = vmatpush1.msra.mxu0 %v2768
        %2792 = vmatprep.subr.mxu0 0.0
        %2793 = vmatpush1.msra.mxu0 %v2769
        %2794 = vmatprep.subr.mxu0 0.0
        %2795 = vmatpush1.msra.mxu0 %v2770
        %2796 = vmatprep.subr.mxu0 0.0
        %2797 = vmatpush1.msra.mxu0 %v2771
        %2798 = vmatprep.subr.mxu0 0.0
        %2799 = vmatpush1.msra.mxu0 %v2772
        %2800 = vmatprep.subr.mxu0 0.0
        %2801 = vmatpush1.msra.mxu0 0.0
        %2802 = vmatprep.subr.mxu0 0.0
        %2803 = vmatpush1.msra.mxu0 0.0
        %2804 = vmatprep.subr.mxu0 0.0
        %2805 = vmatpush1.msra.mxu0 0.0
        %2806 = vmatprep.subr.mxu0 0.0
        %2807 = vmatpush1.msra.mxu0 0.0
        %2808 = vmatprep.subr.mxu0 0.0
        %2809 = vmatpush1.msra.mxu0 0.0
        %2810 = vmatprep.subr.mxu0 0.0
        %2811 = vmatpush1.msra.mxu0 0.0
        %2812 = vmatprep.subr.mxu0 0.0
        %2813 = vmatpush1.msra.mxu0 0.0
        %2814 = vmatprep.subr.mxu0 0.0
        %2815 = vmatpush1.msra.mxu0 0.0
        %2816 = vmatprep.subr.mxu0 0.0
        %2817 = vmatpush1.msra.mxu0 0.0
        %2818 = vmatprep.subr.mxu0 0.0
        %2819 = vmatpush1.msra.mxu0 0.0
        %2820 = vmatprep.subr.mxu0 0.0
        %2821 = vmatpush1.msra.mxu0 0.0
        %2822 = vmatprep.subr.mxu0 0.0
        %2823 = vmatpush1.msra.mxu0 0.0
        %2824 = vmatprep.subr.mxu0 0.0
        %2825 = vmatpush1.msra.mxu0 0.0
        %2826 = vmatprep.subr.mxu0 0.0
        %2827 = vmatpush1.msra.mxu0 0.0
        %2828 = vmatprep.subr.mxu0 0.0
        %2829 = vmatpush1.msra.mxu0 0.0
        %2830 = vmatprep.subr.mxu0 0.0
        %2831 = vmatpush1.msra.mxu0 0.0
        %2832 = vmatprep.subr.mxu0 0.0
        %2833 = vmatpush1.msra.mxu0 0.0
        %2834 = vmatprep.subr.mxu0 0.0
        %2835 = vmatpush1.msra.mxu0 0.0
        %2836 = vmatprep.subr.mxu0 0.0
        %2837 = vmatpush1.msra.mxu0 0.0
        %2838 = vmatprep.subr.mxu0 0.0
        %2839 = vmatpush1.msra.mxu0 0.0
        %2840 = vmatprep.subr.mxu0 0.0
        %2841 = vmatpush1.msra.mxu0 0.0
        %2842 = vmatprep.subr.mxu0 0.0
        %2843 = vmatpush1.msra.mxu0 0.0
        %2844 = vmatprep.subr.mxu0 0.0
        %2845 = vmatpush1.msra.mxu0 0.0
        %2846 = vmatprep.subr.mxu0 0.0
        %2847 = vmatpush1.msra.mxu0 0.0
        %2848 = vmatprep.mubr.f32.mxu0 0.0
        %2849 = vmatmul.mubr.f32.gmra.mrb[0].mxu0 %v2779
        %v2850 = vpop.f32.mrb[0].mxu0
        %v2851 = vadd.f32 %v2777, %v2850
        %v2852 = vpop.f32.mrb[0].mxu0
        %2853 = vmatprep.mubr.f32.mxu0 0.0
        %2854 = vmatmul.mubr.f32.gmra.mrb[0].mxu0 %v2782
        %v2855 = vpop.f32.mrb[0].mxu0
        %v2856 = vadd.f32 %v2777, %v2855
        %v2857 = vpop.f32.mrb[0].mxu0
        %2858 = vdwg.mxu0
        %v2859 = vadd.f32 %v2671, %v2851
        %v2860 = vadd.f32 %v2672, %v2856
        %v2861 = vsel %vm317, %v2859, 0.0
        %2862 = vadd.xlane.f32.xlu0 %v2861
        %v2863 = vpop.xlane.xlu0 %2862
        %v2864 = vsel %vm317, %v2860, 0.0
        %2865 = vadd.xlane.f32.xlu0 %v2864
        %v2866 = vpop.xlane.xlu0 %2865
        %v2867 = vmul.f32 %v2863, %v1343
        %v2868 = vmul.f32 %v2866, %v1343
        %v2869 = vsub.f32 %v2859, %v2867
        %v2870 = vsub.f32 %v2860, %v2868
        %v2871 = vmul.f32 %v2869, %v2869
        %v2872 = vmul.f32 %v2870, %v2870
        %v2873 = vsel %vm317, %v2871, 0.0
        %2874 = vadd.xlane.f32.xlu0 %v2873
        %v2875 = vpop.xlane.xlu0 %2874
        %v2876 = vsel %vm317, %v2872, 0.0
        %2877 = vadd.xlane.f32.xlu0 %v2876
        %v2878 = vpop.xlane.xlu0 %2877
        %v2879 = vmul.f32 %v2875, %v1343
        %v2880 = vmul.f32 %v2878, %v1343
        %v2881 = vadd.f32 %v2879, 1e-05
        %v2882 = vadd.f32 %v2880, 1e-05
        %v2883 = vrsqrt.pop %v2881
        %v2884 = vrsqrt.pop %v2882
        %v2885 = vmul.f32 %v2869, %v2883
        %v2886 = vmul.f32 %v2870, %v2884
        %v2887 = vld [vmem:[#allocation5 + $0x1e8] sm:$0x1]
        %v2888 = vlaneseq
        %v2889 = vshrl.u32 %v2888, 7
        %v2890 = vsub.s32 0, %v2889
        %v2891 = vrot.slane %v2887, %v2890
        %v2892 = vmul.f32 %v2885, %v2891
        %v2893 = vmul.f32 %v2886, %v2891
        %v2894 = vld [vmem:[#allocation5 + $0x1f0] sm:$0x1]
        %v2895 = vlaneseq
        %v2896 = vshrl.u32 %v2895, 7
        %v2897 = vsub.s32 0, %v2896
        %v2898 = vrot.slane %v2894, %v2897
        %v2899 = vadd.f32 %v2892, %v2898
        %v2900 = vadd.f32 %v2893, %v2898
        %v2901 = vld [vmem:[#allocation7] sm:$0xff]
        %v2902 = vld [vmem:[#allocation7 + $0x8] sm:$0xff]
        %v2903 = vld [vmem:[#allocation7 + $0x10] sm:$0xff]
        %v2904 = vld [vmem:[#allocation7 + $0x18] sm:$0xff]
        %v2905 = vld [vmem:[#allocation7 + $0x20] sm:$0xff]
        %v2906 = vld [vmem:[#allocation7 + $0x28] sm:$0xff]
        %v2907 = vld [vmem:[#allocation7 + $0x30] sm:$0xff]
        %v2908 = vld [vmem:[#allocation7 + $0x38] sm:$0xff]
        %v2909 = vmul.f32 %v2899, %v2901
        %v2910 = vmul.f32 %v2900, %v2902
        %v2911 = vmul.f32 %v2899, %v2903
        %v2912 = vmul.f32 %v2900, %v2904
        %v2913 = vmul.f32 %v2899, %v2905
        %v2914 = vmul.f32 %v2900, %v2906
        %v2915 = vmul.f32 %v2899, %v2907
        %v2916 = vmul.f32 %v2900, %v2908
        %v2917 = vsel %vm317, %v2909, 0.0
        %2918 = vadd.xlane.f32.xlu0 %v2917
        %v2919 = vpop.xlane.xlu0 %2918
        %v2920 = vsel %vm317, %v2910, 0.0
        %2921 = vadd.xlane.f32.xlu0 %v2920
        %v2922 = vpop.xlane.xlu0 %2921
        %v2923 = vsel %vm317, %v2911, 0.0
        %2924 = vadd.xlane.f32.xlu0 %v2923
        %v2925 = vpop.xlane.xlu0 %2924
        %v2926 = vsel %vm317, %v2912, 0.0
        %2927 = vadd.xlane.f32.xlu0 %v2926
        %v2928 = vpop.xlane.xlu0 %2927
        %v2929 = vsel %vm317, %v2913, 0.0
        %2930 = vadd.xlane.f32.xlu0 %v2929
        %v2931 = vpop.xlane.xlu0 %2930
        %v2932 = vsel %vm317, %v2914, 0.0
        %2933 = vadd.xlane.f32.xlu0 %v2932
        %v2934 = vpop.xlane.xlu0 %2933
        %v2935 = vsel %vm317, %v2915, 0.0
        %2936 = vadd.xlane.f32.xlu0 %v2935
        %v2937 = vpop.xlane.xlu0 %2936
        %v2938 = vsel %vm317, %v2916, 0.0
        %2939 = vadd.xlane.f32.xlu0 %v2938
        %v2940 = vpop.xlane.xlu0 %2939
        %v2941 = vld [vmem:[#allocation5 + $0x28] sm:$0x3]
        %v2942 = vld [vmem:[#allocation5 + $0x30] sm:$0x1]
        %v2943 = vlaneseq
        %v2944 = vshrl.u32 %v2943, 7
        %v2945 = vsub.s32 0, %v2944
        %v2946 = vrot.slane %v2942, %v2945
        %v2955 = vlaneseq
        %v2956 = vand.u32 %v2955, 127
        %v2957 = vlaneseq
        %v2958 = vshrl.u32 %v2957, 7
        %v2959 = vsub.s32 %v2956, %v2958
        %v2960 = vrot.slane %v2919, %v2959
        %v2961 = vadd.s32 %v2956, 4294967288
        %v2962 = vlaneseq
        %v2963 = vshrl.u32 %v2962, 7
        %v2964 = vsub.s32 %v2961, %v2963
        %v2965 = vrot.slane %v2922, %v2964
        %vm2966 = vcmask 130112
        %v2967 = vsel %vm2966, %v2965, %v2960
        %v2968 = vlaneseq
        %v2969 = vshrl.u32 %v2968, 7
        %v2970 = vsub.s32 %v2956, %v2969
        %v2971 = vrot.slane %v2925, %v2970
        %v2972 = vlaneseq
        %v2973 = vshrl.u32 %v2972, 7
        %v2974 = vsub.s32 %v2961, %v2973
        %v2975 = vrot.slane %v2928, %v2974
        %v2976 = vsel %vm2966, %v2975, %v2971
        %v2977 = vlaneseq
        %v2978 = vshrl.u32 %v2977, 7
        %v2979 = vsub.s32 %v2956, %v2978
        %v2980 = vrot.slane %v2931, %v2979
        %v2981 = vlaneseq
        %v2982 = vshrl.u32 %v2981, 7
        %v2983 = vsub.s32 %v2961, %v2982
        %v2984 = vrot.slane %v2934, %v2983
        %v2985 = vsel %vm2966, %v2984, %v2980
        %v2986 = vlaneseq
        %v2987 = vshrl.u32 %v2986, 7
        %v2988 = vsub.s32 %v2956, %v2987
        %v2989 = vrot.slane %v2937, %v2988
        %v2990 = vlaneseq
        %v2991 = vshrl.u32 %v2990, 7
        %v2992 = vsub.s32 %v2961, %v2991
        %v2993 = vrot.slane %v2940, %v2992
        %v2994 = vsel %vm2966, %v2993, %v2989
        %vm2995 = vcmask 1041409
        %v2996 = vsel %vm2995, %v2976, %v2967
        %vm2997 = vcmask 1042434
        %v2998 = vsel %vm2997, %v2985, %v2996
        %vm2999 = vcmask 1043459
        %v3000 = vsel %vm2999, %v2994, %v2998
        %v3002 = vsel %vm492, %v2941, 0
        %v3004 = vsel %vm492, %v3000, 0
        %3006 = vmatprep.subr.mxu0 0.0
        %3007 = vmatpush1.xpose.msra.mxu0 %v3004
        %3008 = vmatprep.subr.mxu0 0.0
        %3009 = vmatpush1.xpose.msra.mxu0 0.0
        %3010 = vmatprep.subr.mxu0 0.0
        %3011 = vmatpush1.xpose.msra.mxu0 0.0
        %3012 = vmatprep.subr.mxu0 0.0
        %3013 = vmatpush1.xpose.msra.mxu0 0.0
        %3014 = vmatprep.subr.mxu0 0.0
        %3015 = vmatpush1.xpose.msra.mxu0 0.0
        %3016 = vmatprep.subr.mxu0 0.0
        %3017 = vmatpush1.xpose.msra.mxu0 0.0
        %3018 = vmatprep.subr.mxu0 0.0
        %3019 = vmatpush1.xpose.msra.mxu0 0.0
        %3020 = vmatprep.subr.mxu0 0.0
        %3021 = vmatpush1.xpose.msra.mxu0 0.0
        %3022 = vmatprep.subr.mxu0 0.0
        %3023 = vmatpush1.xpose.msra.mxu0 0.0
        %3024 = vmatprep.subr.mxu0 0.0
        %3025 = vmatpush1.xpose.msra.mxu0 0.0
        %3026 = vmatprep.subr.mxu0 0.0
        %3027 = vmatpush1.xpose.msra.mxu0 0.0
        %3028 = vmatprep.subr.mxu0 0.0
        %3029 = vmatpush1.xpose.msra.mxu0 0.0
        %3030 = vmatprep.subr.mxu0 0.0
        %3031 = vmatpush1.xpose.msra.mxu0 0.0
        %3032 = vmatprep.subr.mxu0 0.0
        %3033 = vmatpush1.xpose.msra.mxu0 0.0
        %3034 = vmatprep.subr.mxu0 0.0
        %3035 = vmatpush1.xpose.msra.mxu0 0.0
        %3036 = vmatprep.subr.mxu0 0.0
        %3037 = vmatpush1.xpose.msra.mxu0 0.0
        %3038 = vmatprep.subr.mxu0 0.0
        %3039 = vmatpush1.xpose.msra.mxu0 0.0
        %3040 = vmatprep.subr.mxu0 0.0
        %3041 = vmatpush1.xpose.msra.mxu0 0.0
        %3042 = vmatprep.subr.mxu0 0.0
        %3043 = vmatpush1.xpose.msra.mxu0 0.0
        %3044 = vmatprep.subr.mxu0 0.0
        %3045 = vmatpush1.xpose.msra.mxu0 0.0
        %3046 = vmatprep.subr.mxu0 0.0
        %3047 = vmatpush1.xpose.msra.mxu0 0.0
        %3048 = vmatprep.subr.mxu0 0.0
        %3049 = vmatpush1.xpose.msra.mxu0 0.0
        %3050 = vmatprep.subr.mxu0 0.0
        %3051 = vmatpush1.xpose.msra.mxu0 0.0
        %3052 = vmatprep.subr.mxu0 0.0
        %3053 = vmatpush1.xpose.msra.mxu0 0.0
        %3054 = vmatprep.subr.mxu0 0.0
        %3055 = vmatpush1.xpose.msra.mxu0 0.0
        %3056 = vmatprep.subr.mxu0 0.0
        %3057 = vmatpush1.xpose.msra.mxu0 0.0
        %3058 = vmatprep.subr.mxu0 0.0
        %3059 = vmatpush1.xpose.msra.mxu0 0.0
        %3060 = vmatprep.subr.mxu0 0.0
        %3061 = vmatpush1.xpose.msra.mxu0 0.0
        %3062 = vmatprep.subr.mxu0 0.0
        %3063 = vmatpush1.xpose.msra.mxu0 0.0
        %3064 = vmatprep.subr.mxu0 0.0
        %3065 = vmatpush1.xpose.msra.mxu0 0.0
        %3066 = vmatprep.subr.mxu0 0.0
        %3067 = vmatpush1.xpose.msra.mxu0 0.0
        %3068 = vmatprep.subr.mxu0 0.0
        %3069 = vmatpush1.xpose.msra.mxu0 0.0
        %3070 = vmatprep.mubr.f32.mxu0 0.0
        %3071 = vmatmul.mubr.f32.gmra.mrb[0].mxu0 %v3002
        %v3072 = vpop.f32.mrb[0].mxu0
        %v3073 = vadd.f32 %v2946, %v3072
        %v3074 = vpop.f32.mrb[0].mxu0
        %3075 = vdwg.mxu0
        %vm3076 = vcmask 25600
        %3077 = vst.msk [vmem:[%s217] sm:$0x3] %vm3076, %v3073
        %s3078 = sand.u32 %s97, 1
        %s3079 = scalar_lea.sflag [#allocation4], %s3078
        %s3080 = sand.u32 %s97, 1
        %s3081 = smul.addr %s3080, 2
        %s3082 = scalar_lea.vmem [#allocation8], %s3081
        // Predicated region
        $region45: #{transformer_forward.1} parent=31 // pred_check
          %p3083 = pneg %p107
        $region46: #{transformer_forward.1} parent=31 // pred_check_branch
          %3085 = sbr.rel (%p3083) target = $region48
        $region47: #{transformer_forward.1} parent=31 // pred_region
          %s3087 = ssub.s32 32, 32
          %3088 = vsyncadd %s3079, %s3087
          %s3089 = smul.addr %s21, 32
          %s3090 = scalar_lea.hbm %s3, %s3089
          %s3092 = sshll.u32 %s3082, 4
          %s3093 = int_to_ptr.vmem [resolvable:$true] %s3092
          %3095 = dma.vmem_to_hbm [thread:$0]  %s3093, 32, %s3090, %s3079
        $region48: #{transformer_forward.1} parent=31 // pred_fallthru
          _
      $region32: #{transformer_forward.1} parent=5 // pred_fallthru
        _
      %p3096 = scmp.le.s32.totalorder 2, %s16
      // Predicated region
      $region49: #{transformer_forward.1} parent=5 // pred_check
        %p3097 = pneg %p3096
      $region50: #{transformer_forward.1} parent=5 // pred_check_branch
        %3099 = sbr.rel (%p3097) target = $region52
      $region51: #{transformer_forward.1} parent=5 // pred_region
        %s3100 = ssub.s32 %s16, 2
        // Predicated region
        $region53: #{transformer_forward.1} parent=51 // pred_check
          %p3101 = pneg %p113
        $region54: #{transformer_forward.1} parent=51 // pred_check_branch
          %3103 = sbr.rel (%p3101) target = $region56
        $region55: #{transformer_forward.1} parent=51 // pred_region
          %s3104 = sand.u32 %s98, 1
          %s3105 = scalar_lea.sflag [#allocation4], %s3104
          %s3106 = sand.u32 %s98, 1
          %s3107 = smul.addr %s3106, 2
          %s3108 = scalar_lea.vmem [#allocation8], %s3107
          %3109 = dma.done %s3105, 32
        $region56: #{transformer_forward.1} parent=51 // pred_fallthru
          _
      $region52: #{transformer_forward.1} parent=5 // pred_fallthru
        _
    $region6: #{transformer_forward.1} parent=1 // loop_footer
      %s20 = sadd.s32 1, %s16
    $region7: #{transformer_forward.1} parent=1 // loop_footer_branch
      %15 = sbr.rel target = $region3
    $region8: #{transformer_forward.1} parent=1 // loop_exit
      _
    %3110 = vsyncpa [#allocation3], 1
    %s3111 = scalar_lea.sflag [#allocation3], 1
    %3112 = vsyncpa %s3111, 1
    %3113 = vsyncpa [#allocation6], 1
    %3114 = vsyncpa [#allocation4], 1
    %s3115 = scalar_lea.sflag [#allocation4], 1
    %3116 = vsyncpa %s3115, 1

</llo_original>
